<compile_context>
chip_gen: v5e
topology: v5e:2x2
jax: 0.10.0
libtpu: 0.0.40
codegen_flags: <defaults>
</compile_context>

<pallas_src>
import functools

import jax
import jax.numpy as jnp
from jax import lax
from jax.experimental import pallas as pl
from jax.experimental.pallas import tpu as pltpu

EPS = 1e-5  # PyTorch BatchNorm3d default


# --------------------------------------------------------------------------------------
# pass 1: g1 = Wg@g, x1 = Wx@x  ->  store g1/x1 (intermediate dtype) and accumulate
#         per-sample, per-channel sum / sum-of-squares (deferred lane reduction).
# --------------------------------------------------------------------------------------
def _pass1_kernel(g_ref, x_ref, wg_ref, wx_ref,
                  g1_ref, x1_ref, sg_ref, ssg_ref, sx_ref, ssx_ref,
                  asg, assg, asx, assx):
    j = pl.program_id(1)

    @pl.when(j == 0)
    def _init():
        asg[...] = jnp.zeros_like(asg)
        assg[...] = jnp.zeros_like(assg)
        asx[...] = jnp.zeros_like(asx)
        assx[...] = jnp.zeros_like(assx)

    # [F_int, C] @ [C, TM] -> [F_int, TM]  (f32 accumulation on the MXU)
    g1 = jnp.dot(wg_ref[...], g_ref[...], preferred_element_type=jnp.float32)
    x1 = jnp.dot(wx_ref[...], x_ref[...], preferred_element_type=jnp.float32)

    g1_ref[...] = g1.astype(g1_ref.dtype)
    x1_ref[...] = x1.astype(x1_ref.dtype)

    # lane-partial moment accumulation: pure VPU adds, no per-step XLU reduce / narrow store
    asg[...] += g1
    assg[...] += g1 * g1
    asx[...] += x1
    assx[...] += x1 * x1

    @pl.when(j == pl.num_programs(1) - 1)
    def _finalize():
        sg_ref[...] = jnp.sum(asg[...], axis=-1, keepdims=True)
        ssg_ref[...] = jnp.sum(assg[...], axis=-1, keepdims=True)
        sx_ref[...] = jnp.sum(asx[...], axis=-1, keepdims=True)
        ssx_ref[...] = jnp.sum(assx[...], axis=-1, keepdims=True)


# --------------------------------------------------------------------------------------
# pass 2: p = wp . ReLU(scale_g*g1 + scale_x*x1 + shift)   (BN folded to scale/shift)
#         store p, accumulate its sum / sum-of-squares (padded voxels masked out).
# --------------------------------------------------------------------------------------
def _pass2_kernel(g1_ref, x1_ref, scg_ref, scx_ref, sh_ref, wp_ref,
                  p_ref, sp_ref, ssp_ref, asp, assp, *, s_true, tm):
    j = pl.program_id(1)

    @pl.when(j == 0)
    def _init():
        asp[...] = jnp.zeros_like(asp)
        assp[...] = jnp.zeros_like(assp)

    h = (g1_ref[...].astype(jnp.float32) * scg_ref[...]
         + x1_ref[...].astype(jnp.float32) * scx_ref[...]
         + sh_ref[...])                                   # [F_int, TM]
    h = jnp.maximum(h, 0.0)                               # ReLU

    # F_int -> 1 projection: VPU multiply + sublane reduce (no 1-wide MXU matmul)
    p = jnp.sum(h * wp_ref[...], axis=0, keepdims=True)   # [1, TM]

    # zero padded voxels so they do not pollute the BN(psi) statistics
    lane = lax.broadcasted_iota(jnp.int32, (1, tm), 1)
    p = jnp.where(j * tm + lane < s_true, p, 0.0)

    p_ref[...] = p.astype(p_ref.dtype)
    asp[...] += p
    assp[...] += p * p

    @pl.when(j == pl.num_programs(1) - 1)
    def _finalize():
        sp_ref[...] = jnp.sum(asp[...], axis=-1, keepdims=True)
        ssp_ref[...] = jnp.sum(assp[...], axis=-1, keepdims=True)


# --------------------------------------------------------------------------------------
# pass 3: psi = sigmoid(scale_p * p + shift_p); out = x * psi   (elementwise, parallel)
# --------------------------------------------------------------------------------------
def _pass3_kernel(ps_ref, x_ref, p_ref, o_ref):
    scale = ps_ref[0]                                     # scalars from SMEM
    shift = ps_ref[1]
    t = p_ref[...].astype(jnp.float32) * scale + shift    # [1, TM]
    psi = 1.0 / (1.0 + jnp.exp(-t))                       # exact sigmoid (EUP exp)
    o_ref[...] = (x_ref[...].astype(jnp.float32) * psi).astype(o_ref.dtype)


# --------------------------------------------------------------------------------------
# wrapper helpers
# --------------------------------------------------------------------------------------
def _vmem_capacity_bytes():
    try:
        return int(pltpu.get_tpu_info().vmem_capacity_bytes)
    except Exception:
        return 64 * 1024 * 1024        # conservative (v7x-sized) fallback


def _pick_tile(S, bytes_per_voxel, budget_bytes, max_tm=32768):
    """Voxel tile: multiple of 128, sized from the VMEM budget, dividing padded S."""
    tm_budget = (budget_bytes // max(bytes_per_voxel, 1)) // 128 * 128
    tm_budget = max(128, min(max_tm, tm_budget))
    s128 = -(-S // 128) * 128
    if tm_budget >= s128:
        return s128, s128                              # one tile per sample (pad <= 127)
    if S % 128 == 0:
        t = tm_budget
        while t >= 128 and S % t != 0:
            t -= 128
        if t >= max(1024, tm_budget // 2):             # a good exact divisor: no padding
            return t, S
    return tm_budget, -(-S // tm_budget) * tm_budget   # pad S up to a multiple of TM


# --------------------------------------------------------------------------------------
# wrapper
# --------------------------------------------------------------------------------------
def attention_block(g, x, params, *, intermediate_dtype=jnp.bfloat16):
    """g: [N, F_g, D, H, W], x: [N, F_l, D, H, W] (NCDHW, like PyTorch)."""
    N, F_g, D, H, W = g.shape
    _, F_l, _, _, _ = x.shape
    F_int = params["wg"].shape[0]
    S = D * H * W
    M = N * S                                    # true voxel count for BN statistics

    f32 = jnp.float32
    opd = g.dtype                                # MXU operand dtype follows activations
    idt = intermediate_dtype
    opd_b = jnp.dtype(opd).itemsize
    idt_b = jnp.dtype(idt).itemsize
    out_b = jnp.dtype(x.dtype).itemsize

    # generation-aware VMEM budget / scoped limit
    cap = _vmem_capacity_bytes()
    vmem_limit = max(32 * 1024 * 1024, min(int(0.75 * cap), 96 * 1024 * 1024))
    budget = max(8 * 1024 * 1024, int(0.55 * cap))

    # worst double-buffered per-voxel footprint over the three passes
    bpv1 = 2 * (F_g + F_l) * opd_b + 2 * (2 * F_int) * idt_b + 4 * F_int * 4
    bpv2 = 2 * (2 * F_int) * idt_b + 2 * idt_b + 2 * 4
    bpv3 = 2 * (F_l * opd_b + idt_b + F_l * out_b)
    TM, Sp = _pick_tile(S, max(bpv1, bpv2, bpv3), budget)
    nt = Sp // TM
    grid = (N, nt)

    # reshape (and zero-pad the voxel axis if needed) — no HBM transpose pass
    g3 = g.reshape(N, F_g, S)
    x3 = x.reshape(N, F_l, S)
    if Sp != S:
        pad = ((0, 0), (0, 0), (0, Sp - S))
        g3 = jnp.pad(g3, pad)
        x3 = jnp.pad(x3, pad)

    wg = params["wg"].astype(opd)                # [F_int, F_g]
    wx = params["wx"].astype(opd)                # [F_int, F_l]

    def dspec(C):
        return pl.BlockSpec((None, C, TM), lambda n, j: (n, 0, j))

    def wspec(a):
        return pl.BlockSpec(a.shape, lambda n, j: (0,) * a.ndim)

    nstat_spec = pl.BlockSpec((None, F_int, 1), lambda n, j: (n, 0, 0))
    nstat_shape = jax.ShapeDtypeStruct((N, F_int, 1), f32)
    pstat_spec = pl.BlockSpec((None, 1, 1), lambda n, j: (n, 0, 0))
    pstat_shape = jax.ShapeDtypeStruct((N, 1, 1), f32)

    cp_stats = pltpu.CompilerParams(dimension_semantics=("parallel", "arbitrary"),
                                    vmem_limit_bytes=vmem_limit)
    cp_ew = pltpu.CompilerParams(dimension_semantics=("parallel", "parallel"),
                                 vmem_limit_bytes=vmem_limit)

    # ---------------- pass 1: g1/x1 + their per-sample moments ----------------
    g1, x1, sg, ssg, sx, ssx = pl.pallas_call(
        _pass1_kernel,
        grid=grid,
        in_specs=[dspec(F_g), dspec(F_l), wspec(wg), wspec(wx)],
        out_specs=(dspec(F_int), dspec(F_int),
                   nstat_spec, nstat_spec, nstat_spec, nstat_spec),
        out_shape=(jax.ShapeDtypeStruct((N, F_int, Sp), idt),
                   jax.ShapeDtypeStruct((N, F_int, Sp), idt),
                   nstat_shape, nstat_shape, nstat_shape, nstat_shape),
        scratch_shapes=[pltpu.VMEM((F_int, TM), f32)] * 4,
        compiler_params=cp_stats,
    )(g3, x3, wg, wx)

    # fold BN (training mode, biased variance) into per-channel scale + shift.
    # Conv biases cancel exactly under training-mode BN, so they never enter the kernels.
    Mf = float(M)
    sg_t, ssg_t = jnp.sum(sg, axis=0)[:, 0], jnp.sum(ssg, axis=0)[:, 0]
    sx_t, ssx_t = jnp.sum(sx, axis=0)[:, 0], jnp.sum(ssx, axis=0)[:, 0]

    mg = sg_t / Mf
    vg = jnp.maximum(ssg_t / Mf - mg * mg, 0.0)
    scale_g = params["gam_g"].astype(f32) * lax.rsqrt(vg + EPS)
    shift_g = params["bet_g"].astype(f32) - scale_g * mg

    mx = sx_t / Mf
    vx = jnp.maximum(ssx_t / Mf - mx * mx, 0.0)
    scale_x = params["gam_x"].astype(f32) * lax.rsqrt(vx + EPS)
    shift_x = params["bet_x"].astype(f32) - scale_x * mx

    scg = scale_g[:, None]                       # [F_int, 1]
    scx = scale_x[:, None]
    shc = (shift_g + shift_x)[:, None]           # combined shift
    wp_col = params["wp"].astype(f32)[:, None]   # [F_int, 1]

    # ---------------- pass 2: p and its batch moments ----------------
    p, sp, ssp = pl.pallas_call(
        functools.partial(_pass2_kernel, s_true=S, tm=TM),
        grid=grid,
        in_specs=[dspec(F_int), dspec(F_int),
                  wspec(scg), wspec(scx), wspec(shc), wspec(wp_col)],
        out_specs=(dspec(1), pstat_spec, pstat_spec),
        out_shape=(jax.ShapeDtypeStruct((N, 1, Sp), idt),
                   pstat_shape, pstat_shape),
        scratch_shapes=[pltpu.VMEM((1, TM), f32)] * 2,
        compiler_params=cp_stats,
    )(g1, x1, scg, scx, shc, wp_col)

    mp = jnp.sum(sp) / Mf
    vp = jnp.maximum(jnp.sum(ssp) / Mf - mp * mp, 0.0)
    scale_p = params["gam_p"].astype(f32) * lax.rsqrt(vp + EPS)
    shift_p = params["bet_p"].astype(f32) - scale_p * mp
    ps = jnp.stack([scale_p, shift_p]).astype(f32)         # (2,) scalars -> SMEM

    # ---------------- pass 3: psi + gating (elementwise, megacore-parallel) ------------
    out3 = pl.pallas_call(
        _pass3_kernel,
        grid=grid,
        in_specs=[pl.BlockSpec(memory_space=pltpu.MemorySpace.SMEM),
                  dspec(F_l), dspec(1)],
        out_specs=pl.BlockSpec((None, F_l, TM), lambda n, j: (n, 0, j)),
        out_shape=jax.ShapeDtypeStruct((N, F_l, Sp), x.dtype),
        compiler_params=cp_ew,
    )(ps, x3, p)

    if Sp != S:
        out3 = out3[:, :, :S]
    return out3.reshape(N, F_l, D, H, W)


# --------------------------------------------------------------------------------------
# pure-JAX reference (mirrors the PyTorch training-mode forward, biases included)
# --------------------------------------------------------------------------------------
def attention_block_ref(g, x, params):
    N, F_g, D, H, W = g.shape
    _, F_l, _, _, _ = x.shape
    S = D * H * W
    f32 = jnp.float32
    g2 = g.reshape(N, F_g, S).astype(f32)
    x2 = x.reshape(N, F_l, S).astype(f32)

    def bn(h, gamma, beta):
        mu = jnp.mean(h, axis=(0, 2), keepdims=True)
        var = jnp.mean((h - mu) ** 2, axis=(0, 2), keepdims=True)
        return gamma[None, :, None] * (h - mu) * lax.rsqrt(var + EPS) + beta[None, :, None]

    g1 = jnp.einsum("oc,ncs->nos", params["wg"].astype(f32), g2) + params["bg"].astype(f32)[None, :, None]
    x1 = jnp.einsum("oc,ncs->nos", params["wx"].astype(f32), x2) + params["bx"].astype(f32)[None, :, None]
    h = jnp.maximum(bn(g1, params["gam_g"].astype(f32), params["bet_g"].astype(f32))
                    + bn(x1, params["gam_x"].astype(f32), params["bet_x"].astype(f32)), 0.0)
    p = jnp.einsum("o,nos->ns", params["wp"].astype(f32), h)[:, None, :] + params["bp"].astype(f32)
    mu = jnp.mean(p)
    var = jnp.mean((p - mu) ** 2)
    p = params["gam_p"].astype(f32) * (p - mu) * lax.rsqrt(var + EPS) + params["bet_p"].astype(f32)
    psi = jax.nn.sigmoid(p)
    out = (x2 * psi).astype(x.dtype)
    return out.reshape(N, F_l, D, H, W)


def init_params(key, F_g, F_l, F_int, dtype=jnp.float32):
    ks = jax.random.split(key, 10)
    # Conv weights stored as [Cout, Cin] (PyTorch [Cout, Cin, 1, 1, 1] squeezed).
    return dict(
        wg=jax.random.normal(ks[0], (F_int, F_g), dtype) * 0.2,
        bg=jax.random.normal(ks[1], (F_int,), dtype) * 0.1,
        gam_g=1.0 + 0.1 * jax.random.normal(ks[2], (F_int,), dtype),
        bet_g=0.1 * jax.random.normal(ks[3], (F_int,), dtype),
        wx=jax.random.normal(ks[4], (F_int, F_l), dtype) * 0.2,
        bx=jax.random.normal(ks[5], (F_int,), dtype) * 0.1,
        gam_x=1.0 + 0.1 * jax.random.normal(ks[6], (F_int,), dtype),
        bet_x=0.1 * jax.random.normal(ks[7], (F_int,), dtype),
        wp=jax.random.normal(ks[8], (F_int,), dtype) * 0.2,
        bp=jnp.asarray(0.05, dtype),
        gam_p=jnp.asarray(1.1, dtype),
        bet_p=jnp.asarray(-0.05, dtype),
    )


if __name__ == "__main__":
    key = jax.random.PRNGKey(0)
    kg, kx, kp = jax.random.split(key, 3)

    # `Up(down_in_channels, out_channels)` builds Attention_block(F_g=down_in, F_l=out,
    # F_int=out//2); small demo sizes:
    N, F_g, F_l = 2, 8, 8
    F_int = F_l // 2
    D = H = W = 16                       # S = 4096 voxels per sample, M = 8192

    g = jax.random.normal(kg, (N, F_g, D, H, W), jnp.float32)
    x = jax.random.normal(kx, (N, F_l, D, H, W), jnp.float32)
    params = init_params(kp, F_g, F_l, F_int)

    out = jax.jit(attention_block)(g, x, params)
    out = jax.block_until_ready(out)

    ref = attention_block_ref(g, x, params)
    assert out.shape == x.shape
    err = float(jnp.max(jnp.abs(out.astype(jnp.float32) - ref.astype(jnp.float32))))
    # Tolerance accounts for the bf16 g1/x1/p intermediates (BN scale amplifies their
    # ~1e-3 relative rounding before the sigmoid).  The sigmoid itself is exact now.
    # Structural bugs would produce errors orders of magnitude larger.
    assert err < 5e-2, f"mismatch vs reference: max abs err={err}"

    print("KERNEL_OK")
</pallas_src>

<mosaic_0001>
module attributes {stable_mosaic.version = 11 : i64} {
  func.func @_pass1_kernel(%arg0: i32, %arg1: i32, %arg2: memref<1x8x4096xf32, #tpu.memory_space<vmem>>, %arg3: memref<1x8x4096xf32, #tpu.memory_space<vmem>>, %arg4: memref<4x8xf32, #tpu.memory_space<vmem>>, %arg5: memref<4x8xf32, #tpu.memory_space<vmem>>, %arg6: memref<1x4x4096xbf16, #tpu.memory_space<vmem>>, %arg7: memref<1x4x4096xbf16, #tpu.memory_space<vmem>>, %arg8: memref<1x4x1xf32, #tpu.memory_space<vmem>>, %arg9: memref<1x4x1xf32, #tpu.memory_space<vmem>>, %arg10: memref<1x4x1xf32, #tpu.memory_space<vmem>>, %arg11: memref<1x4x1xf32, #tpu.memory_space<vmem>>, %arg12: memref<4x4096xf32, #tpu.memory_space<vmem>>, %arg13: memref<4x4096xf32, #tpu.memory_space<vmem>>, %arg14: memref<4x4096xf32, #tpu.memory_space<vmem>>, %arg15: memref<4x4096xf32, #tpu.memory_space<vmem>>) attributes {dimension_semantics = [#tpu.dimension_semantics<parallel>, #tpu.dimension_semantics<arbitrary>], iteration_bounds = array<i64: 2, 1>, scalar_prefetch = 0 : i64, scratch_operands = 4 : i64, tpu.core_type = #tpu.core_type<tc>, window_params = [{transform_indices = @transform_0, window_bounds = array<i64: 1, 8, 4096>}, {transform_indices = @transform_1, window_bounds = array<i64: 1, 8, 4096>}, {pipeline_mode = #tpu.pipeline_mode<synchronous>, transform_indices = @transform_2, window_bounds = array<i64: 4, 8>}, {pipeline_mode = #tpu.pipeline_mode<synchronous>, transform_indices = @transform_3, window_bounds = array<i64: 4, 8>}, {transform_indices = @transform_4, window_bounds = array<i64: 1, 4, 4096>}, {transform_indices = @transform_5, window_bounds = array<i64: 1, 4, 4096>}, {transform_indices = @transform_6, window_bounds = array<i64: 1, 4, 1>}, {transform_indices = @transform_7, window_bounds = array<i64: 1, 4, 1>}, {transform_indices = @transform_8, window_bounds = array<i64: 1, 4, 1>}, {transform_indices = @transform_9, window_bounds = array<i64: 1, 4, 1>}]} {
    %c0_i32 = arith.constant 0 : i32
    %0 = arith.cmpi eq, %arg1, %c0_i32 : i32
    %1 = arith.extui %0 : i1 to i32
    %c0_i32_0 = arith.constant 0 : i32
    %2 = arith.cmpi ne, %1, %c0_i32_0 : i32
    scf.if %2 {
      %cst_35 = arith.constant 0.000000e+00 : f32
      %36 = vector.broadcast %cst_35 : f32 to vector<4x4096xf32>
      %c0_36 = arith.constant 0 : index
      %c0_37 = arith.constant 0 : index
      %37 = vector.load %arg12[%c0_36, %c0_37] : memref<4x4096xf32, #tpu.memory_space<vmem>>, vector<4x4096xf32>
      tpu.vector_store %arg12[%c0_36, %c0_37], %36 {strides = array<i32>} : memref<4x4096xf32, #tpu.memory_space<vmem>>, vector<4x4096xf32>,
      %cst_38 = arith.constant 0.000000e+00 : f32
      %38 = vector.broadcast %cst_38 : f32 to vector<4x4096xf32>
      %c0_39 = arith.constant 0 : index
      %c0_40 = arith.constant 0 : index
      %39 = vector.load %arg13[%c0_39, %c0_40] : memref<4x4096xf32, #tpu.memory_space<vmem>>, vector<4x4096xf32>
      tpu.vector_store %arg13[%c0_39, %c0_40], %38 {strides = array<i32>} : memref<4x4096xf32, #tpu.memory_space<vmem>>, vector<4x4096xf32>,
      %cst_41 = arith.constant 0.000000e+00 : f32
      %40 = vector.broadcast %cst_41 : f32 to vector<4x4096xf32>
      %c0_42 = arith.constant 0 : index
      %c0_43 = arith.constant 0 : index
      %41 = vector.load %arg14[%c0_42, %c0_43] : memref<4x4096xf32, #tpu.memory_space<vmem>>, vector<4x4096xf32>
      tpu.vector_store %arg14[%c0_42, %c0_43], %40 {strides = array<i32>} : memref<4x4096xf32, #tpu.memory_space<vmem>>, vector<4x4096xf32>,
      %cst_44 = arith.constant 0.000000e+00 : f32
      %42 = vector.broadcast %cst_44 : f32 to vector<4x4096xf32>
      %c0_45 = arith.constant 0 : index
      %c0_46 = arith.constant 0 : index
      %43 = vector.load %arg15[%c0_45, %c0_46] : memref<4x4096xf32, #tpu.memory_space<vmem>>, vector<4x4096xf32>
      tpu.vector_store %arg15[%c0_45, %c0_46], %42 {strides = array<i32>} : memref<4x4096xf32, #tpu.memory_space<vmem>>, vector<4x4096xf32>,
    } else {
    }
    %c0 = arith.constant 0 : index
    %c0_1 = arith.constant 0 : index
    %3 = vector.load %arg4[%c0, %c0_1] : memref<4x8xf32, #tpu.memory_space<vmem>>, vector<4x8xf32>
    %c0_2 = arith.constant 0 : index
    %c0_3 = arith.constant 0 : index
    %c0_4 = arith.constant 0 : index
    %4 = vector.load %arg2[%c0_2, %c0_3, %c0_4] : memref<1x8x4096xf32, #tpu.memory_space<vmem>>, vector<1x8x4096xf32>
    %5 = vector.shape_cast %4 : vector<1x8x4096xf32> to vector<8x4096xf32>
    %cst = arith.constant dense<0.000000e+00> : vector<4x4096xf32>
    %6 = tpu.matmul %3, %5, %cst {dimension_numbers = #tpu.dot_dimension_numbers<[1], [0], [0], [1], [0, 0, 1, 1], [], []>} : vector<4x8xf32>, vector<8x4096xf32>, vector<4x4096xf32> -> vector<4x4096xf32>
    %c0_5 = arith.constant 0 : index
    %c0_6 = arith.constant 0 : index
    %7 = vector.load %arg5[%c0_5, %c0_6] : memref<4x8xf32, #tpu.memory_space<vmem>>, vector<4x8xf32>
    %c0_7 = arith.constant 0 : index
    %c0_8 = arith.constant 0 : index
    %c0_9 = arith.constant 0 : index
    %8 = vector.load %arg3[%c0_7, %c0_8, %c0_9] : memref<1x8x4096xf32, #tpu.memory_space<vmem>>, vector<1x8x4096xf32>
    %9 = vector.shape_cast %8 : vector<1x8x4096xf32> to vector<8x4096xf32>
    %cst_10 = arith.constant dense<0.000000e+00> : vector<4x4096xf32>
    %10 = tpu.matmul %7, %9, %cst_10 {dimension_numbers = #tpu.dot_dimension_numbers<[1], [0], [0], [1], [0, 0, 1, 1], [], []>} : vector<4x8xf32>, vector<8x4096xf32>, vector<4x4096xf32> -> vector<4x4096xf32>
    %11 = arith.truncf %6 : vector<4x4096xf32> to vector<4x4096xbf16>
    %c0_11 = arith.constant 0 : index
    %c0_12 = arith.constant 0 : index
    %c0_13 = arith.constant 0 : index
    %12 = vector.load %arg6[%c0_11, %c0_12, %c0_13] : memref<1x4x4096xbf16, #tpu.memory_space<vmem>>, vector<1x4x4096xbf16>
    %13 = vector.shape_cast %12 : vector<1x4x4096xbf16> to vector<4x4096xbf16>
    %14 = vector.shape_cast %11 : vector<4x4096xbf16> to vector<1x4x4096xbf16>
    tpu.vector_store %arg6[%c0_11, %c0_12, %c0_13], %14 {strides = array<i32>} : memref<1x4x4096xbf16, #tpu.memory_space<vmem>>, vector<1x4x4096xbf16>,
    %15 = arith.truncf %10 : vector<4x4096xf32> to vector<4x4096xbf16>
    %c0_14 = arith.constant 0 : index
    %c0_15 = arith.constant 0 : index
    %c0_16 = arith.constant 0 : index
    %16 = vector.load %arg7[%c0_14, %c0_15, %c0_16] : memref<1x4x4096xbf16, #tpu.memory_space<vmem>>, vector<1x4x4096xbf16>
    %17 = vector.shape_cast %16 : vector<1x4x4096xbf16> to vector<4x4096xbf16>
    %18 = vector.shape_cast %15 : vector<4x4096xbf16> to vector<1x4x4096xbf16>
    tpu.vector_store %arg7[%c0_14, %c0_15, %c0_16], %18 {strides = array<i32>} : memref<1x4x4096xbf16, #tpu.memory_space<vmem>>, vector<1x4x4096xbf16>,
    %c0_17 = arith.constant 0 : index
    %c0_18 = arith.constant 0 : index
    %19 = vector.load %arg12[%c0_17, %c0_18] : memref<4x4096xf32, #tpu.memory_space<vmem>>, vector<4x4096xf32>
    %20 = arith.addf %19, %6 : vector<4x4096xf32>
    %c0_19 = arith.constant 0 : index
    %c0_20 = arith.constant 0 : index
    %21 = vector.load %arg12[%c0_19, %c0_20] : memref<4x4096xf32, #tpu.memory_space<vmem>>, vector<4x4096xf32>
    tpu.vector_store %arg12[%c0_19, %c0_20], %20 {strides = array<i32>} : memref<4x4096xf32, #tpu.memory_space<vmem>>, vector<4x4096xf32>,
    %c0_21 = arith.constant 0 : index
    %c0_22 = arith.constant 0 : index
    %22 = vector.load %arg13[%c0_21, %c0_22] : memref<4x4096xf32, #tpu.memory_space<vmem>>, vector<4x4096xf32>
    %23 = arith.mulf %6, %6 : vector<4x4096xf32>
    %24 = arith.addf %22, %23 : vector<4x4096xf32>
    %c0_23 = arith.constant 0 : index
    %c0_24 = arith.constant 0 : index
    %25 = vector.load %arg13[%c0_23, %c0_24] : memref<4x4096xf32, #tpu.memory_space<vmem>>, vector<4x4096xf32>
    tpu.vector_store %arg13[%c0_23, %c0_24], %24 {strides = array<i32>} : memref<4x4096xf32, #tpu.memory_space<vmem>>, vector<4x4096xf32>,
    %c0_25 = arith.constant 0 : index
    %c0_26 = arith.constant 0 : index
    %26 = vector.load %arg14[%c0_25, %c0_26] : memref<4x4096xf32, #tpu.memory_space<vmem>>, vector<4x4096xf32>
    %27 = arith.addf %26, %10 : vector<4x4096xf32>
    %c0_27 = arith.constant 0 : index
    %c0_28 = arith.constant 0 : index
    %28 = vector.load %arg14[%c0_27, %c0_28] : memref<4x4096xf32, #tpu.memory_space<vmem>>, vector<4x4096xf32>
    tpu.vector_store %arg14[%c0_27, %c0_28], %27 {strides = array<i32>} : memref<4x4096xf32, #tpu.memory_space<vmem>>, vector<4x4096xf32>,
    %c0_29 = arith.constant 0 : index
    %c0_30 = arith.constant 0 : index
    %29 = vector.load %arg15[%c0_29, %c0_30] : memref<4x4096xf32, #tpu.memory_space<vmem>>, vector<4x4096xf32>
    %30 = arith.mulf %10, %10 : vector<4x4096xf32>
    %31 = arith.addf %29, %30 : vector<4x4096xf32>
    %c0_31 = arith.constant 0 : index
    %c0_32 = arith.constant 0 : index
    %32 = vector.load %arg15[%c0_31, %c0_32] : memref<4x4096xf32, #tpu.memory_space<vmem>>, vector<4x4096xf32>
    tpu.vector_store %arg15[%c0_31, %c0_32], %31 {strides = array<i32>} : memref<4x4096xf32, #tpu.memory_space<vmem>>, vector<4x4096xf32>,
    %c0_i32_33 = arith.constant 0 : i32
    %33 = arith.cmpi eq, %arg1, %c0_i32_33 : i32
    %34 = arith.extui %33 : i1 to i32
    %c0_i32_34 = arith.constant 0 : i32
    %35 = arith.cmpi ne, %34, %c0_i32_34 : i32
    scf.if %35 {
      %c0_35 = arith.constant 0 : index
      %c0_36 = arith.constant 0 : index
      %36 = vector.load %arg12[%c0_35, %c0_36] : memref<4x4096xf32, #tpu.memory_space<vmem>>, vector<4x4096xf32>
      %cst_37 = arith.constant dense<0.000000e+00> : vector<4xf32>
      %37 = vector.multi_reduction <add>, %36, %cst_37 [1] : vector<4x4096xf32> to vector<4xf32>
      %38 = vector.shape_cast %37 : vector<4xf32> to vector<4x1xf32>
      %c0_38 = arith.constant 0 : index
      %c0_39 = arith.constant 0 : index
      %c0_40 = arith.constant 0 : index
      %39 = vector.load %arg8[%c0_38, %c0_39, %c0_40] : memref<1x4x1xf32, #tpu.memory_space<vmem>>, vector<1x4x1xf32>
      %40 = vector.shape_cast %39 : vector<1x4x1xf32> to vector<4x1xf32>
      %41 = vector.shape_cast %38 : vector<4x1xf32> to vector<1x4x1xf32>
      tpu.vector_store %arg8[%c0_38, %c0_39, %c0_40], %41 {strides = array<i32>} : memref<1x4x1xf32, #tpu.memory_space<vmem>>, vector<1x4x1xf32>,
      %c0_41 = arith.constant 0 : index
      %c0_42 = arith.constant 0 : index
      %42 = vector.load %arg13[%c0_41, %c0_42] : memref<4x4096xf32, #tpu.memory_space<vmem>>, vector<4x4096xf32>
      %cst_43 = arith.constant dense<0.000000e+00> : vector<4xf32>
      %43 = vector.multi_reduction <add>, %42, %cst_43 [1] : vector<4x4096xf32> to vector<4xf32>
      %44 = vector.shape_cast %43 : vector<4xf32> to vector<4x1xf32>
      %c0_44 = arith.constant 0 : index
      %c0_45 = arith.constant 0 : index
      %c0_46 = arith.constant 0 : index
      %45 = vector.load %arg9[%c0_44, %c0_45, %c0_46] : memref<1x4x1xf32, #tpu.memory_space<vmem>>, vector<1x4x1xf32>
      %46 = vector.shape_cast %45 : vector<1x4x1xf32> to vector<4x1xf32>
      %47 = vector.shape_cast %44 : vector<4x1xf32> to vector<1x4x1xf32>
      tpu.vector_store %arg9[%c0_44, %c0_45, %c0_46], %47 {strides = array<i32>} : memref<1x4x1xf32, #tpu.memory_space<vmem>>, vector<1x4x1xf32>,
      %c0_47 = arith.constant 0 : index
      %c0_48 = arith.constant 0 : index
      %48 = vector.load %arg14[%c0_47, %c0_48] : memref<4x4096xf32, #tpu.memory_space<vmem>>, vector<4x4096xf32>
      %cst_49 = arith.constant dense<0.000000e+00> : vector<4xf32>
      %49 = vector.multi_reduction <add>, %48, %cst_49 [1] : vector<4x4096xf32> to vector<4xf32>
      %50 = vector.shape_cast %49 : vector<4xf32> to vector<4x1xf32>
      %c0_50 = arith.constant 0 : index
      %c0_51 = arith.constant 0 : index
      %c0_52 = arith.constant 0 : index
      %51 = vector.load %arg10[%c0_50, %c0_51, %c0_52] : memref<1x4x1xf32, #tpu.memory_space<vmem>>, vector<1x4x1xf32>
      %52 = vector.shape_cast %51 : vector<1x4x1xf32> to vector<4x1xf32>
      %53 = vector.shape_cast %50 : vector<4x1xf32> to vector<1x4x1xf32>
      tpu.vector_store %arg10[%c0_50, %c0_51, %c0_52], %53 {strides = array<i32>} : memref<1x4x1xf32, #tpu.memory_space<vmem>>, vector<1x4x1xf32>,
      %c0_53 = arith.constant 0 : index
      %c0_54 = arith.constant 0 : index
      %54 = vector.load %arg15[%c0_53, %c0_54] : memref<4x4096xf32, #tpu.memory_space<vmem>>, vector<4x4096xf32>
      %cst_55 = arith.constant dense<0.000000e+00> : vector<4xf32>
      %55 = vector.multi_reduction <add>, %54, %cst_55 [1] : vector<4x4096xf32> to vector<4xf32>
      %56 = vector.shape_cast %55 : vector<4xf32> to vector<4x1xf32>
      %c0_56 = arith.constant 0 : index
      %c0_57 = arith.constant 0 : index
      %c0_58 = arith.constant 0 : index
      %57 = vector.load %arg11[%c0_56, %c0_57, %c0_58] : memref<1x4x1xf32, #tpu.memory_space<vmem>>, vector<1x4x1xf32>
      %58 = vector.shape_cast %57 : vector<1x4x1xf32> to vector<4x1xf32>
      %59 = vector.shape_cast %56 : vector<4x1xf32> to vector<1x4x1xf32>
      tpu.vector_store %arg11[%c0_56, %c0_57, %c0_58], %59 {strides = array<i32>} : memref<1x4x1xf32, #tpu.memory_space<vmem>>, vector<1x4x1xf32>,
    } else {
    }
    return
  }
  func.func @transform_0(%arg0: i32, %arg1: i32) -> (i32, i32, i32) {
    %c0_i32 = arith.constant 0 : i32
    %c0_i32_0 = arith.constant 0 : i32
    return %arg0, %c0_i32, %arg1 : i32, i32, i32
  }
  func.func @transform_1(%arg0: i32, %arg1: i32) -> (i32, i32, i32) {
    %c0_i32 = arith.constant 0 : i32
    %c0_i32_0 = arith.constant 0 : i32
    return %arg0, %c0_i32, %arg1 : i32, i32, i32
  }
  func.func @transform_2(%arg0: i32, %arg1: i32) -> (i32, i32) {
    %c0_i32 = arith.constant 0 : i32
    %c0_i32_0 = arith.constant 0 : i32
    %c0_i32_1 = arith.constant 0 : i32
    return %c0_i32, %c0_i32_0 : i32, i32
  }
  func.func @transform_3(%arg0: i32, %arg1: i32) -> (i32, i32) {
    %c0_i32 = arith.constant 0 : i32
    %c0_i32_0 = arith.constant 0 : i32
    %c0_i32_1 = arith.constant 0 : i32
    return %c0_i32, %c0_i32_0 : i32, i32
  }
  func.func @transform_4(%arg0: i32, %arg1: i32) -> (i32, i32, i32) {
    %c0_i32 = arith.constant 0 : i32
    %c0_i32_0 = arith.constant 0 : i32
    return %arg0, %c0_i32, %arg1 : i32, i32, i32
  }
  func.func @transform_5(%arg0: i32, %arg1: i32) -> (i32, i32, i32) {
    %c0_i32 = arith.constant 0 : i32
    %c0_i32_0 = arith.constant 0 : i32
    return %arg0, %c0_i32, %arg1 : i32, i32, i32
  }
  func.func @transform_6(%arg0: i32, %arg1: i32) -> (i32, i32, i32) {
    %c0_i32 = arith.constant 0 : i32
    %c0_i32_0 = arith.constant 0 : i32
    %c0_i32_1 = arith.constant 0 : i32
    return %arg0, %c0_i32, %c0_i32_0 : i32, i32, i32
  }
  func.func @transform_7(%arg0: i32, %arg1: i32) -> (i32, i32, i32) {
    %c0_i32 = arith.constant 0 : i32
    %c0_i32_0 = arith.constant 0 : i32
    %c0_i32_1 = arith.constant 0 : i32
    return %arg0, %c0_i32, %c0_i32_0 : i32, i32, i32
  }
  func.func @transform_8(%arg0: i32, %arg1: i32) -> (i32, i32, i32) {
    %c0_i32 = arith.constant 0 : i32
    %c0_i32_0 = arith.constant 0 : i32
    %c0_i32_1 = arith.constant 0 : i32
    return %arg0, %c0_i32, %c0_i32_0 : i32, i32, i32
  }
  func.func @transform_9(%arg0: i32, %arg1: i32) -> (i32, i32, i32) {
    %c0_i32 = arith.constant 0 : i32
    %c0_i32_0 = arith.constant 0 : i32
    %c0_i32_1 = arith.constant 0 : i32
    return %arg0, %c0_i32, %c0_i32_0 : i32, i32, i32
  }
}

module attributes {stable_mosaic.version = 11 : i64} {
  func.func @_pass2_kernel(%arg0: i32, %arg1: i32, %arg2: memref<1x4x4096xbf16, #tpu.memory_space<vmem>>, %arg3: memref<1x4x4096xbf16, #tpu.memory_space<vmem>>, %arg4: memref<4x1xf32, #tpu.memory_space<vmem>>, %arg5: memref<4x1xf32, #tpu.memory_space<vmem>>, %arg6: memref<4x1xf32, #tpu.memory_space<vmem>>, %arg7: memref<4x1xf32, #tpu.memory_space<vmem>>, %arg8: memref<1x1x4096xbf16, #tpu.memory_space<vmem>>, %arg9: memref<1x1x1xf32, #tpu.memory_space<vmem>>, %arg10: memref<1x1x1xf32, #tpu.memory_space<vmem>>, %arg11: memref<1x4096xf32, #tpu.memory_space<vmem>>, %arg12: memref<1x4096xf32, #tpu.memory_space<vmem>>) attributes {dimension_semantics = [#tpu.dimension_semantics<parallel>, #tpu.dimension_semantics<arbitrary>], iteration_bounds = array<i64: 2, 1>, scalar_prefetch = 0 : i64, scratch_operands = 2 : i64, tpu.core_type = #tpu.core_type<tc>, window_params = [{transform_indices = @transform_0, window_bounds = array<i64: 1, 4, 4096>}, {transform_indices = @transform_1, window_bounds = array<i64: 1, 4, 4096>}, {pipeline_mode = #tpu.pipeline_mode<synchronous>, transform_indices = @transform_2, window_bounds = array<i64: 4, 1>}, {pipeline_mode = #tpu.pipeline_mode<synchronous>, transform_indices = @transform_3, window_bounds = array<i64: 4, 1>}, {pipeline_mode = #tpu.pipeline_mode<synchronous>, transform_indices = @transform_4, window_bounds = array<i64: 4, 1>}, {pipeline_mode = #tpu.pipeline_mode<synchronous>, transform_indices = @transform_5, window_bounds = array<i64: 4, 1>}, {transform_indices = @transform_6, window_bounds = array<i64: 1, 1, 4096>}, {transform_indices = @transform_7, window_bounds = array<i64: 1, 1, 1>}, {transform_indices = @transform_8, window_bounds = array<i64: 1, 1, 1>}]} {
    %c0_i32 = arith.constant 0 : i32
    %0 = arith.cmpi eq, %arg1, %c0_i32 : i32
    %1 = arith.extui %0 : i1 to i32
    %c0_i32_0 = arith.constant 0 : i32
    %2 = arith.cmpi ne, %1, %c0_i32_0 : i32
    scf.if %2 {
      %cst_30 = arith.constant 0.000000e+00 : f32
      %48 = vector.broadcast %cst_30 : f32 to vector<1x4096xf32>
      %c0_31 = arith.constant 0 : index
      %c0_32 = arith.constant 0 : index
      %49 = vector.load %arg11[%c0_31, %c0_32] : memref<1x4096xf32, #tpu.memory_space<vmem>>, vector<1x4096xf32>
      tpu.vector_store %arg11[%c0_31, %c0_32], %48 {strides = array<i32>} : memref<1x4096xf32, #tpu.memory_space<vmem>>, vector<1x4096xf32>,
      %cst_33 = arith.constant 0.000000e+00 : f32
      %50 = vector.broadcast %cst_33 : f32 to vector<1x4096xf32>
      %c0_34 = arith.constant 0 : index
      %c0_35 = arith.constant 0 : index
      %51 = vector.load %arg12[%c0_34, %c0_35] : memref<1x4096xf32, #tpu.memory_space<vmem>>, vector<1x4096xf32>
      tpu.vector_store %arg12[%c0_34, %c0_35], %50 {strides = array<i32>} : memref<1x4096xf32, #tpu.memory_space<vmem>>, vector<1x4096xf32>,
    } else {
    }
    %c0 = arith.constant 0 : index
    %c0_1 = arith.constant 0 : index
    %c0_2 = arith.constant 0 : index
    %3 = vector.load %arg2[%c0, %c0_1, %c0_2] : memref<1x4x4096xbf16, #tpu.memory_space<vmem>>, vector<1x4x4096xbf16>
    %4 = vector.shape_cast %3 : vector<1x4x4096xbf16> to vector<4x4096xbf16>
    %5 = arith.extf %4 : vector<4x4096xbf16> to vector<4x4096xf32>
    %c0_3 = arith.constant 0 : index
    %c0_4 = arith.constant 0 : index
    %6 = vector.load %arg4[%c0_3, %c0_4] : memref<4x1xf32, #tpu.memory_space<vmem>>, vector<4x1xf32>
    %7 = vector.broadcast %6 : vector<4x1xf32> to vector<4x4096xf32>
    %8 = arith.mulf %5, %7 : vector<4x4096xf32>
    %c0_5 = arith.constant 0 : index
    %c0_6 = arith.constant 0 : index
    %c0_7 = arith.constant 0 : index
    %9 = vector.load %arg3[%c0_5, %c0_6, %c0_7] : memref<1x4x4096xbf16, #tpu.memory_space<vmem>>, vector<1x4x4096xbf16>
    %10 = vector.shape_cast %9 : vector<1x4x4096xbf16> to vector<4x4096xbf16>
    %11 = arith.extf %10 : vector<4x4096xbf16> to vector<4x4096xf32>
    %c0_8 = arith.constant 0 : index
    %c0_9 = arith.constant 0 : index
    %12 = vector.load %arg5[%c0_8, %c0_9] : memref<4x1xf32, #tpu.memory_space<vmem>>, vector<4x1xf32>
    %13 = vector.broadcast %12 : vector<4x1xf32> to vector<4x4096xf32>
    %14 = arith.mulf %11, %13 : vector<4x4096xf32>
    %15 = arith.addf %8, %14 : vector<4x4096xf32>
    %c0_10 = arith.constant 0 : index
    %c0_11 = arith.constant 0 : index
    %16 = vector.load %arg6[%c0_10, %c0_11] : memref<4x1xf32, #tpu.memory_space<vmem>>, vector<4x1xf32>
    %17 = vector.broadcast %16 : vector<4x1xf32> to vector<4x4096xf32>
    %18 = arith.addf %15, %17 : vector<4x4096xf32>
    %cst = arith.constant 0.000000e+00 : f32
    %19 = vector.broadcast %cst : f32 to vector<4x4096xf32>
    %20 = arith.maximumf %18, %19 : vector<4x4096xf32>
    %c0_12 = arith.constant 0 : index
    %c0_13 = arith.constant 0 : index
    %21 = vector.load %arg7[%c0_12, %c0_13] : memref<4x1xf32, #tpu.memory_space<vmem>>, vector<4x1xf32>
    %22 = vector.broadcast %21 : vector<4x1xf32> to vector<4x4096xf32>
    %23 = arith.mulf %20, %22 : vector<4x4096xf32>
    %cst_14 = arith.constant dense<0.000000e+00> : vector<4096xf32>
    %24 = vector.multi_reduction <add>, %23, %cst_14 [0] : vector<4x4096xf32> to vector<4096xf32>
    %25 = vector.shape_cast %24 : vector<4096xf32> to vector<1x4096xf32>
    %26 = tpu.iota {dimensions = array<i32: 1>} : vector<1x4096xi32>
    %c4096_i32 = arith.constant 4096 : i32
    %27 = arith.muli %arg1, %c4096_i32 : i32
    %28 = vector.broadcast %27 : i32 to vector<1x4096xi32>
    %29 = arith.addi %28, %26 : vector<1x4096xi32>
    %c4096_i32_15 = arith.constant 4096 : i32
    %30 = vector.broadcast %c4096_i32_15 : i32 to vector<1x4096xi32>
    %31 = arith.cmpi slt, %29, %30 : vector<1x4096xi32>
    %cst_16 = arith.constant 0.000000e+00 : f32
    %32 = vector.broadcast %cst_16 : f32 to vector<1x4096xf32>
    %33 = arith.select %31, %25, %32 : vector<1x4096xi1>, vector<1x4096xf32>
    %34 = arith.truncf %33 : vector<1x4096xf32> to vector<1x4096xbf16>
    %c0_17 = arith.constant 0 : index
    %c0_18 = arith.constant 0 : index
    %c0_19 = arith.constant 0 : index
    %35 = vector.load %arg8[%c0_17, %c0_18, %c0_19] : memref<1x1x4096xbf16, #tpu.memory_space<vmem>>, vector<1x1x4096xbf16>
    %36 = vector.shape_cast %35 : vector<1x1x4096xbf16> to vector<1x4096xbf16>
    %37 = vector.shape_cast %34 : vector<1x4096xbf16> to vector<1x1x4096xbf16>
    tpu.vector_store %arg8[%c0_17, %c0_18, %c0_19], %37 {strides = array<i32>} : memref<1x1x4096xbf16, #tpu.memory_space<vmem>>, vector<1x1x4096xbf16>,
    %c0_20 = arith.constant 0 : index
    %c0_21 = arith.constant 0 : index
    %38 = vector.load %arg11[%c0_20, %c0_21] : memref<1x4096xf32, #tpu.memory_space<vmem>>, vector<1x4096xf32>
    %39 = arith.addf %38, %33 : vector<1x4096xf32>
    %c0_22 = arith.constant 0 : index
    %c0_23 = arith.constant 0 : index
    %40 = vector.load %arg11[%c0_22, %c0_23] : memref<1x4096xf32, #tpu.memory_space<vmem>>, vector<1x4096xf32>
    tpu.vector_store %arg11[%c0_22, %c0_23], %39 {strides = array<i32>} : memref<1x4096xf32, #tpu.memory_space<vmem>>, vector<1x4096xf32>,
    %c0_24 = arith.constant 0 : index
    %c0_25 = arith.constant 0 : index
    %41 = vector.load %arg12[%c0_24, %c0_25] : memref<1x4096xf32, #tpu.memory_space<vmem>>, vector<1x4096xf32>
    %42 = arith.mulf %33, %33 : vector<1x4096xf32>
    %43 = arith.addf %41, %42 : vector<1x4096xf32>
    %c0_26 = arith.constant 0 : index
    %c0_27 = arith.constant 0 : index
    %44 = vector.load %arg12[%c0_26, %c0_27] : memref<1x4096xf32, #tpu.memory_space<vmem>>, vector<1x4096xf32>
    tpu.vector_store %arg12[%c0_26, %c0_27], %43 {strides = array<i32>} : memref<1x4096xf32, #tpu.memory_space<vmem>>, vector<1x4096xf32>,
    %c0_i32_28 = arith.constant 0 : i32
    %45 = arith.cmpi eq, %arg1, %c0_i32_28 : i32
    %46 = arith.extui %45 : i1 to i32
    %c0_i32_29 = arith.constant 0 : i32
    %47 = arith.cmpi ne, %46, %c0_i32_29 : i32
    scf.if %47 {
      %c0_30 = arith.constant 0 : index
      %c0_31 = arith.constant 0 : index
      %48 = vector.load %arg11[%c0_30, %c0_31] : memref<1x4096xf32, #tpu.memory_space<vmem>>, vector<1x4096xf32>
      %cst_32 = arith.constant dense<0.000000e+00> : vector<1xf32>
      %49 = vector.multi_reduction <add>, %48, %cst_32 [1] : vector<1x4096xf32> to vector<1xf32>
      %50 = vector.shape_cast %49 : vector<1xf32> to vector<1x1xf32>
      %c0_33 = arith.constant 0 : index
      %c0_34 = arith.constant 0 : index
      %c0_35 = arith.constant 0 : index
      %51 = vector.load %arg9[%c0_33, %c0_34, %c0_35] : memref<1x1x1xf32, #tpu.memory_space<vmem>>, vector<1x1x1xf32>
      %52 = vector.shape_cast %51 : vector<1x1x1xf32> to vector<1x1xf32>
      %53 = vector.shape_cast %50 : vector<1x1xf32> to vector<1x1x1xf32>
      tpu.vector_store %arg9[%c0_33, %c0_34, %c0_35], %53 {strides = array<i32>} : memref<1x1x1xf32, #tpu.memory_space<vmem>>, vector<1x1x1xf32>,
      %c0_36 = arith.constant 0 : index
      %c0_37 = arith.constant 0 : index
      %54 = vector.load %arg12[%c0_36, %c0_37] : memref<1x4096xf32, #tpu.memory_space<vmem>>, vector<1x4096xf32>
      %cst_38 = arith.constant dense<0.000000e+00> : vector<1xf32>
      %55 = vector.multi_reduction <add>, %54, %cst_38 [1] : vector<1x4096xf32> to vector<1xf32>
      %56 = vector.shape_cast %55 : vector<1xf32> to vector<1x1xf32>
      %c0_39 = arith.constant 0 : index
      %c0_40 = arith.constant 0 : index
      %c0_41 = arith.constant 0 : index
      %57 = vector.load %arg10[%c0_39, %c0_40, %c0_41] : memref<1x1x1xf32, #tpu.memory_space<vmem>>, vector<1x1x1xf32>
      %58 = vector.shape_cast %57 : vector<1x1x1xf32> to vector<1x1xf32>
      %59 = vector.shape_cast %56 : vector<1x1xf32> to vector<1x1x1xf32>
      tpu.vector_store %arg10[%c0_39, %c0_40, %c0_41], %59 {strides = array<i32>} : memref<1x1x1xf32, #tpu.memory_space<vmem>>, vector<1x1x1xf32>,
    } else {
    }
    return
  }
  func.func @transform_0(%arg0: i32, %arg1: i32) -> (i32, i32, i32) {
    %c0_i32 = arith.constant 0 : i32
    %c0_i32_0 = arith.constant 0 : i32
    return %arg0, %c0_i32, %arg1 : i32, i32, i32
  }
  func.func @transform_1(%arg0: i32, %arg1: i32) -> (i32, i32, i32) {
    %c0_i32 = arith.constant 0 : i32
    %c0_i32_0 = arith.constant 0 : i32
    return %arg0, %c0_i32, %arg1 : i32, i32, i32
  }
  func.func @transform_2(%arg0: i32, %arg1: i32) -> (i32, i32) {
    %c0_i32 = arith.constant 0 : i32
    %c0_i32_0 = arith.constant 0 : i32
    %c0_i32_1 = arith.constant 0 : i32
    return %c0_i32, %c0_i32_0 : i32, i32
  }
  func.func @transform_3(%arg0: i32, %arg1: i32) -> (i32, i32) {
    %c0_i32 = arith.constant 0 : i32
    %c0_i32_0 = arith.constant 0 : i32
    %c0_i32_1 = arith.constant 0 : i32
    return %c0_i32, %c0_i32_0 : i32, i32
  }
  func.func @transform_4(%arg0: i32, %arg1: i32) -> (i32, i32) {
    %c0_i32 = arith.constant 0 : i32
    %c0_i32_0 = arith.constant 0 : i32
    %c0_i32_1 = arith.constant 0 : i32
    return %c0_i32, %c0_i32_0 : i32, i32
  }
  func.func @transform_5(%arg0: i32, %arg1: i32) -> (i32, i32) {
    %c0_i32 = arith.constant 0 : i32
    %c0_i32_0 = arith.constant 0 : i32
    %c0_i32_1 = arith.constant 0 : i32
    return %c0_i32, %c0_i32_0 : i32, i32
  }
  func.func @transform_6(%arg0: i32, %arg1: i32) -> (i32, i32, i32) {
    %c0_i32 = arith.constant 0 : i32
    %c0_i32_0 = arith.constant 0 : i32
    return %arg0, %c0_i32, %arg1 : i32, i32, i32
  }
  func.func @transform_7(%arg0: i32, %arg1: i32) -> (i32, i32, i32) {
    %c0_i32 = arith.constant 0 : i32
    %c0_i32_0 = arith.constant 0 : i32
    %c0_i32_1 = arith.constant 0 : i32
    return %arg0, %c0_i32, %c0_i32_0 : i32, i32, i32
  }
  func.func @transform_8(%arg0: i32, %arg1: i32) -> (i32, i32, i32) {
    %c0_i32 = arith.constant 0 : i32
    %c0_i32_0 = arith.constant 0 : i32
    %c0_i32_1 = arith.constant 0 : i32
    return %arg0, %c0_i32, %c0_i32_0 : i32, i32, i32
  }
}

module attributes {stable_mosaic.version = 11 : i64} {
  func.func @_pass3_kernel(%arg0: i32, %arg1: i32, %arg2: memref<2xf32, #tpu.memory_space<smem>>, %arg3: memref<1x8x4096xf32, #tpu.memory_space<vmem>>, %arg4: memref<1x1x4096xbf16, #tpu.memory_space<vmem>>, %arg5: memref<1x8x4096xf32, #tpu.memory_space<vmem>>) attributes {dimension_semantics = [#tpu.dimension_semantics<parallel>, #tpu.dimension_semantics<parallel>], iteration_bounds = array<i64: 2, 1>, scalar_prefetch = 0 : i64, scratch_operands = 0 : i64, tpu.core_type = #tpu.core_type<tc>, window_params = [{transform_indices = @transform_0, window_bounds = array<i64: 2>}, {transform_indices = @transform_1, window_bounds = array<i64: 1, 8, 4096>}, {transform_indices = @transform_2, window_bounds = array<i64: 1, 1, 4096>}, {transform_indices = @transform_3, window_bounds = array<i64: 1, 8, 4096>}]} {
    %c0 = arith.constant 0 : index
    %0 = memref.load %arg2[%c0] : memref<2xf32, #tpu.memory_space<smem>>
    %c1 = arith.constant 1 : index
    %1 = memref.load %arg2[%c1] : memref<2xf32, #tpu.memory_space<smem>>
    %c0_0 = arith.constant 0 : index
    %c0_1 = arith.constant 0 : index
    %c0_2 = arith.constant 0 : index
    %2 = vector.load %arg4[%c0_0, %c0_1, %c0_2] : memref<1x1x4096xbf16, #tpu.memory_space<vmem>>, vector<1x1x4096xbf16>
    %3 = vector.shape_cast %2 : vector<1x1x4096xbf16> to vector<1x4096xbf16>
    %4 = arith.extf %3 : vector<1x4096xbf16> to vector<1x4096xf32>
    %5 = vector.broadcast %0 : f32 to vector<1x4096xf32>
    %6 = arith.mulf %4, %5 : vector<1x4096xf32>
    %7 = vector.broadcast %1 : f32 to vector<1x4096xf32>
    %8 = arith.addf %6, %7 : vector<1x4096xf32>
    %cst = arith.constant 0.000000e+00 : f32
    %9 = vector.broadcast %cst : f32 to vector<1x4096xf32>
    %10 = arith.subf %9, %8 : vector<1x4096xf32>
    %11 = math.exp %10 : vector<1x4096xf32>
    %cst_3 = arith.constant 1.000000e+00 : f32
    %12 = vector.broadcast %cst_3 : f32 to vector<1x4096xf32>
    %13 = arith.addf %12, %11 : vector<1x4096xf32>
    %cst_4 = arith.constant 1.000000e+00 : f32
    %14 = vector.broadcast %cst_4 : f32 to vector<1x4096xf32>
    %15 = arith.divf %14, %13 : vector<1x4096xf32>
    %c0_5 = arith.constant 0 : index
    %c0_6 = arith.constant 0 : index
    %c0_7 = arith.constant 0 : index
    %16 = vector.load %arg3[%c0_5, %c0_6, %c0_7] : memref<1x8x4096xf32, #tpu.memory_space<vmem>>, vector<1x8x4096xf32>
    %17 = vector.shape_cast %16 : vector<1x8x4096xf32> to vector<8x4096xf32>
    %18 = vector.broadcast %15 : vector<1x4096xf32> to vector<8x4096xf32>
    %19 = arith.mulf %17, %18 : vector<8x4096xf32>
    %c0_8 = arith.constant 0 : index
    %c0_9 = arith.constant 0 : index
    %c0_10 = arith.constant 0 : index
    %20 = vector.load %arg5[%c0_8, %c0_9, %c0_10] : memref<1x8x4096xf32, #tpu.memory_space<vmem>>, vector<1x8x4096xf32>
    %21 = vector.shape_cast %20 : vector<1x8x4096xf32> to vector<8x4096xf32>
    %22 = vector.shape_cast %19 : vector<8x4096xf32> to vector<1x8x4096xf32>
    tpu.vector_store %arg5[%c0_8, %c0_9, %c0_10], %22 {strides = array<i32>} : memref<1x8x4096xf32, #tpu.memory_space<vmem>>, vector<1x8x4096xf32>,
    return
  }
  func.func @transform_0(%arg0: i32, %arg1: i32) -> i32 {
    %c0_i32 = arith.constant 0 : i32
    %c0_i32_0 = arith.constant 0 : i32
    return %c0_i32 : i32
  }
  func.func @transform_1(%arg0: i32, %arg1: i32) -> (i32, i32, i32) {
    %c0_i32 = arith.constant 0 : i32
    %c0_i32_0 = arith.constant 0 : i32
    return %arg0, %c0_i32, %arg1 : i32, i32, i32
  }
  func.func @transform_2(%arg0: i32, %arg1: i32) -> (i32, i32, i32) {
    %c0_i32 = arith.constant 0 : i32
    %c0_i32_0 = arith.constant 0 : i32
    return %arg0, %c0_i32, %arg1 : i32, i32, i32
  }
  func.func @transform_3(%arg0: i32, %arg1: i32) -> (i32, i32, i32) {
    %c0_i32 = arith.constant 0 : i32
    %c0_i32_0 = arith.constant 0 : i32
    return %arg0, %c0_i32, %arg1 : i32, i32, i32
  }
}

</mosaic_0001>

<llo_original>
// kernel: attention_block.4
$region0: #{attention_block.4}
  #allocation0 [shape = 'u32[]', space=smem, size = 0x4, offset = 0x4, fixed_abs, tag = 'smem constant byte address 0x4 - core index']
  #allocation1 [shape = 'u32[72,128]{1,0:T(1,128)}', space=vmem, size = 0x9000, scoped, tag = 'internal scratch']
  #allocation2 [shape = 'f32[1,4096]{1,0:T(1,128)}', space=vmem, size = 0x4000, scoped, tag = 'scratch operand']
  #allocation3 [shape = 'f32[1,4096]{1,0:T(1,128)}', space=vmem, size = 0x4000, scoped, tag = 'scratch operand']
  %s0 = inlined_call_operand.vmem [shape: bf16[2,4,4096], index: 0, kind: input, shape index: {}]
  %s1 = inlined_call_operand.vmem [shape: bf16[2,4,4096], index: 1, kind: input, shape index: {}]
  %s2 = inlined_call_operand.vmem [shape: f32[4,1], index: 2, kind: input, shape index: {}]
  %s3 = inlined_call_operand.vmem [shape: f32[4,1], index: 3, kind: input, shape index: {}]
  %s4 = inlined_call_operand.vmem [shape: f32[4,1], index: 4, kind: input, shape index: {}]
  %s5 = inlined_call_operand.vmem [shape: f32[4,1], index: 5, kind: input, shape index: {}]
  %s6 = inlined_call_operand.vmem [shape: bf16[2,1,4096], index: 6, kind: output, shape index: {0}]
  %s7 = inlined_call_operand.vmem [shape: f32[2,1,1], index: 7, kind: output, shape index: {1}]
  %s8 = inlined_call_operand.vmem [shape: f32[2,1,1], index: 8, kind: output, shape index: {2}]
  %9 = xla_tuple %s6, %s7, %s8
  %s10 = sld [smem:[#allocation0]]
  $region81: #{attention_block.4} parent=0
    _
  %s12 = ssub.s32 1, %s10
  %s13 = scalar_select 0, %s12, %s10
  loop: start=0, step=1, limit=4
  $region2: #{attention_block.4} parent=0 // loop_pre_header
    _
  $region3: #{attention_block.4} parent=0 // loop_header
    %s15 = sphi 0, %s19
    %p16 = scmp.ge.s32.totalorder %s15, 4
    %s22 = sphi 0, %s34
    %s23 = sphi 0, %s30
    %s24 = sphi 0, %s22
    %s25 = sphi 0, %s23
    %s26 = sphi 0, %s24
    %s27 = sphi 0, %s25
    %s39 = sphi 0, %s41
    %s42 = sphi 0, %s39
    %s43 = sphi 0, %s42
    %s59 = sphi 0, %s43
    %s67 = sphi 0, %s69
    %s70 = sphi 0, %s67
    %s71 = sphi 0, %s70
    %s87 = sphi 0, %s71
    %s91 = sphi 0, %s91
    %s93 = sphi 0, %s91
    %s94 = sphi 0, %s93
    %s108 = sphi 0, %s94
    %s112 = sphi 0, %s112
    %s114 = sphi 0, %s112
    %s115 = sphi 0, %s114
    %s129 = sphi 0, %s115
    %s133 = sphi 0, %s133
    %s135 = sphi 0, %s133
    %s136 = sphi 0, %s135
    %s150 = sphi 0, %s136
    %s154 = sphi 0, %s154
    %s156 = sphi 0, %s154
    %s157 = sphi 0, %s156
    %s171 = sphi 0, %s157
    %s179 = sphi 0, %s181
    %s182 = sphi 0, %s179
    %s183 = sphi 0, %s182
    %s199 = sphi 0, %s183
    %s205 = sphi 0, %s207
    %s208 = sphi 0, %s205
    %s209 = sphi 0, %s208
    %s225 = sphi 0, %s209
    %s231 = sphi 0, %s233
    %s234 = sphi 0, %s231
    %s235 = sphi 0, %s234
    %s251 = sphi 0, %s235
  $region4: #{attention_block.4} parent=0 // loop_header_branch
    %18 = sbr.rel (%p16) target = $region8
  $region5: #{attention_block.4} parent=0 // loop_body
    %s20 = ssub.s32 %s15, 1
    %s21 = ssub.s32 %s15, 2
    %s28 = sadd.s32 1, %s23
    %p29 = scmp.ge.s32.totalorder %s28, 1
    %s30 = scalar_select %p29, 0, %s28
    %s31 = sadd.s32 1, %s22
    %s32 = scalar_select %p29, %s31, %s22
    %p33 = scmp.ge.s32.totalorder %s32, 2
    %s34 = scalar_select %p33, 0, %s32
    %s35 = ssub.s32 %s22, %s34
    %s36 = ssub.s32 %s23, %s30
    %s37 = sor.u32 %s35, %s36
    %p38 = scmp.eq.s32.totalorder %s37, 0
    %s40 = sadd.s32 %s39, 1
    %s41 = scalar_select %p38, %s39, %s40
    %p44 = pneg %p38
    %p45 = scmp.eq.s32.totalorder %s15, 1
    %p46 = por %p44, %p45
    %p47 = scmp.ne.s32.totalorder %s39, %s42
    %p48 = scmp.eq.s32.totalorder %s15, 0
    %p49 = por %p47, %p48
    %p50 = scmp.ne.s32.totalorder %s39, %s42
    %p51 = scmp.eq.s32.totalorder %s20, 1
    %p52 = por %p50, %p51
    %p53 = scmp.ne.s32.totalorder %s42, %s43
    %p54 = scmp.eq.s32.totalorder %s20, 0
    %p55 = por %p53, %p54
    %p56 = scmp.ne.s32.totalorder %s42, %s43
    %p57 = scmp.eq.s32.totalorder %s21, 1
    %p58 = por %p56, %p57
    %p60 = scmp.ne.s32.totalorder %s43, %s59
    %p61 = scmp.eq.s32.totalorder %s21, 0
    %p62 = por %p60, %p61
    %s63 = ssub.s32 %s22, %s34
    %s64 = ssub.s32 %s23, %s30
    %s65 = sor.u32 %s63, %s64
    %p66 = scmp.eq.s32.totalorder %s65, 0
    %s68 = sadd.s32 %s67, 1
    %s69 = scalar_select %p66, %s67, %s68
    %p72 = pneg %p66
    %p73 = scmp.eq.s32.totalorder %s15, 1
    %p74 = por %p72, %p73
    %p75 = scmp.ne.s32.totalorder %s67, %s70
    %p76 = scmp.eq.s32.totalorder %s15, 0
    %p77 = por %p75, %p76
    %p78 = scmp.ne.s32.totalorder %s67, %s70
    %p79 = scmp.eq.s32.totalorder %s20, 1
    %p80 = por %p78, %p79
    %p81 = scmp.ne.s32.totalorder %s70, %s71
    %p82 = scmp.eq.s32.totalorder %s20, 0
    %p83 = por %p81, %p82
    %p84 = scmp.ne.s32.totalorder %s70, %s71
    %p85 = scmp.eq.s32.totalorder %s21, 1
    %p86 = por %p84, %p85
    %p88 = scmp.ne.s32.totalorder %s71, %s87
    %p89 = scmp.eq.s32.totalorder %s21, 0
    %p90 = por %p88, %p89
    %s92 = sadd.s32 %s91, 1
    %p95 = scmp.eq.s32.totalorder %s15, 1
    %p96 = scmp.ne.s32.totalorder %s91, %s93
    %p97 = scmp.eq.s32.totalorder %s15, 0
    %p98 = por %p96, %p97
    %p99 = scmp.ne.s32.totalorder %s91, %s93
    %p100 = scmp.eq.s32.totalorder %s20, 1
    %p101 = por %p99, %p100
    %p102 = scmp.ne.s32.totalorder %s93, %s94
    %p103 = scmp.eq.s32.totalorder %s20, 0
    %p104 = por %p102, %p103
    %p105 = scmp.ne.s32.totalorder %s93, %s94
    %p106 = scmp.eq.s32.totalorder %s21, 1
    %p107 = por %p105, %p106
    %p109 = scmp.ne.s32.totalorder %s94, %s108
    %p110 = scmp.eq.s32.totalorder %s21, 0
    %p111 = por %p109, %p110
    %s113 = sadd.s32 %s112, 1
    %p116 = scmp.eq.s32.totalorder %s15, 1
    %p117 = scmp.ne.s32.totalorder %s112, %s114
    %p118 = scmp.eq.s32.totalorder %s15, 0
    %p119 = por %p117, %p118
    %p120 = scmp.ne.s32.totalorder %s112, %s114
    %p121 = scmp.eq.s32.totalorder %s20, 1
    %p122 = por %p120, %p121
    %p123 = scmp.ne.s32.totalorder %s114, %s115
    %p124 = scmp.eq.s32.totalorder %s20, 0
    %p125 = por %p123, %p124
    %p126 = scmp.ne.s32.totalorder %s114, %s115
    %p127 = scmp.eq.s32.totalorder %s21, 1
    %p128 = por %p126, %p127
    %p130 = scmp.ne.s32.totalorder %s115, %s129
    %p131 = scmp.eq.s32.totalorder %s21, 0
    %p132 = por %p130, %p131
    %s134 = sadd.s32 %s133, 1
    %p137 = scmp.eq.s32.totalorder %s15, 1
    %p138 = scmp.ne.s32.totalorder %s133, %s135
    %p139 = scmp.eq.s32.totalorder %s15, 0
    %p140 = por %p138, %p139
    %p141 = scmp.ne.s32.totalorder %s133, %s135
    %p142 = scmp.eq.s32.totalorder %s20, 1
    %p143 = por %p141, %p142
    %p144 = scmp.ne.s32.totalorder %s135, %s136
    %p145 = scmp.eq.s32.totalorder %s20, 0
    %p146 = por %p144, %p145
    %p147 = scmp.ne.s32.totalorder %s135, %s136
    %p148 = scmp.eq.s32.totalorder %s21, 1
    %p149 = por %p147, %p148
    %p151 = scmp.ne.s32.totalorder %s136, %s150
    %p152 = scmp.eq.s32.totalorder %s21, 0
    %p153 = por %p151, %p152
    %s155 = sadd.s32 %s154, 1
    %p158 = scmp.eq.s32.totalorder %s15, 1
    %p159 = scmp.ne.s32.totalorder %s154, %s156
    %p160 = scmp.eq.s32.totalorder %s15, 0
    %p161 = por %p159, %p160
    %p162 = scmp.ne.s32.totalorder %s154, %s156
    %p163 = scmp.eq.s32.totalorder %s20, 1
    %p164 = por %p162, %p163
    %p165 = scmp.ne.s32.totalorder %s156, %s157
    %p166 = scmp.eq.s32.totalorder %s20, 0
    %p167 = por %p165, %p166
    %p168 = scmp.ne.s32.totalorder %s156, %s157
    %p169 = scmp.eq.s32.totalorder %s21, 1
    %p170 = por %p168, %p169
    %p172 = scmp.ne.s32.totalorder %s157, %s171
    %p173 = scmp.eq.s32.totalorder %s21, 0
    %p174 = por %p172, %p173
    %s175 = ssub.s32 %s22, %s34
    %s176 = ssub.s32 %s23, %s30
    %s177 = sor.u32 %s175, %s176
    %p178 = scmp.eq.s32.totalorder %s177, 0
    %s180 = sadd.s32 %s179, 1
    %s181 = scalar_select %p178, %s179, %s180
    %p184 = pneg %p178
    %p185 = scmp.eq.s32.totalorder %s15, 1
    %p186 = por %p184, %p185
    %p187 = scmp.ne.s32.totalorder %s179, %s182
    %p188 = scmp.eq.s32.totalorder %s15, 0
    %p189 = por %p187, %p188
    %p190 = scmp.ne.s32.totalorder %s179, %s182
    %p191 = scmp.eq.s32.totalorder %s20, 1
    %p192 = por %p190, %p191
    %p193 = scmp.ne.s32.totalorder %s182, %s183
    %p194 = scmp.eq.s32.totalorder %s20, 0
    %p195 = por %p193, %p194
    %p196 = scmp.ne.s32.totalorder %s182, %s183
    %p197 = scmp.eq.s32.totalorder %s21, 1
    %p198 = por %p196, %p197
    %p200 = scmp.ne.s32.totalorder %s183, %s199
    %p201 = scmp.eq.s32.totalorder %s21, 0
    %p202 = por %p200, %p201
    %s203 = ssub.s32 %s22, %s34
    %p204 = scmp.eq.s32.totalorder %s203, 0
    %s206 = sadd.s32 %s205, 1
    %s207 = scalar_select %p204, %s205, %s206
    %p210 = pneg %p204
    %p211 = scmp.eq.s32.totalorder %s15, 1
    %p212 = por %p210, %p211
    %p213 = scmp.ne.s32.totalorder %s205, %s208
    %p214 = scmp.eq.s32.totalorder %s15, 0
    %p215 = por %p213, %p214
    %p216 = scmp.ne.s32.totalorder %s205, %s208
    %p217 = scmp.eq.s32.totalorder %s20, 1
    %p218 = por %p216, %p217
    %p219 = scmp.ne.s32.totalorder %s208, %s209
    %p220 = scmp.eq.s32.totalorder %s20, 0
    %p221 = por %p219, %p220
    %p222 = scmp.ne.s32.totalorder %s208, %s209
    %p223 = scmp.eq.s32.totalorder %s21, 1
    %p224 = por %p222, %p223
    %p226 = scmp.ne.s32.totalorder %s209, %s225
    %p227 = scmp.eq.s32.totalorder %s21, 0
    %p228 = por %p226, %p227
    %s229 = ssub.s32 %s22, %s34
    %p230 = scmp.eq.s32.totalorder %s229, 0
    %s232 = sadd.s32 %s231, 1
    %s233 = scalar_select %p230, %s231, %s232
    %p236 = pneg %p230
    %p237 = scmp.eq.s32.totalorder %s15, 1
    %p238 = por %p236, %p237
    %p239 = scmp.ne.s32.totalorder %s231, %s234
    %p240 = scmp.eq.s32.totalorder %s15, 0
    %p241 = por %p239, %p240
    %p242 = scmp.ne.s32.totalorder %s231, %s234
    %p243 = scmp.eq.s32.totalorder %s20, 1
    %p244 = por %p242, %p243
    %p245 = scmp.ne.s32.totalorder %s234, %s235
    %p246 = scmp.eq.s32.totalorder %s20, 0
    %p247 = por %p245, %p246
    %p248 = scmp.ne.s32.totalorder %s234, %s235
    %p249 = scmp.eq.s32.totalorder %s21, 1
    %p250 = por %p248, %p249
    %p252 = scmp.ne.s32.totalorder %s235, %s251
    %p253 = scmp.eq.s32.totalorder %s21, 0
    %p254 = por %p252, %p253
    %p255 = scmp.le.s32.totalorder 1, %s15
    %p256 = scmp.lt.s32.totalorder %s15, 3
    %p257 = pnand %p255, %p256
    %p258 = pneg %p257
    // Predicated region
    $region9: #{attention_block.4} parent=5 // pred_check
      _
    $region10: #{attention_block.4} parent=5 // pred_check_branch
      %260 = sbr.rel (%p257) target = $region12
    $region11: #{attention_block.4} parent=5 // pred_region
      %s261 = ssub.s32 %s15, 1
      // Predicated region
      $region13: #{attention_block.4} parent=11 // pred_check
        %p262 = pneg %p104
      $region14: #{attention_block.4} parent=11 // pred_check_branch
        %264 = sbr.rel (%p262) target = $region16
      $region15: #{attention_block.4} parent=11 // pred_region
        _
      $region16: #{attention_block.4} parent=11 // pred_fallthru
        _
      // Predicated region
      $region17: #{attention_block.4} parent=11 // pred_check
        %p265 = pneg %p125
      $region18: #{attention_block.4} parent=11 // pred_check_branch
        %267 = sbr.rel (%p265) target = $region20
      $region19: #{attention_block.4} parent=11 // pred_region
        _
      $region20: #{attention_block.4} parent=11 // pred_fallthru
        _
      // Predicated region
      $region21: #{attention_block.4} parent=11 // pred_check
        %p268 = pneg %p146
      $region22: #{attention_block.4} parent=11 // pred_check_branch
        %270 = sbr.rel (%p268) target = $region24
      $region23: #{attention_block.4} parent=11 // pred_region
        _
      $region24: #{attention_block.4} parent=11 // pred_fallthru
        _
      // Predicated region
      $region25: #{attention_block.4} parent=11 // pred_check
        %p271 = pneg %p167
      $region26: #{attention_block.4} parent=11 // pred_check_branch
        %273 = sbr.rel (%p271) target = $region28
      $region27: #{attention_block.4} parent=11 // pred_region
        _
      $region28: #{attention_block.4} parent=11 // pred_fallthru
        _
    $region12: #{attention_block.4} parent=5 // pred_fallthru
      _
    %p274 = scmp.lt.s32.totalorder %s15, 2
    // Predicated region
    $region29: #{attention_block.4} parent=5 // pred_check
      %p275 = pneg %p274
    $region30: #{attention_block.4} parent=5 // pred_check_branch
      %277 = sbr.rel (%p275) target = $region32
    $region31: #{attention_block.4} parent=5 // pred_region
      // Predicated region
      $region33: #{attention_block.4} parent=31 // pred_check
        %p278 = pneg %p49
      $region34: #{attention_block.4} parent=31 // pred_check_branch
        %280 = sbr.rel (%p278) target = $region36
      $region35: #{attention_block.4} parent=31 // pred_region
        %s281 = smul.u32 32, %s23
        %p282 = scmp.lt.s32.totalorder %s22, 1
        %s283 = scalar_select %p282, %s22, 1
        %p284 = scmp.lt.s32.totalorder %s281, 31
        %s285 = scalar_select %p284, %s281, 31
        %s286 = smul.addr %s283, 32
        %s287 = sadd.s32 %s285, %s286
        %s288 = smul.addr %s287, 2
        %s289 = scalar_lea.vmem %s0, %s288
        %s290 = smul.u32 32, %s23
      $region36: #{attention_block.4} parent=31 // pred_fallthru
        _
      // Predicated region
      $region37: #{attention_block.4} parent=31 // pred_check
        %p291 = pneg %p77
      $region38: #{attention_block.4} parent=31 // pred_check_branch
        %293 = sbr.rel (%p291) target = $region40
      $region39: #{attention_block.4} parent=31 // pred_region
        %s294 = smul.u32 32, %s23
        %p295 = scmp.lt.s32.totalorder %s22, 1
        %s296 = scalar_select %p295, %s22, 1
        %p297 = scmp.lt.s32.totalorder %s294, 31
        %s298 = scalar_select %p297, %s294, 31
        %s299 = smul.addr %s296, 32
        %s300 = sadd.s32 %s298, %s299
        %s301 = smul.addr %s300, 2
        %s302 = scalar_lea.vmem %s1, %s301
        %s303 = smul.u32 32, %s23
      $region40: #{attention_block.4} parent=31 // pred_fallthru
        _
    $region32: #{attention_block.4} parent=5 // pred_fallthru
      _
    %p304 = scmp.le.s32.totalorder 1, %s15
    %p305 = scmp.lt.s32.totalorder %s15, 3
    %p306 = pnand %p304, %p305
    %p307 = pneg %p306
    // Predicated region
    $region41: #{attention_block.4} parent=5 // pred_check
      _
    $region42: #{attention_block.4} parent=5 // pred_check_branch
      %309 = sbr.rel (%p306) target = $region44
    $region43: #{attention_block.4} parent=5 // pred_region
      %s310 = ssub.s32 %s15, 1
      %s311 = smul.u32 32, %s25
      %p312 = scmp.lt.s32.totalorder %s24, 1
      %s313 = scalar_select %p312, %s24, 1
      %p314 = scmp.lt.s32.totalorder %s311, 31
      %s315 = scalar_select %p314, %s311, 31
      %s316 = smul.addr %s313, 32
      %s317 = sadd.s32 %s315, %s316
      %s318 = smul.addr %s317, 2
      %s319 = scalar_lea.vmem %s0, %s318
      %p320 = pneg %p55
      %p321 = pneg %p52
      %s322 = smul.u32 32, %s25
      %p323 = scmp.lt.s32.totalorder %s24, 1
      %s324 = scalar_select %p323, %s24, 1
      %p325 = scmp.lt.s32.totalorder %s322, 31
      %s326 = scalar_select %p325, %s322, 31
      %s327 = smul.addr %s324, 32
      %s328 = sadd.s32 %s326, %s327
      %s329 = smul.addr %s328, 2
      %s330 = scalar_lea.vmem %s1, %s329
      %p331 = pneg %p83
      %p332 = pneg %p80
      %p333 = pneg %p104
      %p334 = pneg %p101
      %p335 = pneg %p125
      %p336 = pneg %p122
      %p337 = pneg %p146
      %p338 = pneg %p143
      %p339 = pneg %p167
      %p340 = pneg %p164
      %p341 = pneg %p195
      %p342 = pneg %p192
      %s343 = smul.u32 32, %s25
      %p344 = scmp.lt.s32.totalorder %s24, 1
      %s345 = scalar_select %p344, %s24, 1
      %p346 = scmp.lt.s32.totalorder %s343, 31
      %s347 = scalar_select %p346, %s343, 31
      %s348 = smul.addr %s345, 32
      %s349 = sadd.s32 %s347, %s348
      %s350 = scalar_lea.vmem %s6, %s349
      %p351 = pneg %p221
      %p352 = pneg %p218
      %p353 = scmp.lt.s32.totalorder %s24, 1
      %s354 = scalar_select %p353, %s24, 1
      %s355 = scalar_lea.vmem %s7, %s354
      %p356 = pneg %p247
      %p357 = pneg %p244
      %p358 = scmp.lt.s32.totalorder %s24, 1
      %s359 = scalar_select %p358, %s24, 1
      %s360 = scalar_lea.vmem %s8, %s359
      %s361 = smul.u32 32, %s25
      %p362 = scmp.lt.s32.totalorder %s24, 1
      %s363 = scalar_select %p362, %s24, 1
      %p364 = scmp.lt.s32.totalorder %s361, 31
      %s365 = scalar_select %p364, %s361, 31
      %s366 = smul.addr %s363, 32
      %s367 = sadd.s32 %s365, %s366
      %s368 = smul.addr %s367, 2
      %s369 = scalar_lea.vmem %s0, %s368
      %s370 = smul.u32 32, %s25
      %s371 = smul.u32 32, %s25
      %p372 = scmp.lt.s32.totalorder %s24, 1
      %s373 = scalar_select %p372, %s24, 1
      %p374 = scmp.lt.s32.totalorder %s371, 31
      %s375 = scalar_select %p374, %s371, 31
      %s376 = smul.addr %s373, 32
      %s377 = sadd.s32 %s375, %s376
      %s378 = smul.addr %s377, 2
      %s379 = scalar_lea.vmem %s1, %s378
      %s380 = smul.u32 32, %s25
      %s381 = smul.u32 32, %s25
      %p382 = scmp.lt.s32.totalorder %s24, 1
      %s383 = scalar_select %p382, %s24, 1
      %p384 = scmp.lt.s32.totalorder %s381, 31
      %s385 = scalar_select %p384, %s381, 31
      %s386 = smul.addr %s383, 32
      %s387 = sadd.s32 %s385, %s386
      %s388 = scalar_lea.vmem %s6, %s387
      %s389 = smul.u32 32, %s25
      %p390 = scmp.lt.s32.totalorder %s24, 1
      %s391 = scalar_select %p390, %s24, 1
      %s392 = scalar_lea.vmem %s7, %s391
      %p393 = scmp.lt.s32.totalorder %s24, 1
      %s394 = scalar_select %p393, %s24, 1
      %s395 = scalar_lea.vmem %s8, %s394
      %p396 = scmp.eq.s32.totalorder %s25, 0
      // Predicated region
      $region45: #{attention_block.4} parent=43 // pred_check
        %p397 = pneg %p396
      $region46: #{attention_block.4} parent=43 // pred_check_branch
        %399 = sbr.rel (%p397) target = $region48
      $region47: #{attention_block.4} parent=43 // pred_region
        %400 = vst [vmem:[#allocation2] sm:$0xff] 0.0
        %401 = vst [vmem:[#allocation2 + $0x8] sm:$0xff] 0.0
        %402 = vst [vmem:[#allocation2 + $0x10] sm:$0xff] 0.0
        %403 = vst [vmem:[#allocation2 + $0x18] sm:$0xff] 0.0
        %404 = vst [vmem:[#allocation3] sm:$0xff] 0.0
        %405 = vst [vmem:[#allocation3 + $0x8] sm:$0xff] 0.0
        %406 = vst [vmem:[#allocation3 + $0x10] sm:$0xff] 0.0
        %407 = vst [vmem:[#allocation3 + $0x18] sm:$0xff] 0.0
      $region48: #{attention_block.4} parent=43 // pred_fallthru
        _
      %v408 = vld [vmem:[%s369] sm:$0xff]
      %v409 = vld [vmem:[%s369 + $0x8] sm:$0xff]
      %v410 = vld [vmem:[%s369 + $0x10] sm:$0xff]
      %v411 = vld [vmem:[%s369 + $0x18] sm:$0xff]
      %v412 = vld [vmem:[%s369 + $0x20] sm:$0xff]
      %v413 = vld [vmem:[%s369 + $0x28] sm:$0xff]
      %v414 = vld [vmem:[%s369 + $0x30] sm:$0xff]
      %v415 = vld [vmem:[%s369 + $0x38] sm:$0xff]
      %v416 = vunpack.c.l.bf16 %v408
      %v417 = vunpack.c.h.bf16 %v408
      %v418 = vunpack.c.l.bf16 %v409
      %v419 = vunpack.c.h.bf16 %v409
      %v420 = vunpack.c.l.bf16 %v410
      %v421 = vunpack.c.h.bf16 %v410
      %v422 = vunpack.c.l.bf16 %v411
      %v423 = vunpack.c.h.bf16 %v411
      %v424 = vunpack.c.l.bf16 %v412
      %v425 = vunpack.c.h.bf16 %v412
      %v426 = vunpack.c.l.bf16 %v413
      %v427 = vunpack.c.h.bf16 %v413
      %v428 = vunpack.c.l.bf16 %v414
      %v429 = vunpack.c.h.bf16 %v414
      %v430 = vunpack.c.l.bf16 %v415
      %v431 = vunpack.c.h.bf16 %v415
      %v432 = vld [vmem:[%s2] sm:$0xf]
      %434 = vset.pattern.permute.xlu0 0
      %435 = vperm.xlu0 %434, %v432
      %v436 = vpop.permute.xlu0 %435
      %v438 = vunpack.c.l.s4 839922192
      %v439 = vunpack.c.0.s8 %v438
      %v440 = vperm.slane %v436, %v439
      %v442 = vmul.f32 %v416, %v440
      %v443 = vmul.f32 %v417, %v440
      %v444 = vmul.f32 %v418, %v440
      %v445 = vmul.f32 %v419, %v440
      %v446 = vmul.f32 %v420, %v440
      %v447 = vmul.f32 %v421, %v440
      %v448 = vmul.f32 %v422, %v440
      %v449 = vmul.f32 %v423, %v440
      %v450 = vmul.f32 %v424, %v440
      %v451 = vmul.f32 %v425, %v440
      %v452 = vmul.f32 %v426, %v440
      %v453 = vmul.f32 %v427, %v440
      %v454 = vmul.f32 %v428, %v440
      %v455 = vmul.f32 %v429, %v440
      %v456 = vmul.f32 %v430, %v440
      %v457 = vmul.f32 %v431, %v440
      %v458 = vld [vmem:[%s379] sm:$0xff]
      %v459 = vld [vmem:[%s379 + $0x8] sm:$0xff]
      %v460 = vld [vmem:[%s379 + $0x10] sm:$0xff]
      %v461 = vld [vmem:[%s379 + $0x18] sm:$0xff]
      %v462 = vld [vmem:[%s379 + $0x20] sm:$0xff]
      %v463 = vld [vmem:[%s379 + $0x28] sm:$0xff]
      %v464 = vld [vmem:[%s379 + $0x30] sm:$0xff]
      %v465 = vld [vmem:[%s379 + $0x38] sm:$0xff]
      %v466 = vunpack.c.l.bf16 %v458
      %v467 = vunpack.c.h.bf16 %v458
      %v468 = vunpack.c.l.bf16 %v459
      %v469 = vunpack.c.h.bf16 %v459
      %v470 = vunpack.c.l.bf16 %v460
      %v471 = vunpack.c.h.bf16 %v460
      %v472 = vunpack.c.l.bf16 %v461
      %v473 = vunpack.c.h.bf16 %v461
      %v474 = vunpack.c.l.bf16 %v462
      %v475 = vunpack.c.h.bf16 %v462
      %v476 = vunpack.c.l.bf16 %v463
      %v477 = vunpack.c.h.bf16 %v463
      %v478 = vunpack.c.l.bf16 %v464
      %v479 = vunpack.c.h.bf16 %v464
      %v480 = vunpack.c.l.bf16 %v465
      %v481 = vunpack.c.h.bf16 %v465
      %v482 = vld [vmem:[%s3] sm:$0xf]
      %484 = vset.pattern.permute.xlu0 0
      %485 = vperm.xlu0 %484, %v482
      %v486 = vpop.permute.xlu0 %485
      %v488 = vunpack.c.l.s4 839922192
      %v489 = vunpack.c.0.s8 %v488
      %v490 = vperm.slane %v486, %v489
      %v492 = vmul.f32 %v466, %v490
      %v493 = vmul.f32 %v467, %v490
      %v494 = vmul.f32 %v468, %v490
      %v495 = vmul.f32 %v469, %v490
      %v496 = vmul.f32 %v470, %v490
      %v497 = vmul.f32 %v471, %v490
      %v498 = vmul.f32 %v472, %v490
      %v499 = vmul.f32 %v473, %v490
      %v500 = vmul.f32 %v474, %v490
      %v501 = vmul.f32 %v475, %v490
      %v502 = vmul.f32 %v476, %v490
      %v503 = vmul.f32 %v477, %v490
      %v504 = vmul.f32 %v478, %v490
      %v505 = vmul.f32 %v479, %v490
      %v506 = vmul.f32 %v480, %v490
      %v507 = vmul.f32 %v481, %v490
      %v508 = vadd.f32 %v442, %v492
      %v509 = vadd.f32 %v443, %v493
      %v510 = vadd.f32 %v444, %v494
      %v511 = vadd.f32 %v445, %v495
      %v512 = vadd.f32 %v446, %v496
      %v513 = vadd.f32 %v447, %v497
      %v514 = vadd.f32 %v448, %v498
      %v515 = vadd.f32 %v449, %v499
      %v516 = vadd.f32 %v450, %v500
      %v517 = vadd.f32 %v451, %v501
      %v518 = vadd.f32 %v452, %v502
      %v519 = vadd.f32 %v453, %v503
      %v520 = vadd.f32 %v454, %v504
      %v521 = vadd.f32 %v455, %v505
      %v522 = vadd.f32 %v456, %v506
      %v523 = vadd.f32 %v457, %v507
      %v524 = vld [vmem:[%s4] sm:$0xf]
      %526 = vset.pattern.permute.xlu0 0
      %527 = vperm.xlu0 %526, %v524
      %v528 = vpop.permute.xlu0 %527
      %v530 = vunpack.c.l.s4 839922192
      %v531 = vunpack.c.0.s8 %v530
      %v532 = vperm.slane %v528, %v531
      %v534 = vadd.f32 %v508, %v532
      %v535 = vadd.f32 %v509, %v532
      %v536 = vadd.f32 %v510, %v532
      %v537 = vadd.f32 %v511, %v532
      %v538 = vadd.f32 %v512, %v532
      %v539 = vadd.f32 %v513, %v532
      %v540 = vadd.f32 %v514, %v532
      %v541 = vadd.f32 %v515, %v532
      %v542 = vadd.f32 %v516, %v532
      %v543 = vadd.f32 %v517, %v532
      %v544 = vadd.f32 %v518, %v532
      %v545 = vadd.f32 %v519, %v532
      %v546 = vadd.f32 %v520, %v532
      %v547 = vadd.f32 %v521, %v532
      %v548 = vadd.f32 %v522, %v532
      %v549 = vadd.f32 %v523, %v532
      %v550 = vmax.f32 %v534, 0.0
      %v551 = vmax.f32 %v535, 0.0
      %v552 = vmax.f32 %v536, 0.0
      %v553 = vmax.f32 %v537, 0.0
      %v554 = vmax.f32 %v538, 0.0
      %v555 = vmax.f32 %v539, 0.0
      %v556 = vmax.f32 %v540, 0.0
      %v557 = vmax.f32 %v541, 0.0
      %v558 = vmax.f32 %v542, 0.0
      %v559 = vmax.f32 %v543, 0.0
      %v560 = vmax.f32 %v544, 0.0
      %v561 = vmax.f32 %v545, 0.0
      %v562 = vmax.f32 %v546, 0.0
      %v563 = vmax.f32 %v547, 0.0
      %v564 = vmax.f32 %v548, 0.0
      %v565 = vmax.f32 %v549, 0.0
      %v566 = vld [vmem:[%s5] sm:$0xf]
      %568 = vset.pattern.permute.xlu0 0
      %569 = vperm.xlu0 %568, %v566
      %v570 = vpop.permute.xlu0 %569
      %v572 = vunpack.c.l.s4 839922192
      %v573 = vunpack.c.0.s8 %v572
      %v574 = vperm.slane %v570, %v573
      %v576 = vmul.f32 %v550, %v574
      %v577 = vmul.f32 %v551, %v574
      %v578 = vmul.f32 %v552, %v574
      %v579 = vmul.f32 %v553, %v574
      %v580 = vmul.f32 %v554, %v574
      %v581 = vmul.f32 %v555, %v574
      %v582 = vmul.f32 %v556, %v574
      %v583 = vmul.f32 %v557, %v574
      %v584 = vmul.f32 %v558, %v574
      %v585 = vmul.f32 %v559, %v574
      %v586 = vmul.f32 %v560, %v574
      %v587 = vmul.f32 %v561, %v574
      %v588 = vmul.f32 %v562, %v574
      %v589 = vmul.f32 %v563, %v574
      %v590 = vmul.f32 %v564, %v574
      %v591 = vmul.f32 %v565, %v574
      %608 = vst [vmem:[#allocation1] ss:$2 sm:$0xff] %v576
      %s609 = scalar_lea.vmem [#allocation1], 16
      %610 = vst [vmem:[%s609] ss:$2 sm:$0xff] %v577
      %s611 = scalar_lea.vmem [#allocation1], 32
      %612 = vst [vmem:[%s611] ss:$2 sm:$0xff] %v578
      %s613 = scalar_lea.vmem [#allocation1], 48
      %614 = vst [vmem:[%s613] ss:$2 sm:$0xff] %v579
      %v615 = vld.sshfl [vmem:[#allocation1] sm:$0xff pattern:$0x75316420]
      %v616 = vld.sshfl [vmem:[#allocation1 + $0x8] sm:$0xff pattern:$0x75316420]
      %v617 = vld.sshfl [vmem:[#allocation1 + $0x10] sm:$0xff pattern:$0x75316420]
      %v618 = vld.sshfl [vmem:[#allocation1 + $0x18] sm:$0xff pattern:$0x75316420]
      %v619 = vld.sshfl [vmem:[#allocation1 + $0x20] sm:$0xff pattern:$0x75316420]
      %v620 = vld.sshfl [vmem:[#allocation1 + $0x28] sm:$0xff pattern:$0x75316420]
      %v621 = vld.sshfl [vmem:[#allocation1 + $0x30] sm:$0xff pattern:$0x75316420]
      %v622 = vld.sshfl [vmem:[#allocation1 + $0x38] sm:$0xff pattern:$0x75316420]
      %623 = vst [vmem:[#allocation1] ss:$2 sm:$0xff] %v580
      %624 = vst [vmem:[%s609] ss:$2 sm:$0xff] %v581
      %625 = vst [vmem:[%s611] ss:$2 sm:$0xff] %v582
      %626 = vst [vmem:[%s613] ss:$2 sm:$0xff] %v583
      %v627 = vld.sshfl [vmem:[#allocation1] sm:$0xff pattern:$0x75316420]
      %v628 = vld.sshfl [vmem:[#allocation1 + $0x8] sm:$0xff pattern:$0x75316420]
      %v629 = vld.sshfl [vmem:[#allocation1 + $0x10] sm:$0xff pattern:$0x75316420]
      %v630 = vld.sshfl [vmem:[#allocation1 + $0x18] sm:$0xff pattern:$0x75316420]
      %v631 = vld.sshfl [vmem:[#allocation1 + $0x20] sm:$0xff pattern:$0x75316420]
      %v632 = vld.sshfl [vmem:[#allocation1 + $0x28] sm:$0xff pattern:$0x75316420]
      %v633 = vld.sshfl [vmem:[#allocation1 + $0x30] sm:$0xff pattern:$0x75316420]
      %v634 = vld.sshfl [vmem:[#allocation1 + $0x38] sm:$0xff pattern:$0x75316420]
      %635 = vst [vmem:[#allocation1] ss:$2 sm:$0xff] %v584
      %636 = vst [vmem:[%s609] ss:$2 sm:$0xff] %v585
      %637 = vst [vmem:[%s611] ss:$2 sm:$0xff] %v586
      %638 = vst [vmem:[%s613] ss:$2 sm:$0xff] %v587
      %v639 = vld.sshfl [vmem:[#allocation1] sm:$0xff pattern:$0x75316420]
      %v640 = vld.sshfl [vmem:[#allocation1 + $0x8] sm:$0xff pattern:$0x75316420]
      %v641 = vld.sshfl [vmem:[#allocation1 + $0x10] sm:$0xff pattern:$0x75316420]
      %v642 = vld.sshfl [vmem:[#allocation1 + $0x18] sm:$0xff pattern:$0x75316420]
      %v643 = vld.sshfl [vmem:[#allocation1 + $0x20] sm:$0xff pattern:$0x75316420]
      %v644 = vld.sshfl [vmem:[#allocation1 + $0x28] sm:$0xff pattern:$0x75316420]
      %v645 = vld.sshfl [vmem:[#allocation1 + $0x30] sm:$0xff pattern:$0x75316420]
      %v646 = vld.sshfl [vmem:[#allocation1 + $0x38] sm:$0xff pattern:$0x75316420]
      %647 = vst [vmem:[#allocation1] ss:$2 sm:$0xff] %v588
      %648 = vst [vmem:[%s609] ss:$2 sm:$0xff] %v589
      %649 = vst [vmem:[%s611] ss:$2 sm:$0xff] %v590
      %650 = vst [vmem:[%s613] ss:$2 sm:$0xff] %v591
      %v651 = vld.sshfl [vmem:[#allocation1] sm:$0xff pattern:$0x75316420]
      %v652 = vld.sshfl [vmem:[#allocation1 + $0x8] sm:$0xff pattern:$0x75316420]
      %v653 = vld.sshfl [vmem:[#allocation1 + $0x10] sm:$0xff pattern:$0x75316420]
      %v654 = vld.sshfl [vmem:[#allocation1 + $0x18] sm:$0xff pattern:$0x75316420]
      %v655 = vld.sshfl [vmem:[#allocation1 + $0x20] sm:$0xff pattern:$0x75316420]
      %v656 = vld.sshfl [vmem:[#allocation1 + $0x28] sm:$0xff pattern:$0x75316420]
      %v657 = vld.sshfl [vmem:[#allocation1 + $0x30] sm:$0xff pattern:$0x75316420]
      %v658 = vld.sshfl [vmem:[#allocation1 + $0x38] sm:$0xff pattern:$0x75316420]
      %vm691 = vcmask 1043456
      %v692 = vsel %vm691, %v615, 0.0
      %v693 = vrot.slane %v692, 4
      %v694 = vadd.f32 %v692, %v693
      %v695 = vrot.slane %v694, 2
      %v696 = vadd.f32 %v694, %v695
      %v697 = vrot.slane %v696, 1
      %v698 = vadd.f32 %v696, %v697
      %v699 = vsel %vm691, %v616, 0.0
      %v700 = vrot.slane %v699, 4
      %v701 = vadd.f32 %v699, %v700
      %v702 = vrot.slane %v701, 2
      %v703 = vadd.f32 %v701, %v702
      %v704 = vrot.slane %v703, 1
      %v705 = vadd.f32 %v703, %v704
      %v706 = vsel %vm691, %v617, 0.0
      %v707 = vrot.slane %v706, 4
      %v708 = vadd.f32 %v706, %v707
      %v709 = vrot.slane %v708, 2
      %v710 = vadd.f32 %v708, %v709
      %v711 = vrot.slane %v710, 1
      %v712 = vadd.f32 %v710, %v711
      %v713 = vsel %vm691, %v618, 0.0
      %v714 = vrot.slane %v713, 4
      %v715 = vadd.f32 %v713, %v714
      %v716 = vrot.slane %v715, 2
      %v717 = vadd.f32 %v715, %v716
      %v718 = vrot.slane %v717, 1
      %v719 = vadd.f32 %v717, %v718
      %v720 = vsel %vm691, %v619, 0.0
      %v721 = vrot.slane %v720, 4
      %v722 = vadd.f32 %v720, %v721
      %v723 = vrot.slane %v722, 2
      %v724 = vadd.f32 %v722, %v723
      %v725 = vrot.slane %v724, 1
      %v726 = vadd.f32 %v724, %v725
      %v727 = vsel %vm691, %v620, 0.0
      %v728 = vrot.slane %v727, 4
      %v729 = vadd.f32 %v727, %v728
      %v730 = vrot.slane %v729, 2
      %v731 = vadd.f32 %v729, %v730
      %v732 = vrot.slane %v731, 1
      %v733 = vadd.f32 %v731, %v732
      %v734 = vsel %vm691, %v621, 0.0
      %v735 = vrot.slane %v734, 4
      %v736 = vadd.f32 %v734, %v735
      %v737 = vrot.slane %v736, 2
      %v738 = vadd.f32 %v736, %v737
      %v739 = vrot.slane %v738, 1
      %v740 = vadd.f32 %v738, %v739
      %v741 = vsel %vm691, %v622, 0.0
      %v742 = vrot.slane %v741, 4
      %v743 = vadd.f32 %v741, %v742
      %v744 = vrot.slane %v743, 2
      %v745 = vadd.f32 %v743, %v744
      %v746 = vrot.slane %v745, 1
      %v747 = vadd.f32 %v745, %v746
      %v748 = vsel %vm691, %v627, 0.0
      %v749 = vrot.slane %v748, 4
      %v750 = vadd.f32 %v748, %v749
      %v751 = vrot.slane %v750, 2
      %v752 = vadd.f32 %v750, %v751
      %v753 = vrot.slane %v752, 1
      %v754 = vadd.f32 %v752, %v753
      %v755 = vsel %vm691, %v628, 0.0
      %v756 = vrot.slane %v755, 4
      %v757 = vadd.f32 %v755, %v756
      %v758 = vrot.slane %v757, 2
      %v759 = vadd.f32 %v757, %v758
      %v760 = vrot.slane %v759, 1
      %v761 = vadd.f32 %v759, %v760
      %v762 = vsel %vm691, %v629, 0.0
      %v763 = vrot.slane %v762, 4
      %v764 = vadd.f32 %v762, %v763
      %v765 = vrot.slane %v764, 2
      %v766 = vadd.f32 %v764, %v765
      %v767 = vrot.slane %v766, 1
      %v768 = vadd.f32 %v766, %v767
      %v769 = vsel %vm691, %v630, 0.0
      %v770 = vrot.slane %v769, 4
      %v771 = vadd.f32 %v769, %v770
      %v772 = vrot.slane %v771, 2
      %v773 = vadd.f32 %v771, %v772
      %v774 = vrot.slane %v773, 1
      %v775 = vadd.f32 %v773, %v774
      %v776 = vsel %vm691, %v631, 0.0
      %v777 = vrot.slane %v776, 4
      %v778 = vadd.f32 %v776, %v777
      %v779 = vrot.slane %v778, 2
      %v780 = vadd.f32 %v778, %v779
      %v781 = vrot.slane %v780, 1
      %v782 = vadd.f32 %v780, %v781
      %v783 = vsel %vm691, %v632, 0.0
      %v784 = vrot.slane %v783, 4
      %v785 = vadd.f32 %v783, %v784
      %v786 = vrot.slane %v785, 2
      %v787 = vadd.f32 %v785, %v786
      %v788 = vrot.slane %v787, 1
      %v789 = vadd.f32 %v787, %v788
      %v790 = vsel %vm691, %v633, 0.0
      %v791 = vrot.slane %v790, 4
      %v792 = vadd.f32 %v790, %v791
      %v793 = vrot.slane %v792, 2
      %v794 = vadd.f32 %v792, %v793
      %v795 = vrot.slane %v794, 1
      %v796 = vadd.f32 %v794, %v795
      %v797 = vsel %vm691, %v634, 0.0
      %v798 = vrot.slane %v797, 4
      %v799 = vadd.f32 %v797, %v798
      %v800 = vrot.slane %v799, 2
      %v801 = vadd.f32 %v799, %v800
      %v802 = vrot.slane %v801, 1
      %v803 = vadd.f32 %v801, %v802
      %v804 = vsel %vm691, %v639, 0.0
      %v805 = vrot.slane %v804, 4
      %v806 = vadd.f32 %v804, %v805
      %v807 = vrot.slane %v806, 2
      %v808 = vadd.f32 %v806, %v807
      %v809 = vrot.slane %v808, 1
      %v810 = vadd.f32 %v808, %v809
      %v811 = vsel %vm691, %v640, 0.0
      %v812 = vrot.slane %v811, 4
      %v813 = vadd.f32 %v811, %v812
      %v814 = vrot.slane %v813, 2
      %v815 = vadd.f32 %v813, %v814
      %v816 = vrot.slane %v815, 1
      %v817 = vadd.f32 %v815, %v816
      %v818 = vsel %vm691, %v641, 0.0
      %v819 = vrot.slane %v818, 4
      %v820 = vadd.f32 %v818, %v819
      %v821 = vrot.slane %v820, 2
      %v822 = vadd.f32 %v820, %v821
      %v823 = vrot.slane %v822, 1
      %v824 = vadd.f32 %v822, %v823
      %v825 = vsel %vm691, %v642, 0.0
      %v826 = vrot.slane %v825, 4
      %v827 = vadd.f32 %v825, %v826
      %v828 = vrot.slane %v827, 2
      %v829 = vadd.f32 %v827, %v828
      %v830 = vrot.slane %v829, 1
      %v831 = vadd.f32 %v829, %v830
      %v832 = vsel %vm691, %v643, 0.0
      %v833 = vrot.slane %v832, 4
      %v834 = vadd.f32 %v832, %v833
      %v835 = vrot.slane %v834, 2
      %v836 = vadd.f32 %v834, %v835
      %v837 = vrot.slane %v836, 1
      %v838 = vadd.f32 %v836, %v837
      %v839 = vsel %vm691, %v644, 0.0
      %v840 = vrot.slane %v839, 4
      %v841 = vadd.f32 %v839, %v840
      %v842 = vrot.slane %v841, 2
      %v843 = vadd.f32 %v841, %v842
      %v844 = vrot.slane %v843, 1
      %v845 = vadd.f32 %v843, %v844
      %v846 = vsel %vm691, %v645, 0.0
      %v847 = vrot.slane %v846, 4
      %v848 = vadd.f32 %v846, %v847
      %v849 = vrot.slane %v848, 2
      %v850 = vadd.f32 %v848, %v849
      %v851 = vrot.slane %v850, 1
      %v852 = vadd.f32 %v850, %v851
      %v853 = vsel %vm691, %v646, 0.0
      %v854 = vrot.slane %v853, 4
      %v855 = vadd.f32 %v853, %v854
      %v856 = vrot.slane %v855, 2
      %v857 = vadd.f32 %v855, %v856
      %v858 = vrot.slane %v857, 1
      %v859 = vadd.f32 %v857, %v858
      %v860 = vsel %vm691, %v651, 0.0
      %v861 = vrot.slane %v860, 4
      %v862 = vadd.f32 %v860, %v861
      %v863 = vrot.slane %v862, 2
      %v864 = vadd.f32 %v862, %v863
      %v865 = vrot.slane %v864, 1
      %v866 = vadd.f32 %v864, %v865
      %v867 = vsel %vm691, %v652, 0.0
      %v868 = vrot.slane %v867, 4
      %v869 = vadd.f32 %v867, %v868
      %v870 = vrot.slane %v869, 2
      %v871 = vadd.f32 %v869, %v870
      %v872 = vrot.slane %v871, 1
      %v873 = vadd.f32 %v871, %v872
      %v874 = vsel %vm691, %v653, 0.0
      %v875 = vrot.slane %v874, 4
      %v876 = vadd.f32 %v874, %v875
      %v877 = vrot.slane %v876, 2
      %v878 = vadd.f32 %v876, %v877
      %v879 = vrot.slane %v878, 1
      %v880 = vadd.f32 %v878, %v879
      %v881 = vsel %vm691, %v654, 0.0
      %v882 = vrot.slane %v881, 4
      %v883 = vadd.f32 %v881, %v882
      %v884 = vrot.slane %v883, 2
      %v885 = vadd.f32 %v883, %v884
      %v886 = vrot.slane %v885, 1
      %v887 = vadd.f32 %v885, %v886
      %v888 = vsel %vm691, %v655, 0.0
      %v889 = vrot.slane %v888, 4
      %v890 = vadd.f32 %v888, %v889
      %v891 = vrot.slane %v890, 2
      %v892 = vadd.f32 %v890, %v891
      %v893 = vrot.slane %v892, 1
      %v894 = vadd.f32 %v892, %v893
      %v895 = vsel %vm691, %v656, 0.0
      %v896 = vrot.slane %v895, 4
      %v897 = vadd.f32 %v895, %v896
      %v898 = vrot.slane %v897, 2
      %v899 = vadd.f32 %v897, %v898
      %v900 = vrot.slane %v899, 1
      %v901 = vadd.f32 %v899, %v900
      %v902 = vsel %vm691, %v657, 0.0
      %v903 = vrot.slane %v902, 4
      %v904 = vadd.f32 %v902, %v903
      %v905 = vrot.slane %v904, 2
      %v906 = vadd.f32 %v904, %v905
      %v907 = vrot.slane %v906, 1
      %v908 = vadd.f32 %v906, %v907
      %v909 = vsel %vm691, %v658, 0.0
      %v910 = vrot.slane %v909, 4
      %v911 = vadd.f32 %v909, %v910
      %v912 = vrot.slane %v911, 2
      %v913 = vadd.f32 %v911, %v912
      %v914 = vrot.slane %v913, 1
      %v915 = vadd.f32 %v913, %v914
      %v916 = vlaneseq
      %v917 = vand.u32 %v916, 127
      %v918 = vadd.s32 %v917, 128
      %v919 = vadd.s32 %v917, 256
      %v920 = vadd.s32 %v917, 384
      %v921 = vadd.s32 %v917, 512
      %v922 = vadd.s32 %v917, 640
      %v923 = vadd.s32 %v917, 768
      %v924 = vadd.s32 %v917, 896
      %v925 = vadd.s32 %v917, 1024
      %v926 = vadd.s32 %v917, 1152
      %v927 = vadd.s32 %v917, 1280
      %v928 = vadd.s32 %v917, 1408
      %v929 = vadd.s32 %v917, 1536
      %v930 = vadd.s32 %v917, 1664
      %v931 = vadd.s32 %v917, 1792
      %v932 = vadd.s32 %v917, 1920
      %v933 = vadd.s32 %v917, 2048
      %v934 = vadd.s32 %v917, 2176
      %v935 = vadd.s32 %v917, 2304
      %v936 = vadd.s32 %v917, 2432
      %v937 = vadd.s32 %v917, 2560
      %v938 = vadd.s32 %v917, 2688
      %v939 = vadd.s32 %v917, 2816
      %v940 = vadd.s32 %v917, 2944
      %v941 = vadd.s32 %v917, 3072
      %v942 = vadd.s32 %v917, 3200
      %v943 = vadd.s32 %v917, 3328
      %v944 = vadd.s32 %v917, 3456
      %v945 = vadd.s32 %v917, 3584
      %v946 = vadd.s32 %v917, 3712
      %v947 = vadd.s32 %v917, 3840
      %v948 = vadd.s32 %v917, 3968
      %s949 = smul.u32 %s25, 4096
      %v950 = vstv %s949
      %v951 = vadd.s32 %v950, %v917
      %v952 = vadd.s32 %v950, %v918
      %v953 = vadd.s32 %v950, %v919
      %v954 = vadd.s32 %v950, %v920
      %v955 = vadd.s32 %v950, %v921
      %v956 = vadd.s32 %v950, %v922
      %v957 = vadd.s32 %v950, %v923
      %v958 = vadd.s32 %v950, %v924
      %v959 = vadd.s32 %v950, %v925
      %v960 = vadd.s32 %v950, %v926
      %v961 = vadd.s32 %v950, %v927
      %v962 = vadd.s32 %v950, %v928
      %v963 = vadd.s32 %v950, %v929
      %v964 = vadd.s32 %v950, %v930
      %v965 = vadd.s32 %v950, %v931
      %v966 = vadd.s32 %v950, %v932
      %v967 = vadd.s32 %v950, %v933
      %v968 = vadd.s32 %v950, %v934
      %v969 = vadd.s32 %v950, %v935
      %v970 = vadd.s32 %v950, %v936
      %v971 = vadd.s32 %v950, %v937
      %v972 = vadd.s32 %v950, %v938
      %v973 = vadd.s32 %v950, %v939
      %v974 = vadd.s32 %v950, %v940
      %v975 = vadd.s32 %v950, %v941
      %v976 = vadd.s32 %v950, %v942
      %v977 = vadd.s32 %v950, %v943
      %v978 = vadd.s32 %v950, %v944
      %v979 = vadd.s32 %v950, %v945
      %v980 = vadd.s32 %v950, %v946
      %v981 = vadd.s32 %v950, %v947
      %v982 = vadd.s32 %v950, %v948
      %vm983 = vcmp.lt.s32.totalorder %v951, 4096
      %vm984 = vcmp.lt.s32.totalorder %v952, 4096
      %vm985 = vcmp.lt.s32.totalorder %v953, 4096
      %vm986 = vcmp.lt.s32.totalorder %v954, 4096
      %vm987 = vcmp.lt.s32.totalorder %v955, 4096
      %vm988 = vcmp.lt.s32.totalorder %v956, 4096
      %vm989 = vcmp.lt.s32.totalorder %v957, 4096
      %vm990 = vcmp.lt.s32.totalorder %v958, 4096
      %vm991 = vcmp.lt.s32.totalorder %v959, 4096
      %vm992 = vcmp.lt.s32.totalorder %v960, 4096
      %vm993 = vcmp.lt.s32.totalorder %v961, 4096
      %vm994 = vcmp.lt.s32.totalorder %v962, 4096
      %vm995 = vcmp.lt.s32.totalorder %v963, 4096
      %vm996 = vcmp.lt.s32.totalorder %v964, 4096
      %vm997 = vcmp.lt.s32.totalorder %v965, 4096
      %vm998 = vcmp.lt.s32.totalorder %v966, 4096
      %vm999 = vcmp.lt.s32.totalorder %v967, 4096
      %vm1000 = vcmp.lt.s32.totalorder %v968, 4096
      %vm1001 = vcmp.lt.s32.totalorder %v969, 4096
      %vm1002 = vcmp.lt.s32.totalorder %v970, 4096
      %vm1003 = vcmp.lt.s32.totalorder %v971, 4096
      %vm1004 = vcmp.lt.s32.totalorder %v972, 4096
      %vm1005 = vcmp.lt.s32.totalorder %v973, 4096
      %vm1006 = vcmp.lt.s32.totalorder %v974, 4096
      %vm1007 = vcmp.lt.s32.totalorder %v975, 4096
      %vm1008 = vcmp.lt.s32.totalorder %v976, 4096
      %vm1009 = vcmp.lt.s32.totalorder %v977, 4096
      %vm1010 = vcmp.lt.s32.totalorder %v978, 4096
      %vm1011 = vcmp.lt.s32.totalorder %v979, 4096
      %vm1012 = vcmp.lt.s32.totalorder %v980, 4096
      %vm1013 = vcmp.lt.s32.totalorder %v981, 4096
      %vm1014 = vcmp.lt.s32.totalorder %v982, 4096
      %v1015 = vsel %vm983, %v698, 0.0
      %v1016 = vsel %vm984, %v705, 0.0
      %v1017 = vsel %vm985, %v712, 0.0
      %v1018 = vsel %vm986, %v719, 0.0
      %v1019 = vsel %vm987, %v726, 0.0
      %v1020 = vsel %vm988, %v733, 0.0
      %v1021 = vsel %vm989, %v740, 0.0
      %v1022 = vsel %vm990, %v747, 0.0
      %v1023 = vsel %vm991, %v754, 0.0
      %v1024 = vsel %vm992, %v761, 0.0
      %v1025 = vsel %vm993, %v768, 0.0
      %v1026 = vsel %vm994, %v775, 0.0
      %v1027 = vsel %vm995, %v782, 0.0
      %v1028 = vsel %vm996, %v789, 0.0
      %v1029 = vsel %vm997, %v796, 0.0
      %v1030 = vsel %vm998, %v803, 0.0
      %v1031 = vsel %vm999, %v810, 0.0
      %v1032 = vsel %vm1000, %v817, 0.0
      %v1033 = vsel %vm1001, %v824, 0.0
      %v1034 = vsel %vm1002, %v831, 0.0
      %v1035 = vsel %vm1003, %v838, 0.0
      %v1036 = vsel %vm1004, %v845, 0.0
      %v1037 = vsel %vm1005, %v852, 0.0
      %v1038 = vsel %vm1006, %v859, 0.0
      %v1039 = vsel %vm1007, %v866, 0.0
      %v1040 = vsel %vm1008, %v873, 0.0
      %v1041 = vsel %vm1009, %v880, 0.0
      %v1042 = vsel %vm1010, %v887, 0.0
      %v1043 = vsel %vm1011, %v894, 0.0
      %v1044 = vsel %vm1012, %v901, 0.0
      %v1045 = vsel %vm1013, %v908, 0.0
      %v1046 = vsel %vm1014, %v915, 0.0
      %v1047 = vpack.c.bf16 %v1016, %v1015
      %v1048 = vpack.c.bf16 %v1018, %v1017
      %v1049 = vpack.c.bf16 %v1020, %v1019
      %v1050 = vpack.c.bf16 %v1022, %v1021
      %v1051 = vpack.c.bf16 %v1024, %v1023
      %v1052 = vpack.c.bf16 %v1026, %v1025
      %v1053 = vpack.c.bf16 %v1028, %v1027
      %v1054 = vpack.c.bf16 %v1030, %v1029
      %v1055 = vpack.c.bf16 %v1032, %v1031
      %v1056 = vpack.c.bf16 %v1034, %v1033
      %v1057 = vpack.c.bf16 %v1036, %v1035
      %v1058 = vpack.c.bf16 %v1038, %v1037
      %v1059 = vpack.c.bf16 %v1040, %v1039
      %v1060 = vpack.c.bf16 %v1042, %v1041
      %v1061 = vpack.c.bf16 %v1044, %v1043
      %v1062 = vpack.c.bf16 %v1046, %v1045
      %v1079 = vrot.slane %v1047, 3
      %v1080 = vrot.slane %v1048, 6
      %v1081 = vrot.slane %v1048, 1
      %v1082 = vrot.slane %v1049, 4
      %v1083 = vrot.slane %v1049, 7
      %v1084 = vrot.slane %v1050, 2
      %v1085 = vrot.slane %v1050, 5
      %v1086 = vrot.slane %v1051, 3
      %v1087 = vrot.slane %v1052, 6
      %v1088 = vrot.slane %v1052, 1
      %v1089 = vrot.slane %v1053, 4
      %v1090 = vrot.slane %v1053, 7
      %v1091 = vrot.slane %v1054, 2
      %v1092 = vrot.slane %v1054, 5
      %v1093 = vrot.slane %v1055, 3
      %v1094 = vrot.slane %v1056, 6
      %v1095 = vrot.slane %v1056, 1
      %v1096 = vrot.slane %v1057, 4
      %v1097 = vrot.slane %v1057, 7
      %v1098 = vrot.slane %v1058, 2
      %v1099 = vrot.slane %v1058, 5
      %v1100 = vrot.slane %v1059, 3
      %v1101 = vrot.slane %v1060, 6
      %v1102 = vrot.slane %v1060, 1
      %v1103 = vrot.slane %v1061, 4
      %v1104 = vrot.slane %v1061, 7
      %v1105 = vrot.slane %v1062, 2
      %v1106 = vrot.slane %v1062, 5
      %vm1107 = vcmask 1040384
      %v1110 = vsel %vm1107, %v1047, %v1079
      %vm1111 = vcmask 1042434
      %v1114 = vsel %vm1111, %v1080, %v1081
      %vm1115 = vcmask 1041408
      %v1116 = vsel %vm1115, %v1110, %v1114
      %vm1117 = vcmask 1044484
      %v1120 = vsel %vm1117, %v1082, %v1083
      %vm1121 = vcmask 1046534
      %v1124 = vsel %vm1121, %v1084, %v1085
      %vm1125 = vcmask 1045508
      %v1126 = vsel %vm1125, %v1120, %v1124
      %v1127 = vsel %vm691, %v1116, %v1126
      %v1130 = vsel %vm1107, %v1051, %v1086
      %v1133 = vsel %vm1111, %v1087, %v1088
      %v1134 = vsel %vm1115, %v1130, %v1133
      %v1137 = vsel %vm1117, %v1089, %v1090
      %v1140 = vsel %vm1121, %v1091, %v1092
      %v1141 = vsel %vm1125, %v1137, %v1140
      %v1142 = vsel %vm691, %v1134, %v1141
      %v1145 = vsel %vm1107, %v1055, %v1093
      %v1148 = vsel %vm1111, %v1094, %v1095
      %v1149 = vsel %vm1115, %v1145, %v1148
      %v1152 = vsel %vm1117, %v1096, %v1097
      %v1155 = vsel %vm1121, %v1098, %v1099
      %v1156 = vsel %vm1125, %v1152, %v1155
      %v1157 = vsel %vm691, %v1149, %v1156
      %v1160 = vsel %vm1107, %v1059, %v1100
      %v1163 = vsel %vm1111, %v1101, %v1102
      %v1164 = vsel %vm1115, %v1160, %v1163
      %v1167 = vsel %vm1117, %v1103, %v1104
      %v1170 = vsel %vm1121, %v1105, %v1106
      %v1171 = vsel %vm1125, %v1167, %v1170
      %v1172 = vsel %vm691, %v1164, %v1171
      %vm1177 = vcmask 1040384
      %vm1178 = vsmask.f32 256
      %vm1179 = vmand %vm1177, %vm1178
      %vm1180 = vcmask 1041409
      %vm1181 = vsmask.f32 1280
      %vm1182 = vmand %vm1180, %vm1181
      %vm1183 = vmor %vm1182, %vm1179
      %vm1184 = vcmask 1042434
      %vm1185 = vsmask.f32 2304
      %vm1186 = vmand %vm1184, %vm1185
      %vm1187 = vmor %vm1186, %vm1183
      %vm1188 = vcmask 1043459
      %vm1189 = vsmask.f32 3328
      %vm1190 = vmand %vm1188, %vm1189
      %vm1191 = vmor %vm1190, %vm1187
      %vm1192 = vcmask 1044484
      %vm1193 = vsmask.f32 4352
      %vm1194 = vmand %vm1192, %vm1193
      %vm1195 = vmor %vm1194, %vm1191
      %vm1196 = vcmask 1045509
      %vm1197 = vsmask.f32 5376
      %vm1198 = vmand %vm1196, %vm1197
      %vm1199 = vmor %vm1198, %vm1195
      %vm1200 = vcmask 1046534
      %vm1201 = vsmask.f32 6400
      %vm1202 = vmand %vm1200, %vm1201
      %vm1203 = vmor %vm1202, %vm1199
      %vm1204 = vcmask 1047559
      %vm1205 = vsmask.f32 7424
      %vm1206 = vmand %vm1204, %vm1205
      %vm1207 = vmor %vm1206, %vm1203
      %v1208 = vld [vmem:[%s388] sm:$0xff]
      %v1209 = vsel %vm1207, %v1127, %v1208
      %1210 = vst [vmem:[%s388] sm:$0xff] %v1209
      %v1211 = vld [vmem:[%s388 + $0x8] sm:$0xff]
      %v1212 = vsel %vm1207, %v1142, %v1211
      %1213 = vst [vmem:[%s388 + $0x8] sm:$0xff] %v1212
      %v1214 = vld [vmem:[%s388 + $0x10] sm:$0xff]
      %v1215 = vsel %vm1207, %v1157, %v1214
      %1216 = vst [vmem:[%s388 + $0x10] sm:$0xff] %v1215
      %v1217 = vld [vmem:[%s388 + $0x18] sm:$0xff]
      %v1218 = vsel %vm1207, %v1172, %v1217
      %1219 = vst [vmem:[%s388 + $0x18] sm:$0xff] %v1218
      %v1220 = vld [vmem:[#allocation2] sm:$0xff]
      %v1221 = vld [vmem:[#allocation2 + $0x8] sm:$0xff]
      %v1222 = vld [vmem:[#allocation2 + $0x10] sm:$0xff]
      %v1223 = vld [vmem:[#allocation2 + $0x18] sm:$0xff]
      %v1256 = vrot.slane %v1016, 7
      %v1257 = vrot.slane %v1017, 6
      %v1258 = vrot.slane %v1018, 5
      %v1259 = vrot.slane %v1019, 4
      %v1260 = vrot.slane %v1020, 3
      %v1261 = vrot.slane %v1021, 2
      %v1262 = vrot.slane %v1022, 1
      %v1263 = vrot.slane %v1024, 7
      %v1264 = vrot.slane %v1025, 6
      %v1265 = vrot.slane %v1026, 5
      %v1266 = vrot.slane %v1027, 4
      %v1267 = vrot.slane %v1028, 3
      %v1268 = vrot.slane %v1029, 2
      %v1269 = vrot.slane %v1030, 1
      %v1270 = vrot.slane %v1032, 7
      %v1271 = vrot.slane %v1033, 6
      %v1272 = vrot.slane %v1034, 5
      %v1273 = vrot.slane %v1035, 4
      %v1274 = vrot.slane %v1036, 3
      %v1275 = vrot.slane %v1037, 2
      %v1276 = vrot.slane %v1038, 1
      %v1277 = vrot.slane %v1040, 7
      %v1278 = vrot.slane %v1041, 6
      %v1279 = vrot.slane %v1042, 5
      %v1280 = vrot.slane %v1043, 4
      %v1281 = vrot.slane %v1044, 3
      %v1282 = vrot.slane %v1045, 2
      %v1283 = vrot.slane %v1046, 1
      %v1284 = vsel %vm1107, %v1015, %v1256
      %v1285 = vsel %vm1111, %v1257, %v1258
      %v1286 = vsel %vm1115, %v1284, %v1285
      %v1287 = vsel %vm1117, %v1259, %v1260
      %v1288 = vsel %vm1121, %v1261, %v1262
      %v1289 = vsel %vm1125, %v1287, %v1288
      %v1290 = vsel %vm691, %v1286, %v1289
      %v1291 = vsel %vm1107, %v1023, %v1263
      %v1292 = vsel %vm1111, %v1264, %v1265
      %v1293 = vsel %vm1115, %v1291, %v1292
      %v1294 = vsel %vm1117, %v1266, %v1267
      %v1295 = vsel %vm1121, %v1268, %v1269
      %v1296 = vsel %vm1125, %v1294, %v1295
      %v1297 = vsel %vm691, %v1293, %v1296
      %v1298 = vsel %vm1107, %v1031, %v1270
      %v1299 = vsel %vm1111, %v1271, %v1272
      %v1300 = vsel %vm1115, %v1298, %v1299
      %v1301 = vsel %vm1117, %v1273, %v1274
      %v1302 = vsel %vm1121, %v1275, %v1276
      %v1303 = vsel %vm1125, %v1301, %v1302
      %v1304 = vsel %vm691, %v1300, %v1303
      %v1305 = vsel %vm1107, %v1039, %v1277
      %v1306 = vsel %vm1111, %v1278, %v1279
      %v1307 = vsel %vm1115, %v1305, %v1306
      %v1308 = vsel %vm1117, %v1280, %v1281
      %v1309 = vsel %vm1121, %v1282, %v1283
      %v1310 = vsel %vm1125, %v1308, %v1309
      %v1311 = vsel %vm691, %v1307, %v1310
      %v1316 = vadd.f32 %v1220, %v1290
      %v1317 = vadd.f32 %v1221, %v1297
      %v1318 = vadd.f32 %v1222, %v1304
      %v1319 = vadd.f32 %v1223, %v1311
      %1320 = vst [vmem:[#allocation2] sm:$0xff] %v1316
      %1321 = vst [vmem:[#allocation2 + $0x8] sm:$0xff] %v1317
      %1322 = vst [vmem:[#allocation2 + $0x10] sm:$0xff] %v1318
      %1323 = vst [vmem:[#allocation2 + $0x18] sm:$0xff] %v1319
      %v1324 = vld [vmem:[#allocation3] sm:$0xff]
      %v1325 = vld [vmem:[#allocation3 + $0x8] sm:$0xff]
      %v1326 = vld [vmem:[#allocation3 + $0x10] sm:$0xff]
      %v1327 = vld [vmem:[#allocation3 + $0x18] sm:$0xff]
      %v1328 = vmul.f32 %v1015, %v1015
      %v1329 = vmul.f32 %v1016, %v1016
      %v1330 = vmul.f32 %v1017, %v1017
      %v1331 = vmul.f32 %v1018, %v1018
      %v1332 = vmul.f32 %v1019, %v1019
      %v1333 = vmul.f32 %v1020, %v1020
      %v1334 = vmul.f32 %v1021, %v1021
      %v1335 = vmul.f32 %v1022, %v1022
      %v1336 = vmul.f32 %v1023, %v1023
      %v1337 = vmul.f32 %v1024, %v1024
      %v1338 = vmul.f32 %v1025, %v1025
      %v1339 = vmul.f32 %v1026, %v1026
      %v1340 = vmul.f32 %v1027, %v1027
      %v1341 = vmul.f32 %v1028, %v1028
      %v1342 = vmul.f32 %v1029, %v1029
      %v1343 = vmul.f32 %v1030, %v1030
      %v1344 = vmul.f32 %v1031, %v1031
      %v1345 = vmul.f32 %v1032, %v1032
      %v1346 = vmul.f32 %v1033, %v1033
      %v1347 = vmul.f32 %v1034, %v1034
      %v1348 = vmul.f32 %v1035, %v1035
      %v1349 = vmul.f32 %v1036, %v1036
      %v1350 = vmul.f32 %v1037, %v1037
      %v1351 = vmul.f32 %v1038, %v1038
      %v1352 = vmul.f32 %v1039, %v1039
      %v1353 = vmul.f32 %v1040, %v1040
      %v1354 = vmul.f32 %v1041, %v1041
      %v1355 = vmul.f32 %v1042, %v1042
      %v1356 = vmul.f32 %v1043, %v1043
      %v1357 = vmul.f32 %v1044, %v1044
      %v1358 = vmul.f32 %v1045, %v1045
      %v1359 = vmul.f32 %v1046, %v1046
      %v1392 = vrot.slane %v1329, 7
      %v1393 = vrot.slane %v1330, 6
      %v1394 = vrot.slane %v1331, 5
      %v1395 = vrot.slane %v1332, 4
      %v1396 = vrot.slane %v1333, 3
      %v1397 = vrot.slane %v1334, 2
      %v1398 = vrot.slane %v1335, 1
      %v1399 = vrot.slane %v1337, 7
      %v1400 = vrot.slane %v1338, 6
      %v1401 = vrot.slane %v1339, 5
      %v1402 = vrot.slane %v1340, 4
      %v1403 = vrot.slane %v1341, 3
      %v1404 = vrot.slane %v1342, 2
      %v1405 = vrot.slane %v1343, 1
      %v1406 = vrot.slane %v1345, 7
      %v1407 = vrot.slane %v1346, 6
      %v1408 = vrot.slane %v1347, 5
      %v1409 = vrot.slane %v1348, 4
      %v1410 = vrot.slane %v1349, 3
      %v1411 = vrot.slane %v1350, 2
      %v1412 = vrot.slane %v1351, 1
      %v1413 = vrot.slane %v1353, 7
      %v1414 = vrot.slane %v1354, 6
      %v1415 = vrot.slane %v1355, 5
      %v1416 = vrot.slane %v1356, 4
      %v1417 = vrot.slane %v1357, 3
      %v1418 = vrot.slane %v1358, 2
      %v1419 = vrot.slane %v1359, 1
      %v1420 = vsel %vm1107, %v1328, %v1392
      %v1421 = vsel %vm1111, %v1393, %v1394
      %v1422 = vsel %vm1115, %v1420, %v1421
      %v1423 = vsel %vm1117, %v1395, %v1396
      %v1424 = vsel %vm1121, %v1397, %v1398
      %v1425 = vsel %vm1125, %v1423, %v1424
      %v1426 = vsel %vm691, %v1422, %v1425
      %v1427 = vsel %vm1107, %v1336, %v1399
      %v1428 = vsel %vm1111, %v1400, %v1401
      %v1429 = vsel %vm1115, %v1427, %v1428
      %v1430 = vsel %vm1117, %v1402, %v1403
      %v1431 = vsel %vm1121, %v1404, %v1405
      %v1432 = vsel %vm1125, %v1430, %v1431
      %v1433 = vsel %vm691, %v1429, %v1432
      %v1434 = vsel %vm1107, %v1344, %v1406
      %v1435 = vsel %vm1111, %v1407, %v1408
      %v1436 = vsel %vm1115, %v1434, %v1435
      %v1437 = vsel %vm1117, %v1409, %v1410
      %v1438 = vsel %vm1121, %v1411, %v1412
      %v1439 = vsel %vm1125, %v1437, %v1438
      %v1440 = vsel %vm691, %v1436, %v1439
      %v1441 = vsel %vm1107, %v1352, %v1413
      %v1442 = vsel %vm1111, %v1414, %v1415
      %v1443 = vsel %vm1115, %v1441, %v1442
      %v1444 = vsel %vm1117, %v1416, %v1417
      %v1445 = vsel %vm1121, %v1418, %v1419
      %v1446 = vsel %vm1125, %v1444, %v1445
      %v1447 = vsel %vm691, %v1443, %v1446
      %v1452 = vadd.f32 %v1324, %v1426
      %v1453 = vadd.f32 %v1325, %v1433
      %v1454 = vadd.f32 %v1326, %v1440
      %v1455 = vadd.f32 %v1327, %v1447
      %1456 = vst [vmem:[#allocation3] sm:$0xff] %v1452
      %1457 = vst [vmem:[#allocation3 + $0x8] sm:$0xff] %v1453
      %1458 = vst [vmem:[#allocation3 + $0x10] sm:$0xff] %v1454
      %1459 = vst [vmem:[#allocation3 + $0x18] sm:$0xff] %v1455
      // Predicated region
      $region49: #{attention_block.4} parent=43 // pred_check
        %p1460 = pneg %p396
      $region50: #{attention_block.4} parent=43 // pred_check_branch
        %1462 = sbr.rel (%p1460) target = $region52
      $region51: #{attention_block.4} parent=43 // pred_region
        %v1463 = vld [vmem:[#allocation2] sm:$0xff]
        %v1464 = vld [vmem:[#allocation2 + $0x8] sm:$0xff]
        %v1465 = vld [vmem:[#allocation2 + $0x10] sm:$0xff]
        %v1466 = vld [vmem:[#allocation2 + $0x18] sm:$0xff]
        %v1471 = vperm.slane %v1463, 0
        %v1472 = vperm.slane %v1463, 1
        %v1473 = vperm.slane %v1463, 2
        %v1474 = vperm.slane %v1463, 3
        %v1475 = vperm.slane %v1463, 4
        %v1476 = vperm.slane %v1463, 5
        %v1477 = vperm.slane %v1463, 6
        %v1478 = vperm.slane %v1463, 7
        %v1479 = vperm.slane %v1464, 0
        %v1480 = vperm.slane %v1464, 1
        %v1481 = vperm.slane %v1464, 2
        %v1482 = vperm.slane %v1464, 3
        %v1483 = vperm.slane %v1464, 4
        %v1484 = vperm.slane %v1464, 5
        %v1485 = vperm.slane %v1464, 6
        %v1486 = vperm.slane %v1464, 7
        %v1487 = vperm.slane %v1465, 0
        %v1488 = vperm.slane %v1465, 1
        %v1489 = vperm.slane %v1465, 2
        %v1490 = vperm.slane %v1465, 3
        %v1491 = vperm.slane %v1465, 4
        %v1492 = vperm.slane %v1465, 5
        %v1493 = vperm.slane %v1465, 6
        %v1494 = vperm.slane %v1465, 7
        %v1495 = vperm.slane %v1466, 0
        %v1496 = vperm.slane %v1466, 1
        %v1497 = vperm.slane %v1466, 2
        %v1498 = vperm.slane %v1466, 3
        %v1499 = vperm.slane %v1466, 4
        %v1500 = vperm.slane %v1466, 5
        %v1501 = vperm.slane %v1466, 6
        %v1502 = vperm.slane %v1466, 7
        %v1535 = vsel %vm1107, %v1471, 0.0
        %v1536 = vsel %vm1107, %v1472, 0.0
        %v1537 = vadd.f32 %v1535, %v1536
        %v1538 = vsel %vm1107, %v1473, 0.0
        %v1539 = vadd.f32 %v1537, %v1538
        %v1540 = vsel %vm1107, %v1474, 0.0
        %v1541 = vadd.f32 %v1539, %v1540
        %v1542 = vsel %vm1107, %v1475, 0.0
        %v1543 = vadd.f32 %v1541, %v1542
        %v1544 = vsel %vm1107, %v1476, 0.0
        %v1545 = vadd.f32 %v1543, %v1544
        %v1546 = vsel %vm1107, %v1477, 0.0
        %v1547 = vadd.f32 %v1545, %v1546
        %v1548 = vsel %vm1107, %v1478, 0.0
        %v1549 = vadd.f32 %v1547, %v1548
        %v1550 = vsel %vm1107, %v1479, 0.0
        %v1551 = vadd.f32 %v1549, %v1550
        %v1552 = vsel %vm1107, %v1480, 0.0
        %v1553 = vadd.f32 %v1551, %v1552
        %v1554 = vsel %vm1107, %v1481, 0.0
        %v1555 = vadd.f32 %v1553, %v1554
        %v1556 = vsel %vm1107, %v1482, 0.0
        %v1557 = vadd.f32 %v1555, %v1556
        %v1558 = vsel %vm1107, %v1483, 0.0
        %v1559 = vadd.f32 %v1557, %v1558
        %v1560 = vsel %vm1107, %v1484, 0.0
        %v1561 = vadd.f32 %v1559, %v1560
        %v1562 = vsel %vm1107, %v1485, 0.0
        %v1563 = vadd.f32 %v1561, %v1562
        %v1564 = vsel %vm1107, %v1486, 0.0
        %v1565 = vadd.f32 %v1563, %v1564
        %v1566 = vsel %vm1107, %v1487, 0.0
        %v1567 = vadd.f32 %v1565, %v1566
        %v1568 = vsel %vm1107, %v1488, 0.0
        %v1569 = vadd.f32 %v1567, %v1568
        %v1570 = vsel %vm1107, %v1489, 0.0
        %v1571 = vadd.f32 %v1569, %v1570
        %v1572 = vsel %vm1107, %v1490, 0.0
        %v1573 = vadd.f32 %v1571, %v1572
        %v1574 = vsel %vm1107, %v1491, 0.0
        %v1575 = vadd.f32 %v1573, %v1574
        %v1576 = vsel %vm1107, %v1492, 0.0
        %v1577 = vadd.f32 %v1575, %v1576
        %v1578 = vsel %vm1107, %v1493, 0.0
        %v1579 = vadd.f32 %v1577, %v1578
        %v1580 = vsel %vm1107, %v1494, 0.0
        %v1581 = vadd.f32 %v1579, %v1580
        %v1582 = vsel %vm1107, %v1495, 0.0
        %v1583 = vadd.f32 %v1581, %v1582
        %v1584 = vsel %vm1107, %v1496, 0.0
        %v1585 = vadd.f32 %v1583, %v1584
        %v1586 = vsel %vm1107, %v1497, 0.0
        %v1587 = vadd.f32 %v1585, %v1586
        %v1588 = vsel %vm1107, %v1498, 0.0
        %v1589 = vadd.f32 %v1587, %v1588
        %v1590 = vsel %vm1107, %v1499, 0.0
        %v1591 = vadd.f32 %v1589, %v1590
        %v1592 = vsel %vm1107, %v1500, 0.0
        %v1593 = vadd.f32 %v1591, %v1592
        %v1594 = vsel %vm1107, %v1501, 0.0
        %v1595 = vadd.f32 %v1593, %v1594
        %v1596 = vsel %vm1107, %v1502, 0.0
        %v1597 = vadd.f32 %v1595, %v1596
        %1598 = vadd.xlane.f32.xlu0 %v1597
        %v1599 = vpop.xlane.xlu0 %1598
        %vm1600 = vcmask 0
        %1601 = vst.msk [vmem:[%s392] sm:$0x1] %vm1600, %v1599
        %v1602 = vld [vmem:[#allocation3] sm:$0xff]
        %v1603 = vld [vmem:[#allocation3 + $0x8] sm:$0xff]
        %v1604 = vld [vmem:[#allocation3 + $0x10] sm:$0xff]
        %v1605 = vld [vmem:[#allocation3 + $0x18] sm:$0xff]
        %v1610 = vperm.slane %v1602, 0
        %v1611 = vperm.slane %v1602, 1
        %v1612 = vperm.slane %v1602, 2
        %v1613 = vperm.slane %v1602, 3
        %v1614 = vperm.slane %v1602, 4
        %v1615 = vperm.slane %v1602, 5
        %v1616 = vperm.slane %v1602, 6
        %v1617 = vperm.slane %v1602, 7
        %v1618 = vperm.slane %v1603, 0
        %v1619 = vperm.slane %v1603, 1
        %v1620 = vperm.slane %v1603, 2
        %v1621 = vperm.slane %v1603, 3
        %v1622 = vperm.slane %v1603, 4
        %v1623 = vperm.slane %v1603, 5
        %v1624 = vperm.slane %v1603, 6
        %v1625 = vperm.slane %v1603, 7
        %v1626 = vperm.slane %v1604, 0
        %v1627 = vperm.slane %v1604, 1
        %v1628 = vperm.slane %v1604, 2
        %v1629 = vperm.slane %v1604, 3
        %v1630 = vperm.slane %v1604, 4
        %v1631 = vperm.slane %v1604, 5
        %v1632 = vperm.slane %v1604, 6
        %v1633 = vperm.slane %v1604, 7
        %v1634 = vperm.slane %v1605, 0
        %v1635 = vperm.slane %v1605, 1
        %v1636 = vperm.slane %v1605, 2
        %v1637 = vperm.slane %v1605, 3
        %v1638 = vperm.slane %v1605, 4
        %v1639 = vperm.slane %v1605, 5
        %v1640 = vperm.slane %v1605, 6
        %v1641 = vperm.slane %v1605, 7
        %v1674 = vsel %vm1107, %v1610, 0.0
        %v1675 = vsel %vm1107, %v1611, 0.0
        %v1676 = vadd.f32 %v1674, %v1675
        %v1677 = vsel %vm1107, %v1612, 0.0
        %v1678 = vadd.f32 %v1676, %v1677
        %v1679 = vsel %vm1107, %v1613, 0.0
        %v1680 = vadd.f32 %v1678, %v1679
        %v1681 = vsel %vm1107, %v1614, 0.0
        %v1682 = vadd.f32 %v1680, %v1681
        %v1683 = vsel %vm1107, %v1615, 0.0
        %v1684 = vadd.f32 %v1682, %v1683
        %v1685 = vsel %vm1107, %v1616, 0.0
        %v1686 = vadd.f32 %v1684, %v1685
        %v1687 = vsel %vm1107, %v1617, 0.0
        %v1688 = vadd.f32 %v1686, %v1687
        %v1689 = vsel %vm1107, %v1618, 0.0
        %v1690 = vadd.f32 %v1688, %v1689
        %v1691 = vsel %vm1107, %v1619, 0.0
        %v1692 = vadd.f32 %v1690, %v1691
        %v1693 = vsel %vm1107, %v1620, 0.0
        %v1694 = vadd.f32 %v1692, %v1693
        %v1695 = vsel %vm1107, %v1621, 0.0
        %v1696 = vadd.f32 %v1694, %v1695
        %v1697 = vsel %vm1107, %v1622, 0.0
        %v1698 = vadd.f32 %v1696, %v1697
        %v1699 = vsel %vm1107, %v1623, 0.0
        %v1700 = vadd.f32 %v1698, %v1699
        %v1701 = vsel %vm1107, %v1624, 0.0
        %v1702 = vadd.f32 %v1700, %v1701
        %v1703 = vsel %vm1107, %v1625, 0.0
        %v1704 = vadd.f32 %v1702, %v1703
        %v1705 = vsel %vm1107, %v1626, 0.0
        %v1706 = vadd.f32 %v1704, %v1705
        %v1707 = vsel %vm1107, %v1627, 0.0
        %v1708 = vadd.f32 %v1706, %v1707
        %v1709 = vsel %vm1107, %v1628, 0.0
        %v1710 = vadd.f32 %v1708, %v1709
        %v1711 = vsel %vm1107, %v1629, 0.0
        %v1712 = vadd.f32 %v1710, %v1711
        %v1713 = vsel %vm1107, %v1630, 0.0
        %v1714 = vadd.f32 %v1712, %v1713
        %v1715 = vsel %vm1107, %v1631, 0.0
        %v1716 = vadd.f32 %v1714, %v1715
        %v1717 = vsel %vm1107, %v1632, 0.0
        %v1718 = vadd.f32 %v1716, %v1717
        %v1719 = vsel %vm1107, %v1633, 0.0
        %v1720 = vadd.f32 %v1718, %v1719
        %v1721 = vsel %vm1107, %v1634, 0.0
        %v1722 = vadd.f32 %v1720, %v1721
        %v1723 = vsel %vm1107, %v1635, 0.0
        %v1724 = vadd.f32 %v1722, %v1723
        %v1725 = vsel %vm1107, %v1636, 0.0
        %v1726 = vadd.f32 %v1724, %v1725
        %v1727 = vsel %vm1107, %v1637, 0.0
        %v1728 = vadd.f32 %v1726, %v1727
        %v1729 = vsel %vm1107, %v1638, 0.0
        %v1730 = vadd.f32 %v1728, %v1729
        %v1731 = vsel %vm1107, %v1639, 0.0
        %v1732 = vadd.f32 %v1730, %v1731
        %v1733 = vsel %vm1107, %v1640, 0.0
        %v1734 = vadd.f32 %v1732, %v1733
        %v1735 = vsel %vm1107, %v1641, 0.0
        %v1736 = vadd.f32 %v1734, %v1735
        %1737 = vadd.xlane.f32.xlu0 %v1736
        %v1738 = vpop.xlane.xlu0 %1737
        %1739 = vst.msk [vmem:[%s395] sm:$0x1] %vm1600, %v1738
      $region52: #{attention_block.4} parent=43 // pred_fallthru
        _
      %s1740 = smul.u32 32, %s25
      %p1741 = scmp.lt.s32.totalorder %s24, 1
      %s1742 = scalar_select %p1741, %s24, 1
      %p1743 = scmp.lt.s32.totalorder %s1740, 31
      %s1744 = scalar_select %p1743, %s1740, 31
      %s1745 = smul.addr %s1742, 32
      %s1746 = sadd.s32 %s1744, %s1745
      %s1747 = scalar_lea.vmem %s6, %s1746
      %p1748 = scmp.lt.s32.totalorder %s24, 1
      %s1749 = scalar_select %p1748, %s24, 1
      %s1750 = scalar_lea.vmem %s7, %s1749
      %p1751 = scmp.lt.s32.totalorder %s24, 1
      %s1752 = scalar_select %p1751, %s24, 1
      %s1753 = scalar_lea.vmem %s8, %s1752
      // Predicated region
      $region53: #{attention_block.4} parent=43 // pred_check
        %p1754 = pneg %p192
      $region54: #{attention_block.4} parent=43 // pred_check_branch
        %1756 = sbr.rel (%p1754) target = $region56
      $region55: #{attention_block.4} parent=43 // pred_region
        %s1757 = smul.u32 32, %s25
      $region56: #{attention_block.4} parent=43 // pred_fallthru
        _
      // Predicated region
      $region57: #{attention_block.4} parent=43 // pred_check
        %p1758 = pneg %p218
      $region58: #{attention_block.4} parent=43 // pred_check_branch
        %1760 = sbr.rel (%p1758) target = $region60
      $region59: #{attention_block.4} parent=43 // pred_region
        _
      $region60: #{attention_block.4} parent=43 // pred_fallthru
        _
      // Predicated region
      $region61: #{attention_block.4} parent=43 // pred_check
        %p1761 = pneg %p244
      $region62: #{attention_block.4} parent=43 // pred_check_branch
        %1763 = sbr.rel (%p1761) target = $region64
      $region63: #{attention_block.4} parent=43 // pred_region
        _
      $region64: #{attention_block.4} parent=43 // pred_fallthru
        _
    $region44: #{attention_block.4} parent=5 // pred_fallthru
      _
    %p1764 = scmp.le.s32.totalorder 2, %s15
    // Predicated region
    $region65: #{attention_block.4} parent=5 // pred_check
      %p1765 = pneg %p1764
    $region66: #{attention_block.4} parent=5 // pred_check_branch
      %1767 = sbr.rel (%p1765) target = $region68
    $region67: #{attention_block.4} parent=5 // pred_region
      %s1768 = ssub.s32 %s15, 2
      // Predicated region
      $region69: #{attention_block.4} parent=67 // pred_check
        %p1769 = pneg %p198
      $region70: #{attention_block.4} parent=67 // pred_check_branch
        %1771 = sbr.rel (%p1769) target = $region72
      $region71: #{attention_block.4} parent=67 // pred_region
        %s1772 = smul.u32 32, %s27
        %p1773 = scmp.lt.s32.totalorder %s26, 1
        %s1774 = scalar_select %p1773, %s26, 1
        %p1775 = scmp.lt.s32.totalorder %s1772, 31
        %s1776 = scalar_select %p1775, %s1772, 31
        %s1777 = smul.addr %s1774, 32
        %s1778 = sadd.s32 %s1776, %s1777
        %s1779 = scalar_lea.vmem %s6, %s1778
      $region72: #{attention_block.4} parent=67 // pred_fallthru
        _
      // Predicated region
      $region73: #{attention_block.4} parent=67 // pred_check
        %p1780 = pneg %p224
      $region74: #{attention_block.4} parent=67 // pred_check_branch
        %1782 = sbr.rel (%p1780) target = $region76
      $region75: #{attention_block.4} parent=67 // pred_region
        %p1783 = scmp.lt.s32.totalorder %s26, 1
        %s1784 = scalar_select %p1783, %s26, 1
        %s1785 = scalar_lea.vmem %s7, %s1784
      $region76: #{attention_block.4} parent=67 // pred_fallthru
        _
      // Predicated region
      $region77: #{attention_block.4} parent=67 // pred_check
        %p1786 = pneg %p250
      $region78: #{attention_block.4} parent=67 // pred_check_branch
        %1788 = sbr.rel (%p1786) target = $region80
      $region79: #{attention_block.4} parent=67 // pred_region
        %p1789 = scmp.lt.s32.totalorder %s26, 1
        %s1790 = scalar_select %p1789, %s26, 1
        %s1791 = scalar_lea.vmem %s8, %s1790
      $region80: #{attention_block.4} parent=67 // pred_fallthru
        _
    $region68: #{attention_block.4} parent=5 // pred_fallthru
      _
  $region6: #{attention_block.4} parent=0 // loop_footer
    %s19 = sadd.s32 1, %s15
  $region7: #{attention_block.4} parent=0 // loop_footer_branch
    %14 = sbr.rel target = $region3
  $region8: #{attention_block.4} parent=0 // loop_exit
    _

// kernel: attention_block.3
$region0: #{attention_block.3}
  #allocation0 [shape = 'u32[]', space=smem, size = 0x4, offset = 0x4, fixed_abs, tag = 'smem constant byte address 0x4 - core index']
  #allocation1 [shape = 'u32[72,128]{1,0:T(1,128)}', space=vmem, size = 0x9000, scoped, tag = 'internal scratch']
  #allocation2 [shape = 'f32[4,4096]{1,0:T(4,128)}', space=vmem, size = 0x10000, scoped, tag = 'scratch operand']
  #allocation3 [shape = 'f32[4,4096]{1,0:T(4,128)}', space=vmem, size = 0x10000, scoped, tag = 'scratch operand']
  #allocation4 [shape = 'f32[4,4096]{1,0:T(4,128)}', space=vmem, size = 0x10000, scoped, tag = 'scratch operand']
  #allocation5 [shape = 'f32[4,4096]{1,0:T(4,128)}', space=vmem, size = 0x10000, scoped, tag = 'scratch operand']
  %s0 = inlined_call_operand.vmem [shape: f32[2,8,4096], index: 0, kind: input, shape index: {}]
  %s1 = inlined_call_operand.vmem [shape: f32[2,8,4096], index: 1, kind: input, shape index: {}]
  %s2 = inlined_call_operand.vmem [shape: f32[4,8], index: 2, kind: input, shape index: {}]
  %s3 = inlined_call_operand.vmem [shape: f32[4,8], index: 3, kind: input, shape index: {}]
  %s4 = inlined_call_operand.vmem [shape: bf16[2,4,4096], index: 4, kind: output, shape index: {0}]
  %s5 = inlined_call_operand.vmem [shape: bf16[2,4,4096], index: 5, kind: output, shape index: {1}]
  %s6 = inlined_call_operand.vmem [shape: f32[2,4,1], index: 6, kind: output, shape index: {2}]
  %s7 = inlined_call_operand.vmem [shape: f32[2,4,1], index: 7, kind: output, shape index: {3}]
  %s8 = inlined_call_operand.vmem [shape: f32[2,4,1], index: 8, kind: output, shape index: {4}]
  %s9 = inlined_call_operand.vmem [shape: f32[2,4,1], index: 9, kind: output, shape index: {5}]
  %10 = xla_tuple %s4, %s5, %s6, %s7, %s8, %s9
  %s11 = sld [smem:[#allocation0]]
  $region97: #{attention_block.3} parent=0
    _
  %s13 = ssub.s32 1, %s11
  %s14 = scalar_select 0, %s13, %s11
  loop: start=0, step=1, limit=4
  $region2: #{attention_block.3} parent=0 // loop_pre_header
    _
  $region3: #{attention_block.3} parent=0 // loop_header
    %s16 = sphi 0, %s20
    %p17 = scmp.ge.s32.totalorder %s16, 4
    %s23 = sphi 0, %s35
    %s24 = sphi 0, %s31
    %s25 = sphi 0, %s23
    %s26 = sphi 0, %s24
    %s27 = sphi 0, %s25
    %s28 = sphi 0, %s26
    %s40 = sphi 0, %s42
    %s43 = sphi 0, %s40
    %s44 = sphi 0, %s43
    %s60 = sphi 0, %s44
    %s68 = sphi 0, %s70
    %s71 = sphi 0, %s68
    %s72 = sphi 0, %s71
    %s88 = sphi 0, %s72
    %s92 = sphi 0, %s92
    %s94 = sphi 0, %s92
    %s95 = sphi 0, %s94
    %s109 = sphi 0, %s95
    %s113 = sphi 0, %s113
    %s115 = sphi 0, %s113
    %s116 = sphi 0, %s115
    %s130 = sphi 0, %s116
    %s138 = sphi 0, %s140
    %s141 = sphi 0, %s138
    %s142 = sphi 0, %s141
    %s158 = sphi 0, %s142
    %s166 = sphi 0, %s168
    %s169 = sphi 0, %s166
    %s170 = sphi 0, %s169
    %s186 = sphi 0, %s170
    %s192 = sphi 0, %s194
    %s195 = sphi 0, %s192
    %s196 = sphi 0, %s195
    %s212 = sphi 0, %s196
    %s218 = sphi 0, %s220
    %s221 = sphi 0, %s218
    %s222 = sphi 0, %s221
    %s238 = sphi 0, %s222
    %s244 = sphi 0, %s246
    %s247 = sphi 0, %s244
    %s248 = sphi 0, %s247
    %s264 = sphi 0, %s248
    %s270 = sphi 0, %s272
    %s273 = sphi 0, %s270
    %s274 = sphi 0, %s273
    %s290 = sphi 0, %s274
  $region4: #{attention_block.3} parent=0 // loop_header_branch
    %19 = sbr.rel (%p17) target = $region8
  $region5: #{attention_block.3} parent=0 // loop_body
    %s21 = ssub.s32 %s16, 1
    %s22 = ssub.s32 %s16, 2
    %s29 = sadd.s32 1, %s24
    %p30 = scmp.ge.s32.totalorder %s29, 1
    %s31 = scalar_select %p30, 0, %s29
    %s32 = sadd.s32 1, %s23
    %s33 = scalar_select %p30, %s32, %s23
    %p34 = scmp.ge.s32.totalorder %s33, 2
    %s35 = scalar_select %p34, 0, %s33
    %s36 = ssub.s32 %s23, %s35
    %s37 = ssub.s32 %s24, %s31
    %s38 = sor.u32 %s36, %s37
    %p39 = scmp.eq.s32.totalorder %s38, 0
    %s41 = sadd.s32 %s40, 1
    %s42 = scalar_select %p39, %s40, %s41
    %p45 = pneg %p39
    %p46 = scmp.eq.s32.totalorder %s16, 1
    %p47 = por %p45, %p46
    %p48 = scmp.ne.s32.totalorder %s40, %s43
    %p49 = scmp.eq.s32.totalorder %s16, 0
    %p50 = por %p48, %p49
    %p51 = scmp.ne.s32.totalorder %s40, %s43
    %p52 = scmp.eq.s32.totalorder %s21, 1
    %p53 = por %p51, %p52
    %p54 = scmp.ne.s32.totalorder %s43, %s44
    %p55 = scmp.eq.s32.totalorder %s21, 0
    %p56 = por %p54, %p55
    %p57 = scmp.ne.s32.totalorder %s43, %s44
    %p58 = scmp.eq.s32.totalorder %s22, 1
    %p59 = por %p57, %p58
    %p61 = scmp.ne.s32.totalorder %s44, %s60
    %p62 = scmp.eq.s32.totalorder %s22, 0
    %p63 = por %p61, %p62
    %s64 = ssub.s32 %s23, %s35
    %s65 = ssub.s32 %s24, %s31
    %s66 = sor.u32 %s64, %s65
    %p67 = scmp.eq.s32.totalorder %s66, 0
    %s69 = sadd.s32 %s68, 1
    %s70 = scalar_select %p67, %s68, %s69
    %p73 = pneg %p67
    %p74 = scmp.eq.s32.totalorder %s16, 1
    %p75 = por %p73, %p74
    %p76 = scmp.ne.s32.totalorder %s68, %s71
    %p77 = scmp.eq.s32.totalorder %s16, 0
    %p78 = por %p76, %p77
    %p79 = scmp.ne.s32.totalorder %s68, %s71
    %p80 = scmp.eq.s32.totalorder %s21, 1
    %p81 = por %p79, %p80
    %p82 = scmp.ne.s32.totalorder %s71, %s72
    %p83 = scmp.eq.s32.totalorder %s21, 0
    %p84 = por %p82, %p83
    %p85 = scmp.ne.s32.totalorder %s71, %s72
    %p86 = scmp.eq.s32.totalorder %s22, 1
    %p87 = por %p85, %p86
    %p89 = scmp.ne.s32.totalorder %s72, %s88
    %p90 = scmp.eq.s32.totalorder %s22, 0
    %p91 = por %p89, %p90
    %s93 = sadd.s32 %s92, 1
    %p96 = scmp.eq.s32.totalorder %s16, 1
    %p97 = scmp.ne.s32.totalorder %s92, %s94
    %p98 = scmp.eq.s32.totalorder %s16, 0
    %p99 = por %p97, %p98
    %p100 = scmp.ne.s32.totalorder %s92, %s94
    %p101 = scmp.eq.s32.totalorder %s21, 1
    %p102 = por %p100, %p101
    %p103 = scmp.ne.s32.totalorder %s94, %s95
    %p104 = scmp.eq.s32.totalorder %s21, 0
    %p105 = por %p103, %p104
    %p106 = scmp.ne.s32.totalorder %s94, %s95
    %p107 = scmp.eq.s32.totalorder %s22, 1
    %p108 = por %p106, %p107
    %p110 = scmp.ne.s32.totalorder %s95, %s109
    %p111 = scmp.eq.s32.totalorder %s22, 0
    %p112 = por %p110, %p111
    %s114 = sadd.s32 %s113, 1
    %p117 = scmp.eq.s32.totalorder %s16, 1
    %p118 = scmp.ne.s32.totalorder %s113, %s115
    %p119 = scmp.eq.s32.totalorder %s16, 0
    %p120 = por %p118, %p119
    %p121 = scmp.ne.s32.totalorder %s113, %s115
    %p122 = scmp.eq.s32.totalorder %s21, 1
    %p123 = por %p121, %p122
    %p124 = scmp.ne.s32.totalorder %s115, %s116
    %p125 = scmp.eq.s32.totalorder %s21, 0
    %p126 = por %p124, %p125
    %p127 = scmp.ne.s32.totalorder %s115, %s116
    %p128 = scmp.eq.s32.totalorder %s22, 1
    %p129 = por %p127, %p128
    %p131 = scmp.ne.s32.totalorder %s116, %s130
    %p132 = scmp.eq.s32.totalorder %s22, 0
    %p133 = por %p131, %p132
    %s134 = ssub.s32 %s23, %s35
    %s135 = ssub.s32 %s24, %s31
    %s136 = sor.u32 %s134, %s135
    %p137 = scmp.eq.s32.totalorder %s136, 0
    %s139 = sadd.s32 %s138, 1
    %s140 = scalar_select %p137, %s138, %s139
    %p143 = pneg %p137
    %p144 = scmp.eq.s32.totalorder %s16, 1
    %p145 = por %p143, %p144
    %p146 = scmp.ne.s32.totalorder %s138, %s141
    %p147 = scmp.eq.s32.totalorder %s16, 0
    %p148 = por %p146, %p147
    %p149 = scmp.ne.s32.totalorder %s138, %s141
    %p150 = scmp.eq.s32.totalorder %s21, 1
    %p151 = por %p149, %p150
    %p152 = scmp.ne.s32.totalorder %s141, %s142
    %p153 = scmp.eq.s32.totalorder %s21, 0
    %p154 = por %p152, %p153
    %p155 = scmp.ne.s32.totalorder %s141, %s142
    %p156 = scmp.eq.s32.totalorder %s22, 1
    %p157 = por %p155, %p156
    %p159 = scmp.ne.s32.totalorder %s142, %s158
    %p160 = scmp.eq.s32.totalorder %s22, 0
    %p161 = por %p159, %p160
    %s162 = ssub.s32 %s23, %s35
    %s163 = ssub.s32 %s24, %s31
    %s164 = sor.u32 %s162, %s163
    %p165 = scmp.eq.s32.totalorder %s164, 0
    %s167 = sadd.s32 %s166, 1
    %s168 = scalar_select %p165, %s166, %s167
    %p171 = pneg %p165
    %p172 = scmp.eq.s32.totalorder %s16, 1
    %p173 = por %p171, %p172
    %p174 = scmp.ne.s32.totalorder %s166, %s169
    %p175 = scmp.eq.s32.totalorder %s16, 0
    %p176 = por %p174, %p175
    %p177 = scmp.ne.s32.totalorder %s166, %s169
    %p178 = scmp.eq.s32.totalorder %s21, 1
    %p179 = por %p177, %p178
    %p180 = scmp.ne.s32.totalorder %s169, %s170
    %p181 = scmp.eq.s32.totalorder %s21, 0
    %p182 = por %p180, %p181
    %p183 = scmp.ne.s32.totalorder %s169, %s170
    %p184 = scmp.eq.s32.totalorder %s22, 1
    %p185 = por %p183, %p184
    %p187 = scmp.ne.s32.totalorder %s170, %s186
    %p188 = scmp.eq.s32.totalorder %s22, 0
    %p189 = por %p187, %p188
    %s190 = ssub.s32 %s23, %s35
    %p191 = scmp.eq.s32.totalorder %s190, 0
    %s193 = sadd.s32 %s192, 1
    %s194 = scalar_select %p191, %s192, %s193
    %p197 = pneg %p191
    %p198 = scmp.eq.s32.totalorder %s16, 1
    %p199 = por %p197, %p198
    %p200 = scmp.ne.s32.totalorder %s192, %s195
    %p201 = scmp.eq.s32.totalorder %s16, 0
    %p202 = por %p200, %p201
    %p203 = scmp.ne.s32.totalorder %s192, %s195
    %p204 = scmp.eq.s32.totalorder %s21, 1
    %p205 = por %p203, %p204
    %p206 = scmp.ne.s32.totalorder %s195, %s196
    %p207 = scmp.eq.s32.totalorder %s21, 0
    %p208 = por %p206, %p207
    %p209 = scmp.ne.s32.totalorder %s195, %s196
    %p210 = scmp.eq.s32.totalorder %s22, 1
    %p211 = por %p209, %p210
    %p213 = scmp.ne.s32.totalorder %s196, %s212
    %p214 = scmp.eq.s32.totalorder %s22, 0
    %p215 = por %p213, %p214
    %s216 = ssub.s32 %s23, %s35
    %p217 = scmp.eq.s32.totalorder %s216, 0
    %s219 = sadd.s32 %s218, 1
    %s220 = scalar_select %p217, %s218, %s219
    %p223 = pneg %p217
    %p224 = scmp.eq.s32.totalorder %s16, 1
    %p225 = por %p223, %p224
    %p226 = scmp.ne.s32.totalorder %s218, %s221
    %p227 = scmp.eq.s32.totalorder %s16, 0
    %p228 = por %p226, %p227
    %p229 = scmp.ne.s32.totalorder %s218, %s221
    %p230 = scmp.eq.s32.totalorder %s21, 1
    %p231 = por %p229, %p230
    %p232 = scmp.ne.s32.totalorder %s221, %s222
    %p233 = scmp.eq.s32.totalorder %s21, 0
    %p234 = por %p232, %p233
    %p235 = scmp.ne.s32.totalorder %s221, %s222
    %p236 = scmp.eq.s32.totalorder %s22, 1
    %p237 = por %p235, %p236
    %p239 = scmp.ne.s32.totalorder %s222, %s238
    %p240 = scmp.eq.s32.totalorder %s22, 0
    %p241 = por %p239, %p240
    %s242 = ssub.s32 %s23, %s35
    %p243 = scmp.eq.s32.totalorder %s242, 0
    %s245 = sadd.s32 %s244, 1
    %s246 = scalar_select %p243, %s244, %s245
    %p249 = pneg %p243
    %p250 = scmp.eq.s32.totalorder %s16, 1
    %p251 = por %p249, %p250
    %p252 = scmp.ne.s32.totalorder %s244, %s247
    %p253 = scmp.eq.s32.totalorder %s16, 0
    %p254 = por %p252, %p253
    %p255 = scmp.ne.s32.totalorder %s244, %s247
    %p256 = scmp.eq.s32.totalorder %s21, 1
    %p257 = por %p255, %p256
    %p258 = scmp.ne.s32.totalorder %s247, %s248
    %p259 = scmp.eq.s32.totalorder %s21, 0
    %p260 = por %p258, %p259
    %p261 = scmp.ne.s32.totalorder %s247, %s248
    %p262 = scmp.eq.s32.totalorder %s22, 1
    %p263 = por %p261, %p262
    %p265 = scmp.ne.s32.totalorder %s248, %s264
    %p266 = scmp.eq.s32.totalorder %s22, 0
    %p267 = por %p265, %p266
    %s268 = ssub.s32 %s23, %s35
    %p269 = scmp.eq.s32.totalorder %s268, 0
    %s271 = sadd.s32 %s270, 1
    %s272 = scalar_select %p269, %s270, %s271
    %p275 = pneg %p269
    %p276 = scmp.eq.s32.totalorder %s16, 1
    %p277 = por %p275, %p276
    %p278 = scmp.ne.s32.totalorder %s270, %s273
    %p279 = scmp.eq.s32.totalorder %s16, 0
    %p280 = por %p278, %p279
    %p281 = scmp.ne.s32.totalorder %s270, %s273
    %p282 = scmp.eq.s32.totalorder %s21, 1
    %p283 = por %p281, %p282
    %p284 = scmp.ne.s32.totalorder %s273, %s274
    %p285 = scmp.eq.s32.totalorder %s21, 0
    %p286 = por %p284, %p285
    %p287 = scmp.ne.s32.totalorder %s273, %s274
    %p288 = scmp.eq.s32.totalorder %s22, 1
    %p289 = por %p287, %p288
    %p291 = scmp.ne.s32.totalorder %s274, %s290
    %p292 = scmp.eq.s32.totalorder %s22, 0
    %p293 = por %p291, %p292
    %p294 = scmp.le.s32.totalorder 1, %s16
    %p295 = scmp.lt.s32.totalorder %s16, 3
    %p296 = pnand %p294, %p295
    %p297 = pneg %p296
    // Predicated region
    $region9: #{attention_block.3} parent=5 // pred_check
      _
    $region10: #{attention_block.3} parent=5 // pred_check_branch
      %299 = sbr.rel (%p296) target = $region12
    $region11: #{attention_block.3} parent=5 // pred_region
      %s300 = ssub.s32 %s16, 1
      // Predicated region
      $region13: #{attention_block.3} parent=11 // pred_check
        %p301 = pneg %p105
      $region14: #{attention_block.3} parent=11 // pred_check_branch
        %303 = sbr.rel (%p301) target = $region16
      $region15: #{attention_block.3} parent=11 // pred_region
        _
      $region16: #{attention_block.3} parent=11 // pred_fallthru
        _
      // Predicated region
      $region17: #{attention_block.3} parent=11 // pred_check
        %p304 = pneg %p126
      $region18: #{attention_block.3} parent=11 // pred_check_branch
        %306 = sbr.rel (%p304) target = $region20
      $region19: #{attention_block.3} parent=11 // pred_region
        _
      $region20: #{attention_block.3} parent=11 // pred_fallthru
        _
    $region12: #{attention_block.3} parent=5 // pred_fallthru
      _
    %p307 = scmp.lt.s32.totalorder %s16, 2
    // Predicated region
    $region21: #{attention_block.3} parent=5 // pred_check
      %p308 = pneg %p307
    $region22: #{attention_block.3} parent=5 // pred_check_branch
      %310 = sbr.rel (%p308) target = $region24
    $region23: #{attention_block.3} parent=5 // pred_region
      // Predicated region
      $region25: #{attention_block.3} parent=23 // pred_check
        %p311 = pneg %p50
      $region26: #{attention_block.3} parent=23 // pred_check_branch
        %313 = sbr.rel (%p311) target = $region28
      $region27: #{attention_block.3} parent=23 // pred_region
        %s314 = smul.u32 32, %s24
        %p315 = scmp.lt.s32.totalorder %s23, 1
        %s316 = scalar_select %p315, %s23, 1
        %p317 = scmp.lt.s32.totalorder %s314, 31
        %s318 = scalar_select %p317, %s314, 31
        %s319 = smul.addr %s316, 32
        %s320 = sadd.s32 %s318, %s319
        %s321 = smul.addr %s320, 8
        %s322 = scalar_lea.vmem %s0, %s321
        %s323 = smul.u32 32, %s24
      $region28: #{attention_block.3} parent=23 // pred_fallthru
        _
      // Predicated region
      $region29: #{attention_block.3} parent=23 // pred_check
        %p324 = pneg %p78
      $region30: #{attention_block.3} parent=23 // pred_check_branch
        %326 = sbr.rel (%p324) target = $region32
      $region31: #{attention_block.3} parent=23 // pred_region
        %s327 = smul.u32 32, %s24
        %p328 = scmp.lt.s32.totalorder %s23, 1
        %s329 = scalar_select %p328, %s23, 1
        %p330 = scmp.lt.s32.totalorder %s327, 31
        %s331 = scalar_select %p330, %s327, 31
        %s332 = smul.addr %s329, 32
        %s333 = sadd.s32 %s331, %s332
        %s334 = smul.addr %s333, 8
        %s335 = scalar_lea.vmem %s1, %s334
        %s336 = smul.u32 32, %s24
      $region32: #{attention_block.3} parent=23 // pred_fallthru
        _
    $region24: #{attention_block.3} parent=5 // pred_fallthru
      _
    %p337 = scmp.le.s32.totalorder 1, %s16
    %p338 = scmp.lt.s32.totalorder %s16, 3
    %p339 = pnand %p337, %p338
    %p340 = pneg %p339
    // Predicated region
    $region33: #{attention_block.3} parent=5 // pred_check
      _
    $region34: #{attention_block.3} parent=5 // pred_check_branch
      %342 = sbr.rel (%p339) target = $region36
    $region35: #{attention_block.3} parent=5 // pred_region
      %s343 = ssub.s32 %s16, 1
      %s344 = smul.u32 32, %s26
      %p345 = scmp.lt.s32.totalorder %s25, 1
      %s346 = scalar_select %p345, %s25, 1
      %p347 = scmp.lt.s32.totalorder %s344, 31
      %s348 = scalar_select %p347, %s344, 31
      %s349 = smul.addr %s346, 32
      %s350 = sadd.s32 %s348, %s349
      %s351 = smul.addr %s350, 8
      %s352 = scalar_lea.vmem %s0, %s351
      %p353 = pneg %p56
      %p354 = pneg %p53
      %s355 = smul.u32 32, %s26
      %p356 = scmp.lt.s32.totalorder %s25, 1
      %s357 = scalar_select %p356, %s25, 1
      %p358 = scmp.lt.s32.totalorder %s355, 31
      %s359 = scalar_select %p358, %s355, 31
      %s360 = smul.addr %s357, 32
      %s361 = sadd.s32 %s359, %s360
      %s362 = smul.addr %s361, 8
      %s363 = scalar_lea.vmem %s1, %s362
      %p364 = pneg %p84
      %p365 = pneg %p81
      %p366 = pneg %p105
      %p367 = pneg %p102
      %p368 = pneg %p126
      %p369 = pneg %p123
      %p370 = pneg %p154
      %p371 = pneg %p151
      %s372 = smul.u32 32, %s26
      %p373 = scmp.lt.s32.totalorder %s25, 1
      %s374 = scalar_select %p373, %s25, 1
      %p375 = scmp.lt.s32.totalorder %s372, 31
      %s376 = scalar_select %p375, %s372, 31
      %s377 = smul.addr %s374, 32
      %s378 = sadd.s32 %s376, %s377
      %s379 = smul.addr %s378, 2
      %s380 = scalar_lea.vmem %s4, %s379
      %p381 = pneg %p182
      %p382 = pneg %p179
      %s383 = smul.u32 32, %s26
      %p384 = scmp.lt.s32.totalorder %s25, 1
      %s385 = scalar_select %p384, %s25, 1
      %p386 = scmp.lt.s32.totalorder %s383, 31
      %s387 = scalar_select %p386, %s383, 31
      %s388 = smul.addr %s385, 32
      %s389 = sadd.s32 %s387, %s388
      %s390 = smul.addr %s389, 2
      %s391 = scalar_lea.vmem %s5, %s390
      %p392 = pneg %p208
      %p393 = pneg %p205
      %p394 = scmp.lt.s32.totalorder %s25, 1
      %s395 = scalar_select %p394, %s25, 1
      %s396 = smul.addr %s395, 4
      %s397 = scalar_lea.vmem %s6, %s396
      %p398 = pneg %p234
      %p399 = pneg %p231
      %p400 = scmp.lt.s32.totalorder %s25, 1
      %s401 = scalar_select %p400, %s25, 1
      %s402 = smul.addr %s401, 4
      %s403 = scalar_lea.vmem %s7, %s402
      %p404 = pneg %p260
      %p405 = pneg %p257
      %p406 = scmp.lt.s32.totalorder %s25, 1
      %s407 = scalar_select %p406, %s25, 1
      %s408 = smul.addr %s407, 4
      %s409 = scalar_lea.vmem %s8, %s408
      %p410 = pneg %p286
      %p411 = pneg %p283
      %p412 = scmp.lt.s32.totalorder %s25, 1
      %s413 = scalar_select %p412, %s25, 1
      %s414 = smul.addr %s413, 4
      %s415 = scalar_lea.vmem %s9, %s414
      %s416 = smul.u32 32, %s26
      %p417 = scmp.lt.s32.totalorder %s25, 1
      %s418 = scalar_select %p417, %s25, 1
      %p419 = scmp.lt.s32.totalorder %s416, 31
      %s420 = scalar_select %p419, %s416, 31
      %s421 = smul.addr %s418, 32
      %s422 = sadd.s32 %s420, %s421
      %s423 = smul.addr %s422, 8
      %s424 = scalar_lea.vmem %s0, %s423
      %s425 = smul.u32 32, %s26
      %s426 = smul.u32 32, %s26
      %p427 = scmp.lt.s32.totalorder %s25, 1
      %s428 = scalar_select %p427, %s25, 1
      %p429 = scmp.lt.s32.totalorder %s426, 31
      %s430 = scalar_select %p429, %s426, 31
      %s431 = smul.addr %s428, 32
      %s432 = sadd.s32 %s430, %s431
      %s433 = smul.addr %s432, 8
      %s434 = scalar_lea.vmem %s1, %s433
      %s435 = smul.u32 32, %s26
      %s436 = smul.u32 32, %s26
      %p437 = scmp.lt.s32.totalorder %s25, 1
      %s438 = scalar_select %p437, %s25, 1
      %p439 = scmp.lt.s32.totalorder %s436, 31
      %s440 = scalar_select %p439, %s436, 31
      %s441 = smul.addr %s438, 32
      %s442 = sadd.s32 %s440, %s441
      %s443 = smul.addr %s442, 2
      %s444 = scalar_lea.vmem %s4, %s443
      %s445 = smul.u32 32, %s26
      %s446 = smul.u32 32, %s26
      %p447 = scmp.lt.s32.totalorder %s25, 1
      %s448 = scalar_select %p447, %s25, 1
      %p449 = scmp.lt.s32.totalorder %s446, 31
      %s450 = scalar_select %p449, %s446, 31
      %s451 = smul.addr %s448, 32
      %s452 = sadd.s32 %s450, %s451
      %s453 = smul.addr %s452, 2
      %s454 = scalar_lea.vmem %s5, %s453
      %s455 = smul.u32 32, %s26
      %p456 = scmp.lt.s32.totalorder %s25, 1
      %s457 = scalar_select %p456, %s25, 1
      %s458 = smul.addr %s457, 4
      %s459 = scalar_lea.vmem %s6, %s458
      %p460 = scmp.lt.s32.totalorder %s25, 1
      %s461 = scalar_select %p460, %s25, 1
      %s462 = smul.addr %s461, 4
      %s463 = scalar_lea.vmem %s7, %s462
      %p464 = scmp.lt.s32.totalorder %s25, 1
      %s465 = scalar_select %p464, %s25, 1
      %s466 = smul.addr %s465, 4
      %s467 = scalar_lea.vmem %s8, %s466
      %p468 = scmp.lt.s32.totalorder %s25, 1
      %s469 = scalar_select %p468, %s25, 1
      %s470 = smul.addr %s469, 4
      %s471 = scalar_lea.vmem %s9, %s470
      %p472 = scmp.eq.s32.totalorder %s26, 0
      // Predicated region
      $region37: #{attention_block.3} parent=35 // pred_check
        %p473 = pneg %p472
      $region38: #{attention_block.3} parent=35 // pred_check_branch
        %475 = sbr.rel (%p473) target = $region40
      $region39: #{attention_block.3} parent=35 // pred_region
        %476 = vst [vmem:[#allocation2] sm:$0xff] 0.0
        %477 = vst [vmem:[#allocation2 + $0x8] sm:$0xff] 0.0
        %478 = vst [vmem:[#allocation2 + $0x10] sm:$0xff] 0.0
        %479 = vst [vmem:[#allocation2 + $0x18] sm:$0xff] 0.0
        %480 = vst [vmem:[#allocation2 + $0x20] sm:$0xff] 0.0
        %481 = vst [vmem:[#allocation2 + $0x28] sm:$0xff] 0.0
        %482 = vst [vmem:[#allocation2 + $0x30] sm:$0xff] 0.0
        %483 = vst [vmem:[#allocation2 + $0x38] sm:$0xff] 0.0
        %484 = vst [vmem:[#allocation2 + $0x40] sm:$0xff] 0.0
        %485 = vst [vmem:[#allocation2 + $0x48] sm:$0xff] 0.0
        %486 = vst [vmem:[#allocation2 + $0x50] sm:$0xff] 0.0
        %487 = vst [vmem:[#allocation2 + $0x58] sm:$0xff] 0.0
        %488 = vst [vmem:[#allocation2 + $0x60] sm:$0xff] 0.0
        %489 = vst [vmem:[#allocation2 + $0x68] sm:$0xff] 0.0
        %490 = vst [vmem:[#allocation2 + $0x70] sm:$0xff] 0.0
        %491 = vst [vmem:[#allocation2 + $0x78] sm:$0xff] 0.0
        %492 = vst [vmem:[#allocation3] sm:$0xff] 0.0
        %493 = vst [vmem:[#allocation3 + $0x8] sm:$0xff] 0.0
        %494 = vst [vmem:[#allocation3 + $0x10] sm:$0xff] 0.0
        %495 = vst [vmem:[#allocation3 + $0x18] sm:$0xff] 0.0
        %496 = vst [vmem:[#allocation3 + $0x20] sm:$0xff] 0.0
        %497 = vst [vmem:[#allocation3 + $0x28] sm:$0xff] 0.0
        %498 = vst [vmem:[#allocation3 + $0x30] sm:$0xff] 0.0
        %499 = vst [vmem:[#allocation3 + $0x38] sm:$0xff] 0.0
        %500 = vst [vmem:[#allocation3 + $0x40] sm:$0xff] 0.0
        %501 = vst [vmem:[#allocation3 + $0x48] sm:$0xff] 0.0
        %502 = vst [vmem:[#allocation3 + $0x50] sm:$0xff] 0.0
        %503 = vst [vmem:[#allocation3 + $0x58] sm:$0xff] 0.0
        %504 = vst [vmem:[#allocation3 + $0x60] sm:$0xff] 0.0
        %505 = vst [vmem:[#allocation3 + $0x68] sm:$0xff] 0.0
        %506 = vst [vmem:[#allocation3 + $0x70] sm:$0xff] 0.0
        %507 = vst [vmem:[#allocation3 + $0x78] sm:$0xff] 0.0
        %508 = vst [vmem:[#allocation4] sm:$0xff] 0.0
        %509 = vst [vmem:[#allocation4 + $0x8] sm:$0xff] 0.0
        %510 = vst [vmem:[#allocation4 + $0x10] sm:$0xff] 0.0
        %511 = vst [vmem:[#allocation4 + $0x18] sm:$0xff] 0.0
        %512 = vst [vmem:[#allocation4 + $0x20] sm:$0xff] 0.0
        %513 = vst [vmem:[#allocation4 + $0x28] sm:$0xff] 0.0
        %514 = vst [vmem:[#allocation4 + $0x30] sm:$0xff] 0.0
        %515 = vst [vmem:[#allocation4 + $0x38] sm:$0xff] 0.0
        %516 = vst [vmem:[#allocation4 + $0x40] sm:$0xff] 0.0
        %517 = vst [vmem:[#allocation4 + $0x48] sm:$0xff] 0.0
        %518 = vst [vmem:[#allocation4 + $0x50] sm:$0xff] 0.0
        %519 = vst [vmem:[#allocation4 + $0x58] sm:$0xff] 0.0
        %520 = vst [vmem:[#allocation4 + $0x60] sm:$0xff] 0.0
        %521 = vst [vmem:[#allocation4 + $0x68] sm:$0xff] 0.0
        %522 = vst [vmem:[#allocation4 + $0x70] sm:$0xff] 0.0
        %523 = vst [vmem:[#allocation4 + $0x78] sm:$0xff] 0.0
        %524 = vst [vmem:[#allocation5] sm:$0xff] 0.0
        %525 = vst [vmem:[#allocation5 + $0x8] sm:$0xff] 0.0
        %526 = vst [vmem:[#allocation5 + $0x10] sm:$0xff] 0.0
        %527 = vst [vmem:[#allocation5 + $0x18] sm:$0xff] 0.0
        %528 = vst [vmem:[#allocation5 + $0x20] sm:$0xff] 0.0
        %529 = vst [vmem:[#allocation5 + $0x28] sm:$0xff] 0.0
        %530 = vst [vmem:[#allocation5 + $0x30] sm:$0xff] 0.0
        %531 = vst [vmem:[#allocation5 + $0x38] sm:$0xff] 0.0
        %532 = vst [vmem:[#allocation5 + $0x40] sm:$0xff] 0.0
        %533 = vst [vmem:[#allocation5 + $0x48] sm:$0xff] 0.0
        %534 = vst [vmem:[#allocation5 + $0x50] sm:$0xff] 0.0
        %535 = vst [vmem:[#allocation5 + $0x58] sm:$0xff] 0.0
        %536 = vst [vmem:[#allocation5 + $0x60] sm:$0xff] 0.0
        %537 = vst [vmem:[#allocation5 + $0x68] sm:$0xff] 0.0
        %538 = vst [vmem:[#allocation5 + $0x70] sm:$0xff] 0.0
        %539 = vst [vmem:[#allocation5 + $0x78] sm:$0xff] 0.0
      $region40: #{attention_block.3} parent=35 // pred_fallthru
        _
      %v540 = vld [vmem:[%s2] sm:$0xf]
      %v541 = vld [vmem:[%s424] sm:$0xff]
      %v542 = vld [vmem:[%s424 + $0x8] sm:$0xff]
      %v543 = vld [vmem:[%s424 + $0x10] sm:$0xff]
      %v544 = vld [vmem:[%s424 + $0x18] sm:$0xff]
      %v545 = vld [vmem:[%s424 + $0x20] sm:$0xff]
      %v546 = vld [vmem:[%s424 + $0x28] sm:$0xff]
      %v547 = vld [vmem:[%s424 + $0x30] sm:$0xff]
      %v548 = vld [vmem:[%s424 + $0x38] sm:$0xff]
      %v549 = vld [vmem:[%s424 + $0x40] sm:$0xff]
      %v550 = vld [vmem:[%s424 + $0x48] sm:$0xff]
      %v551 = vld [vmem:[%s424 + $0x50] sm:$0xff]
      %v552 = vld [vmem:[%s424 + $0x58] sm:$0xff]
      %v553 = vld [vmem:[%s424 + $0x60] sm:$0xff]
      %v554 = vld [vmem:[%s424 + $0x68] sm:$0xff]
      %v555 = vld [vmem:[%s424 + $0x70] sm:$0xff]
      %v556 = vld [vmem:[%s424 + $0x78] sm:$0xff]
      %v557 = vld [vmem:[%s424 + $0x80] sm:$0xff]
      %v558 = vld [vmem:[%s424 + $0x88] sm:$0xff]
      %v559 = vld [vmem:[%s424 + $0x90] sm:$0xff]
      %v560 = vld [vmem:[%s424 + $0x98] sm:$0xff]
      %v561 = vld [vmem:[%s424 + $0xa0] sm:$0xff]
      %v562 = vld [vmem:[%s424 + $0xa8] sm:$0xff]
      %v563 = vld [vmem:[%s424 + $0xb0] sm:$0xff]
      %v564 = vld [vmem:[%s424 + $0xb8] sm:$0xff]
      %v565 = vld [vmem:[%s424 + $0xc0] sm:$0xff]
      %v566 = vld [vmem:[%s424 + $0xc8] sm:$0xff]
      %v567 = vld [vmem:[%s424 + $0xd0] sm:$0xff]
      %v568 = vld [vmem:[%s424 + $0xd8] sm:$0xff]
      %v569 = vld [vmem:[%s424 + $0xe0] sm:$0xff]
      %v570 = vld [vmem:[%s424 + $0xe8] sm:$0xff]
      %v571 = vld [vmem:[%s424 + $0xf0] sm:$0xff]
      %v572 = vld [vmem:[%s424 + $0xf8] sm:$0xff]
      %vm573 = vcmask 64512
      %v575 = vsel %vm573, %v540, 0
      %577 = vmatpush.msra.mxu0 0.0
      %578 = vmatpush.msra.mxu0 0.0
      %579 = vmatpush.msra.mxu0 0.0
      %580 = vmatpush.msra.mxu0 0.0
      %581 = vmatpush.msra.mxu0 0.0
      %582 = vmatpush.msra.mxu0 0.0
      %583 = vmatpush.msra.mxu0 0.0
      %584 = vmatpush.msra.mxu0 0.0
      %585 = vmatpush.msra.mxu0 0.0
      %586 = vmatpush.msra.mxu0 0.0
      %587 = vmatpush.msra.mxu0 0.0
      %588 = vmatpush.msra.mxu0 0.0
      %589 = vmatpush.msra.mxu0 0.0
      %590 = vmatpush.msra.mxu0 0.0
      %591 = vmatpush.msra.mxu0 0.0
      %592 = vmatpush.msra.mxu0 %v541
      %593 = vmatmul.f32.gmra.mxu0 %v575
      %v594 = vpop.f32.mrf.mxu0
      %v595 = vadd.f32 0.0, %v594
      %596 = vdwg.mxu0
      %597 = vmatpush.msra.mxu0 0.0
      %598 = vmatpush.msra.mxu0 0.0
      %599 = vmatpush.msra.mxu0 0.0
      %600 = vmatpush.msra.mxu0 0.0
      %601 = vmatpush.msra.mxu0 0.0
      %602 = vmatpush.msra.mxu0 0.0
      %603 = vmatpush.msra.mxu0 0.0
      %604 = vmatpush.msra.mxu0 0.0
      %605 = vmatpush.msra.mxu0 0.0
      %606 = vmatpush.msra.mxu0 0.0
      %607 = vmatpush.msra.mxu0 0.0
      %608 = vmatpush.msra.mxu0 0.0
      %609 = vmatpush.msra.mxu0 0.0
      %610 = vmatpush.msra.mxu0 0.0
      %611 = vmatpush.msra.mxu0 0.0
      %612 = vmatpush.msra.mxu0 %v542
      %613 = vmatmul.f32.gmra.mxu0 %v575
      %v614 = vpop.f32.mrf.mxu0
      %v615 = vadd.f32 0.0, %v614
      %616 = vdwg.mxu0
      %617 = vmatpush.msra.mxu0 0.0
      %618 = vmatpush.msra.mxu0 0.0
      %619 = vmatpush.msra.mxu0 0.0
      %620 = vmatpush.msra.mxu0 0.0
      %621 = vmatpush.msra.mxu0 0.0
      %622 = vmatpush.msra.mxu0 0.0
      %623 = vmatpush.msra.mxu0 0.0
      %624 = vmatpush.msra.mxu0 0.0
      %625 = vmatpush.msra.mxu0 0.0
      %626 = vmatpush.msra.mxu0 0.0
      %627 = vmatpush.msra.mxu0 0.0
      %628 = vmatpush.msra.mxu0 0.0
      %629 = vmatpush.msra.mxu0 0.0
      %630 = vmatpush.msra.mxu0 0.0
      %631 = vmatpush.msra.mxu0 0.0
      %632 = vmatpush.msra.mxu0 %v543
      %633 = vmatmul.f32.gmra.mxu0 %v575
      %v634 = vpop.f32.mrf.mxu0
      %v635 = vadd.f32 0.0, %v634
      %636 = vdwg.mxu0
      %637 = vmatpush.msra.mxu0 0.0
      %638 = vmatpush.msra.mxu0 0.0
      %639 = vmatpush.msra.mxu0 0.0
      %640 = vmatpush.msra.mxu0 0.0
      %641 = vmatpush.msra.mxu0 0.0
      %642 = vmatpush.msra.mxu0 0.0
      %643 = vmatpush.msra.mxu0 0.0
      %644 = vmatpush.msra.mxu0 0.0
      %645 = vmatpush.msra.mxu0 0.0
      %646 = vmatpush.msra.mxu0 0.0
      %647 = vmatpush.msra.mxu0 0.0
      %648 = vmatpush.msra.mxu0 0.0
      %649 = vmatpush.msra.mxu0 0.0
      %650 = vmatpush.msra.mxu0 0.0
      %651 = vmatpush.msra.mxu0 0.0
      %652 = vmatpush.msra.mxu0 %v544
      %653 = vmatmul.f32.gmra.mxu0 %v575
      %v654 = vpop.f32.mrf.mxu0
      %v655 = vadd.f32 0.0, %v654
      %656 = vdwg.mxu0
      %657 = vmatpush.msra.mxu0 0.0
      %658 = vmatpush.msra.mxu0 0.0
      %659 = vmatpush.msra.mxu0 0.0
      %660 = vmatpush.msra.mxu0 0.0
      %661 = vmatpush.msra.mxu0 0.0
      %662 = vmatpush.msra.mxu0 0.0
      %663 = vmatpush.msra.mxu0 0.0
      %664 = vmatpush.msra.mxu0 0.0
      %665 = vmatpush.msra.mxu0 0.0
      %666 = vmatpush.msra.mxu0 0.0
      %667 = vmatpush.msra.mxu0 0.0
      %668 = vmatpush.msra.mxu0 0.0
      %669 = vmatpush.msra.mxu0 0.0
      %670 = vmatpush.msra.mxu0 0.0
      %671 = vmatpush.msra.mxu0 0.0
      %672 = vmatpush.msra.mxu0 %v545
      %673 = vmatmul.f32.gmra.mxu0 %v575
      %v674 = vpop.f32.mrf.mxu0
      %v675 = vadd.f32 0.0, %v674
      %676 = vdwg.mxu0
      %677 = vmatpush.msra.mxu0 0.0
      %678 = vmatpush.msra.mxu0 0.0
      %679 = vmatpush.msra.mxu0 0.0
      %680 = vmatpush.msra.mxu0 0.0
      %681 = vmatpush.msra.mxu0 0.0
      %682 = vmatpush.msra.mxu0 0.0
      %683 = vmatpush.msra.mxu0 0.0
      %684 = vmatpush.msra.mxu0 0.0
      %685 = vmatpush.msra.mxu0 0.0
      %686 = vmatpush.msra.mxu0 0.0
      %687 = vmatpush.msra.mxu0 0.0
      %688 = vmatpush.msra.mxu0 0.0
      %689 = vmatpush.msra.mxu0 0.0
      %690 = vmatpush.msra.mxu0 0.0
      %691 = vmatpush.msra.mxu0 0.0
      %692 = vmatpush.msra.mxu0 %v546
      %693 = vmatmul.f32.gmra.mxu0 %v575
      %v694 = vpop.f32.mrf.mxu0
      %v695 = vadd.f32 0.0, %v694
      %696 = vdwg.mxu0
      %697 = vmatpush.msra.mxu0 0.0
      %698 = vmatpush.msra.mxu0 0.0
      %699 = vmatpush.msra.mxu0 0.0
      %700 = vmatpush.msra.mxu0 0.0
      %701 = vmatpush.msra.mxu0 0.0
      %702 = vmatpush.msra.mxu0 0.0
      %703 = vmatpush.msra.mxu0 0.0
      %704 = vmatpush.msra.mxu0 0.0
      %705 = vmatpush.msra.mxu0 0.0
      %706 = vmatpush.msra.mxu0 0.0
      %707 = vmatpush.msra.mxu0 0.0
      %708 = vmatpush.msra.mxu0 0.0
      %709 = vmatpush.msra.mxu0 0.0
      %710 = vmatpush.msra.mxu0 0.0
      %711 = vmatpush.msra.mxu0 0.0
      %712 = vmatpush.msra.mxu0 %v547
      %713 = vmatmul.f32.gmra.mxu0 %v575
      %v714 = vpop.f32.mrf.mxu0
      %v715 = vadd.f32 0.0, %v714
      %716 = vdwg.mxu0
      %717 = vmatpush.msra.mxu0 0.0
      %718 = vmatpush.msra.mxu0 0.0
      %719 = vmatpush.msra.mxu0 0.0
      %720 = vmatpush.msra.mxu0 0.0
      %721 = vmatpush.msra.mxu0 0.0
      %722 = vmatpush.msra.mxu0 0.0
      %723 = vmatpush.msra.mxu0 0.0
      %724 = vmatpush.msra.mxu0 0.0
      %725 = vmatpush.msra.mxu0 0.0
      %726 = vmatpush.msra.mxu0 0.0
      %727 = vmatpush.msra.mxu0 0.0
      %728 = vmatpush.msra.mxu0 0.0
      %729 = vmatpush.msra.mxu0 0.0
      %730 = vmatpush.msra.mxu0 0.0
      %731 = vmatpush.msra.mxu0 0.0
      %732 = vmatpush.msra.mxu0 %v548
      %733 = vmatmul.f32.gmra.mxu0 %v575
      %v734 = vpop.f32.mrf.mxu0
      %v735 = vadd.f32 0.0, %v734
      %736 = vdwg.mxu0
      %737 = vmatpush.msra.mxu0 0.0
      %738 = vmatpush.msra.mxu0 0.0
      %739 = vmatpush.msra.mxu0 0.0
      %740 = vmatpush.msra.mxu0 0.0
      %741 = vmatpush.msra.mxu0 0.0
      %742 = vmatpush.msra.mxu0 0.0
      %743 = vmatpush.msra.mxu0 0.0
      %744 = vmatpush.msra.mxu0 0.0
      %745 = vmatpush.msra.mxu0 0.0
      %746 = vmatpush.msra.mxu0 0.0
      %747 = vmatpush.msra.mxu0 0.0
      %748 = vmatpush.msra.mxu0 0.0
      %749 = vmatpush.msra.mxu0 0.0
      %750 = vmatpush.msra.mxu0 0.0
      %751 = vmatpush.msra.mxu0 0.0
      %752 = vmatpush.msra.mxu0 %v549
      %753 = vmatmul.f32.gmra.mxu0 %v575
      %v754 = vpop.f32.mrf.mxu0
      %v755 = vadd.f32 0.0, %v754
      %756 = vdwg.mxu0
      %757 = vmatpush.msra.mxu0 0.0
      %758 = vmatpush.msra.mxu0 0.0
      %759 = vmatpush.msra.mxu0 0.0
      %760 = vmatpush.msra.mxu0 0.0
      %761 = vmatpush.msra.mxu0 0.0
      %762 = vmatpush.msra.mxu0 0.0
      %763 = vmatpush.msra.mxu0 0.0
      %764 = vmatpush.msra.mxu0 0.0
      %765 = vmatpush.msra.mxu0 0.0
      %766 = vmatpush.msra.mxu0 0.0
      %767 = vmatpush.msra.mxu0 0.0
      %768 = vmatpush.msra.mxu0 0.0
      %769 = vmatpush.msra.mxu0 0.0
      %770 = vmatpush.msra.mxu0 0.0
      %771 = vmatpush.msra.mxu0 0.0
      %772 = vmatpush.msra.mxu0 %v550
      %773 = vmatmul.f32.gmra.mxu0 %v575
      %v774 = vpop.f32.mrf.mxu0
      %v775 = vadd.f32 0.0, %v774
      %776 = vdwg.mxu0
      %777 = vmatpush.msra.mxu0 0.0
      %778 = vmatpush.msra.mxu0 0.0
      %779 = vmatpush.msra.mxu0 0.0
      %780 = vmatpush.msra.mxu0 0.0
      %781 = vmatpush.msra.mxu0 0.0
      %782 = vmatpush.msra.mxu0 0.0
      %783 = vmatpush.msra.mxu0 0.0
      %784 = vmatpush.msra.mxu0 0.0
      %785 = vmatpush.msra.mxu0 0.0
      %786 = vmatpush.msra.mxu0 0.0
      %787 = vmatpush.msra.mxu0 0.0
      %788 = vmatpush.msra.mxu0 0.0
      %789 = vmatpush.msra.mxu0 0.0
      %790 = vmatpush.msra.mxu0 0.0
      %791 = vmatpush.msra.mxu0 0.0
      %792 = vmatpush.msra.mxu0 %v551
      %793 = vmatmul.f32.gmra.mxu0 %v575
      %v794 = vpop.f32.mrf.mxu0
      %v795 = vadd.f32 0.0, %v794
      %796 = vdwg.mxu0
      %797 = vmatpush.msra.mxu0 0.0
      %798 = vmatpush.msra.mxu0 0.0
      %799 = vmatpush.msra.mxu0 0.0
      %800 = vmatpush.msra.mxu0 0.0
      %801 = vmatpush.msra.mxu0 0.0
      %802 = vmatpush.msra.mxu0 0.0
      %803 = vmatpush.msra.mxu0 0.0
      %804 = vmatpush.msra.mxu0 0.0
      %805 = vmatpush.msra.mxu0 0.0
      %806 = vmatpush.msra.mxu0 0.0
      %807 = vmatpush.msra.mxu0 0.0
      %808 = vmatpush.msra.mxu0 0.0
      %809 = vmatpush.msra.mxu0 0.0
      %810 = vmatpush.msra.mxu0 0.0
      %811 = vmatpush.msra.mxu0 0.0
      %812 = vmatpush.msra.mxu0 %v552
      %813 = vmatmul.f32.gmra.mxu0 %v575
      %v814 = vpop.f32.mrf.mxu0
      %v815 = vadd.f32 0.0, %v814
      %816 = vdwg.mxu0
      %817 = vmatpush.msra.mxu0 0.0
      %818 = vmatpush.msra.mxu0 0.0
      %819 = vmatpush.msra.mxu0 0.0
      %820 = vmatpush.msra.mxu0 0.0
      %821 = vmatpush.msra.mxu0 0.0
      %822 = vmatpush.msra.mxu0 0.0
      %823 = vmatpush.msra.mxu0 0.0
      %824 = vmatpush.msra.mxu0 0.0
      %825 = vmatpush.msra.mxu0 0.0
      %826 = vmatpush.msra.mxu0 0.0
      %827 = vmatpush.msra.mxu0 0.0
      %828 = vmatpush.msra.mxu0 0.0
      %829 = vmatpush.msra.mxu0 0.0
      %830 = vmatpush.msra.mxu0 0.0
      %831 = vmatpush.msra.mxu0 0.0
      %832 = vmatpush.msra.mxu0 %v553
      %833 = vmatmul.f32.gmra.mxu0 %v575
      %v834 = vpop.f32.mrf.mxu0
      %v835 = vadd.f32 0.0, %v834
      %836 = vdwg.mxu0
      %837 = vmatpush.msra.mxu0 0.0
      %838 = vmatpush.msra.mxu0 0.0
      %839 = vmatpush.msra.mxu0 0.0
      %840 = vmatpush.msra.mxu0 0.0
      %841 = vmatpush.msra.mxu0 0.0
      %842 = vmatpush.msra.mxu0 0.0
      %843 = vmatpush.msra.mxu0 0.0
      %844 = vmatpush.msra.mxu0 0.0
      %845 = vmatpush.msra.mxu0 0.0
      %846 = vmatpush.msra.mxu0 0.0
      %847 = vmatpush.msra.mxu0 0.0
      %848 = vmatpush.msra.mxu0 0.0
      %849 = vmatpush.msra.mxu0 0.0
      %850 = vmatpush.msra.mxu0 0.0
      %851 = vmatpush.msra.mxu0 0.0
      %852 = vmatpush.msra.mxu0 %v554
      %853 = vmatmul.f32.gmra.mxu0 %v575
      %v854 = vpop.f32.mrf.mxu0
      %v855 = vadd.f32 0.0, %v854
      %856 = vdwg.mxu0
      %857 = vmatpush.msra.mxu0 0.0
      %858 = vmatpush.msra.mxu0 0.0
      %859 = vmatpush.msra.mxu0 0.0
      %860 = vmatpush.msra.mxu0 0.0
      %861 = vmatpush.msra.mxu0 0.0
      %862 = vmatpush.msra.mxu0 0.0
      %863 = vmatpush.msra.mxu0 0.0
      %864 = vmatpush.msra.mxu0 0.0
      %865 = vmatpush.msra.mxu0 0.0
      %866 = vmatpush.msra.mxu0 0.0
      %867 = vmatpush.msra.mxu0 0.0
      %868 = vmatpush.msra.mxu0 0.0
      %869 = vmatpush.msra.mxu0 0.0
      %870 = vmatpush.msra.mxu0 0.0
      %871 = vmatpush.msra.mxu0 0.0
      %872 = vmatpush.msra.mxu0 %v555
      %873 = vmatmul.f32.gmra.mxu0 %v575
      %v874 = vpop.f32.mrf.mxu0
      %v875 = vadd.f32 0.0, %v874
      %876 = vdwg.mxu0
      %877 = vmatpush.msra.mxu0 0.0
      %878 = vmatpush.msra.mxu0 0.0
      %879 = vmatpush.msra.mxu0 0.0
      %880 = vmatpush.msra.mxu0 0.0
      %881 = vmatpush.msra.mxu0 0.0
      %882 = vmatpush.msra.mxu0 0.0
      %883 = vmatpush.msra.mxu0 0.0
      %884 = vmatpush.msra.mxu0 0.0
      %885 = vmatpush.msra.mxu0 0.0
      %886 = vmatpush.msra.mxu0 0.0
      %887 = vmatpush.msra.mxu0 0.0
      %888 = vmatpush.msra.mxu0 0.0
      %889 = vmatpush.msra.mxu0 0.0
      %890 = vmatpush.msra.mxu0 0.0
      %891 = vmatpush.msra.mxu0 0.0
      %892 = vmatpush.msra.mxu0 %v556
      %893 = vmatmul.f32.gmra.mxu0 %v575
      %v894 = vpop.f32.mrf.mxu0
      %v895 = vadd.f32 0.0, %v894
      %896 = vdwg.mxu0
      %897 = vmatpush.msra.mxu0 0.0
      %898 = vmatpush.msra.mxu0 0.0
      %899 = vmatpush.msra.mxu0 0.0
      %900 = vmatpush.msra.mxu0 0.0
      %901 = vmatpush.msra.mxu0 0.0
      %902 = vmatpush.msra.mxu0 0.0
      %903 = vmatpush.msra.mxu0 0.0
      %904 = vmatpush.msra.mxu0 0.0
      %905 = vmatpush.msra.mxu0 0.0
      %906 = vmatpush.msra.mxu0 0.0
      %907 = vmatpush.msra.mxu0 0.0
      %908 = vmatpush.msra.mxu0 0.0
      %909 = vmatpush.msra.mxu0 0.0
      %910 = vmatpush.msra.mxu0 0.0
      %911 = vmatpush.msra.mxu0 0.0
      %912 = vmatpush.msra.mxu0 %v557
      %913 = vmatmul.f32.gmra.mxu0 %v575
      %v914 = vpop.f32.mrf.mxu0
      %v915 = vadd.f32 0.0, %v914
      %916 = vdwg.mxu0
      %917 = vmatpush.msra.mxu0 0.0
      %918 = vmatpush.msra.mxu0 0.0
      %919 = vmatpush.msra.mxu0 0.0
      %920 = vmatpush.msra.mxu0 0.0
      %921 = vmatpush.msra.mxu0 0.0
      %922 = vmatpush.msra.mxu0 0.0
      %923 = vmatpush.msra.mxu0 0.0
      %924 = vmatpush.msra.mxu0 0.0
      %925 = vmatpush.msra.mxu0 0.0
      %926 = vmatpush.msra.mxu0 0.0
      %927 = vmatpush.msra.mxu0 0.0
      %928 = vmatpush.msra.mxu0 0.0
      %929 = vmatpush.msra.mxu0 0.0
      %930 = vmatpush.msra.mxu0 0.0
      %931 = vmatpush.msra.mxu0 0.0
      %932 = vmatpush.msra.mxu0 %v558
      %933 = vmatmul.f32.gmra.mxu0 %v575
      %v934 = vpop.f32.mrf.mxu0
      %v935 = vadd.f32 0.0, %v934
      %936 = vdwg.mxu0
      %937 = vmatpush.msra.mxu0 0.0
      %938 = vmatpush.msra.mxu0 0.0
      %939 = vmatpush.msra.mxu0 0.0
      %940 = vmatpush.msra.mxu0 0.0
      %941 = vmatpush.msra.mxu0 0.0
      %942 = vmatpush.msra.mxu0 0.0
      %943 = vmatpush.msra.mxu0 0.0
      %944 = vmatpush.msra.mxu0 0.0
      %945 = vmatpush.msra.mxu0 0.0
      %946 = vmatpush.msra.mxu0 0.0
      %947 = vmatpush.msra.mxu0 0.0
      %948 = vmatpush.msra.mxu0 0.0
      %949 = vmatpush.msra.mxu0 0.0
      %950 = vmatpush.msra.mxu0 0.0
      %951 = vmatpush.msra.mxu0 0.0
      %952 = vmatpush.msra.mxu0 %v559
      %953 = vmatmul.f32.gmra.mxu0 %v575
      %v954 = vpop.f32.mrf.mxu0
      %v955 = vadd.f32 0.0, %v954
      %956 = vdwg.mxu0
      %957 = vmatpush.msra.mxu0 0.0
      %958 = vmatpush.msra.mxu0 0.0
      %959 = vmatpush.msra.mxu0 0.0
      %960 = vmatpush.msra.mxu0 0.0
      %961 = vmatpush.msra.mxu0 0.0
      %962 = vmatpush.msra.mxu0 0.0
      %963 = vmatpush.msra.mxu0 0.0
      %964 = vmatpush.msra.mxu0 0.0
      %965 = vmatpush.msra.mxu0 0.0
      %966 = vmatpush.msra.mxu0 0.0
      %967 = vmatpush.msra.mxu0 0.0
      %968 = vmatpush.msra.mxu0 0.0
      %969 = vmatpush.msra.mxu0 0.0
      %970 = vmatpush.msra.mxu0 0.0
      %971 = vmatpush.msra.mxu0 0.0
      %972 = vmatpush.msra.mxu0 %v560
      %973 = vmatmul.f32.gmra.mxu0 %v575
      %v974 = vpop.f32.mrf.mxu0
      %v975 = vadd.f32 0.0, %v974
      %976 = vdwg.mxu0
      %977 = vmatpush.msra.mxu0 0.0
      %978 = vmatpush.msra.mxu0 0.0
      %979 = vmatpush.msra.mxu0 0.0
      %980 = vmatpush.msra.mxu0 0.0
      %981 = vmatpush.msra.mxu0 0.0
      %982 = vmatpush.msra.mxu0 0.0
      %983 = vmatpush.msra.mxu0 0.0
      %984 = vmatpush.msra.mxu0 0.0
      %985 = vmatpush.msra.mxu0 0.0
      %986 = vmatpush.msra.mxu0 0.0
      %987 = vmatpush.msra.mxu0 0.0
      %988 = vmatpush.msra.mxu0 0.0
      %989 = vmatpush.msra.mxu0 0.0
      %990 = vmatpush.msra.mxu0 0.0
      %991 = vmatpush.msra.mxu0 0.0
      %992 = vmatpush.msra.mxu0 %v561
      %993 = vmatmul.f32.gmra.mxu0 %v575
      %v994 = vpop.f32.mrf.mxu0
      %v995 = vadd.f32 0.0, %v994
      %996 = vdwg.mxu0
      %997 = vmatpush.msra.mxu0 0.0
      %998 = vmatpush.msra.mxu0 0.0
      %999 = vmatpush.msra.mxu0 0.0
      %1000 = vmatpush.msra.mxu0 0.0
      %1001 = vmatpush.msra.mxu0 0.0
      %1002 = vmatpush.msra.mxu0 0.0
      %1003 = vmatpush.msra.mxu0 0.0
      %1004 = vmatpush.msra.mxu0 0.0
      %1005 = vmatpush.msra.mxu0 0.0
      %1006 = vmatpush.msra.mxu0 0.0
      %1007 = vmatpush.msra.mxu0 0.0
      %1008 = vmatpush.msra.mxu0 0.0
      %1009 = vmatpush.msra.mxu0 0.0
      %1010 = vmatpush.msra.mxu0 0.0
      %1011 = vmatpush.msra.mxu0 0.0
      %1012 = vmatpush.msra.mxu0 %v562
      %1013 = vmatmul.f32.gmra.mxu0 %v575
      %v1014 = vpop.f32.mrf.mxu0
      %v1015 = vadd.f32 0.0, %v1014
      %1016 = vdwg.mxu0
      %1017 = vmatpush.msra.mxu0 0.0
      %1018 = vmatpush.msra.mxu0 0.0
      %1019 = vmatpush.msra.mxu0 0.0
      %1020 = vmatpush.msra.mxu0 0.0
      %1021 = vmatpush.msra.mxu0 0.0
      %1022 = vmatpush.msra.mxu0 0.0
      %1023 = vmatpush.msra.mxu0 0.0
      %1024 = vmatpush.msra.mxu0 0.0
      %1025 = vmatpush.msra.mxu0 0.0
      %1026 = vmatpush.msra.mxu0 0.0
      %1027 = vmatpush.msra.mxu0 0.0
      %1028 = vmatpush.msra.mxu0 0.0
      %1029 = vmatpush.msra.mxu0 0.0
      %1030 = vmatpush.msra.mxu0 0.0
      %1031 = vmatpush.msra.mxu0 0.0
      %1032 = vmatpush.msra.mxu0 %v563
      %1033 = vmatmul.f32.gmra.mxu0 %v575
      %v1034 = vpop.f32.mrf.mxu0
      %v1035 = vadd.f32 0.0, %v1034
      %1036 = vdwg.mxu0
      %1037 = vmatpush.msra.mxu0 0.0
      %1038 = vmatpush.msra.mxu0 0.0
      %1039 = vmatpush.msra.mxu0 0.0
      %1040 = vmatpush.msra.mxu0 0.0
      %1041 = vmatpush.msra.mxu0 0.0
      %1042 = vmatpush.msra.mxu0 0.0
      %1043 = vmatpush.msra.mxu0 0.0
      %1044 = vmatpush.msra.mxu0 0.0
      %1045 = vmatpush.msra.mxu0 0.0
      %1046 = vmatpush.msra.mxu0 0.0
      %1047 = vmatpush.msra.mxu0 0.0
      %1048 = vmatpush.msra.mxu0 0.0
      %1049 = vmatpush.msra.mxu0 0.0
      %1050 = vmatpush.msra.mxu0 0.0
      %1051 = vmatpush.msra.mxu0 0.0
      %1052 = vmatpush.msra.mxu0 %v564
      %1053 = vmatmul.f32.gmra.mxu0 %v575
      %v1054 = vpop.f32.mrf.mxu0
      %v1055 = vadd.f32 0.0, %v1054
      %1056 = vdwg.mxu0
      %1057 = vmatpush.msra.mxu0 0.0
      %1058 = vmatpush.msra.mxu0 0.0
      %1059 = vmatpush.msra.mxu0 0.0
      %1060 = vmatpush.msra.mxu0 0.0
      %1061 = vmatpush.msra.mxu0 0.0
      %1062 = vmatpush.msra.mxu0 0.0
      %1063 = vmatpush.msra.mxu0 0.0
      %1064 = vmatpush.msra.mxu0 0.0
      %1065 = vmatpush.msra.mxu0 0.0
      %1066 = vmatpush.msra.mxu0 0.0
      %1067 = vmatpush.msra.mxu0 0.0
      %1068 = vmatpush.msra.mxu0 0.0
      %1069 = vmatpush.msra.mxu0 0.0
      %1070 = vmatpush.msra.mxu0 0.0
      %1071 = vmatpush.msra.mxu0 0.0
      %1072 = vmatpush.msra.mxu0 %v565
      %1073 = vmatmul.f32.gmra.mxu0 %v575
      %v1074 = vpop.f32.mrf.mxu0
      %v1075 = vadd.f32 0.0, %v1074
      %1076 = vdwg.mxu0
      %1077 = vmatpush.msra.mxu0 0.0
      %1078 = vmatpush.msra.mxu0 0.0
      %1079 = vmatpush.msra.mxu0 0.0
      %1080 = vmatpush.msra.mxu0 0.0
      %1081 = vmatpush.msra.mxu0 0.0
      %1082 = vmatpush.msra.mxu0 0.0
      %1083 = vmatpush.msra.mxu0 0.0
      %1084 = vmatpush.msra.mxu0 0.0
      %1085 = vmatpush.msra.mxu0 0.0
      %1086 = vmatpush.msra.mxu0 0.0
      %1087 = vmatpush.msra.mxu0 0.0
      %1088 = vmatpush.msra.mxu0 0.0
      %1089 = vmatpush.msra.mxu0 0.0
      %1090 = vmatpush.msra.mxu0 0.0
      %1091 = vmatpush.msra.mxu0 0.0
      %1092 = vmatpush.msra.mxu0 %v566
      %1093 = vmatmul.f32.gmra.mxu0 %v575
      %v1094 = vpop.f32.mrf.mxu0
      %v1095 = vadd.f32 0.0, %v1094
      %1096 = vdwg.mxu0
      %1097 = vmatpush.msra.mxu0 0.0
      %1098 = vmatpush.msra.mxu0 0.0
      %1099 = vmatpush.msra.mxu0 0.0
      %1100 = vmatpush.msra.mxu0 0.0
      %1101 = vmatpush.msra.mxu0 0.0
      %1102 = vmatpush.msra.mxu0 0.0
      %1103 = vmatpush.msra.mxu0 0.0
      %1104 = vmatpush.msra.mxu0 0.0
      %1105 = vmatpush.msra.mxu0 0.0
      %1106 = vmatpush.msra.mxu0 0.0
      %1107 = vmatpush.msra.mxu0 0.0
      %1108 = vmatpush.msra.mxu0 0.0
      %1109 = vmatpush.msra.mxu0 0.0
      %1110 = vmatpush.msra.mxu0 0.0
      %1111 = vmatpush.msra.mxu0 0.0
      %1112 = vmatpush.msra.mxu0 %v567
      %1113 = vmatmul.f32.gmra.mxu0 %v575
      %v1114 = vpop.f32.mrf.mxu0
      %v1115 = vadd.f32 0.0, %v1114
      %1116 = vdwg.mxu0
      %1117 = vmatpush.msra.mxu0 0.0
      %1118 = vmatpush.msra.mxu0 0.0
      %1119 = vmatpush.msra.mxu0 0.0
      %1120 = vmatpush.msra.mxu0 0.0
      %1121 = vmatpush.msra.mxu0 0.0
      %1122 = vmatpush.msra.mxu0 0.0
      %1123 = vmatpush.msra.mxu0 0.0
      %1124 = vmatpush.msra.mxu0 0.0
      %1125 = vmatpush.msra.mxu0 0.0
      %1126 = vmatpush.msra.mxu0 0.0
      %1127 = vmatpush.msra.mxu0 0.0
      %1128 = vmatpush.msra.mxu0 0.0
      %1129 = vmatpush.msra.mxu0 0.0
      %1130 = vmatpush.msra.mxu0 0.0
      %1131 = vmatpush.msra.mxu0 0.0
      %1132 = vmatpush.msra.mxu0 %v568
      %1133 = vmatmul.f32.gmra.mxu0 %v575
      %v1134 = vpop.f32.mrf.mxu0
      %v1135 = vadd.f32 0.0, %v1134
      %1136 = vdwg.mxu0
      %1137 = vmatpush.msra.mxu0 0.0
      %1138 = vmatpush.msra.mxu0 0.0
      %1139 = vmatpush.msra.mxu0 0.0
      %1140 = vmatpush.msra.mxu0 0.0
      %1141 = vmatpush.msra.mxu0 0.0
      %1142 = vmatpush.msra.mxu0 0.0
      %1143 = vmatpush.msra.mxu0 0.0
      %1144 = vmatpush.msra.mxu0 0.0
      %1145 = vmatpush.msra.mxu0 0.0
      %1146 = vmatpush.msra.mxu0 0.0
      %1147 = vmatpush.msra.mxu0 0.0
      %1148 = vmatpush.msra.mxu0 0.0
      %1149 = vmatpush.msra.mxu0 0.0
      %1150 = vmatpush.msra.mxu0 0.0
      %1151 = vmatpush.msra.mxu0 0.0
      %1152 = vmatpush.msra.mxu0 %v569
      %1153 = vmatmul.f32.gmra.mxu0 %v575
      %v1154 = vpop.f32.mrf.mxu0
      %v1155 = vadd.f32 0.0, %v1154
      %1156 = vdwg.mxu0
      %1157 = vmatpush.msra.mxu0 0.0
      %1158 = vmatpush.msra.mxu0 0.0
      %1159 = vmatpush.msra.mxu0 0.0
      %1160 = vmatpush.msra.mxu0 0.0
      %1161 = vmatpush.msra.mxu0 0.0
      %1162 = vmatpush.msra.mxu0 0.0
      %1163 = vmatpush.msra.mxu0 0.0
      %1164 = vmatpush.msra.mxu0 0.0
      %1165 = vmatpush.msra.mxu0 0.0
      %1166 = vmatpush.msra.mxu0 0.0
      %1167 = vmatpush.msra.mxu0 0.0
      %1168 = vmatpush.msra.mxu0 0.0
      %1169 = vmatpush.msra.mxu0 0.0
      %1170 = vmatpush.msra.mxu0 0.0
      %1171 = vmatpush.msra.mxu0 0.0
      %1172 = vmatpush.msra.mxu0 %v570
      %1173 = vmatmul.f32.gmra.mxu0 %v575
      %v1174 = vpop.f32.mrf.mxu0
      %v1175 = vadd.f32 0.0, %v1174
      %1176 = vdwg.mxu0
      %1177 = vmatpush.msra.mxu0 0.0
      %1178 = vmatpush.msra.mxu0 0.0
      %1179 = vmatpush.msra.mxu0 0.0
      %1180 = vmatpush.msra.mxu0 0.0
      %1181 = vmatpush.msra.mxu0 0.0
      %1182 = vmatpush.msra.mxu0 0.0
      %1183 = vmatpush.msra.mxu0 0.0
      %1184 = vmatpush.msra.mxu0 0.0
      %1185 = vmatpush.msra.mxu0 0.0
      %1186 = vmatpush.msra.mxu0 0.0
      %1187 = vmatpush.msra.mxu0 0.0
      %1188 = vmatpush.msra.mxu0 0.0
      %1189 = vmatpush.msra.mxu0 0.0
      %1190 = vmatpush.msra.mxu0 0.0
      %1191 = vmatpush.msra.mxu0 0.0
      %1192 = vmatpush.msra.mxu0 %v571
      %1193 = vmatmul.f32.gmra.mxu0 %v575
      %v1194 = vpop.f32.mrf.mxu0
      %v1195 = vadd.f32 0.0, %v1194
      %1196 = vdwg.mxu0
      %1197 = vmatpush.msra.mxu0 0.0
      %1198 = vmatpush.msra.mxu0 0.0
      %1199 = vmatpush.msra.mxu0 0.0
      %1200 = vmatpush.msra.mxu0 0.0
      %1201 = vmatpush.msra.mxu0 0.0
      %1202 = vmatpush.msra.mxu0 0.0
      %1203 = vmatpush.msra.mxu0 0.0
      %1204 = vmatpush.msra.mxu0 0.0
      %1205 = vmatpush.msra.mxu0 0.0
      %1206 = vmatpush.msra.mxu0 0.0
      %1207 = vmatpush.msra.mxu0 0.0
      %1208 = vmatpush.msra.mxu0 0.0
      %1209 = vmatpush.msra.mxu0 0.0
      %1210 = vmatpush.msra.mxu0 0.0
      %1211 = vmatpush.msra.mxu0 0.0
      %1212 = vmatpush.msra.mxu0 %v572
      %1213 = vmatmul.f32.gmra.mxu0 %v575
      %v1214 = vpop.f32.mrf.mxu0
      %v1215 = vadd.f32 0.0, %v1214
      %1216 = vdwg.mxu0
      %v1217 = vld [vmem:[%s3] sm:$0xf]
      %v1218 = vld [vmem:[%s434] sm:$0xff]
      %v1219 = vld [vmem:[%s434 + $0x8] sm:$0xff]
      %v1220 = vld [vmem:[%s434 + $0x10] sm:$0xff]
      %v1221 = vld [vmem:[%s434 + $0x18] sm:$0xff]
      %v1222 = vld [vmem:[%s434 + $0x20] sm:$0xff]
      %v1223 = vld [vmem:[%s434 + $0x28] sm:$0xff]
      %v1224 = vld [vmem:[%s434 + $0x30] sm:$0xff]
      %v1225 = vld [vmem:[%s434 + $0x38] sm:$0xff]
      %v1226 = vld [vmem:[%s434 + $0x40] sm:$0xff]
      %v1227 = vld [vmem:[%s434 + $0x48] sm:$0xff]
      %v1228 = vld [vmem:[%s434 + $0x50] sm:$0xff]
      %v1229 = vld [vmem:[%s434 + $0x58] sm:$0xff]
      %v1230 = vld [vmem:[%s434 + $0x60] sm:$0xff]
      %v1231 = vld [vmem:[%s434 + $0x68] sm:$0xff]
      %v1232 = vld [vmem:[%s434 + $0x70] sm:$0xff]
      %v1233 = vld [vmem:[%s434 + $0x78] sm:$0xff]
      %v1234 = vld [vmem:[%s434 + $0x80] sm:$0xff]
      %v1235 = vld [vmem:[%s434 + $0x88] sm:$0xff]
      %v1236 = vld [vmem:[%s434 + $0x90] sm:$0xff]
      %v1237 = vld [vmem:[%s434 + $0x98] sm:$0xff]
      %v1238 = vld [vmem:[%s434 + $0xa0] sm:$0xff]
      %v1239 = vld [vmem:[%s434 + $0xa8] sm:$0xff]
      %v1240 = vld [vmem:[%s434 + $0xb0] sm:$0xff]
      %v1241 = vld [vmem:[%s434 + $0xb8] sm:$0xff]
      %v1242 = vld [vmem:[%s434 + $0xc0] sm:$0xff]
      %v1243 = vld [vmem:[%s434 + $0xc8] sm:$0xff]
      %v1244 = vld [vmem:[%s434 + $0xd0] sm:$0xff]
      %v1245 = vld [vmem:[%s434 + $0xd8] sm:$0xff]
      %v1246 = vld [vmem:[%s434 + $0xe0] sm:$0xff]
      %v1247 = vld [vmem:[%s434 + $0xe8] sm:$0xff]
      %v1248 = vld [vmem:[%s434 + $0xf0] sm:$0xff]
      %v1249 = vld [vmem:[%s434 + $0xf8] sm:$0xff]
      %v1251 = vsel %vm573, %v1217, 0
      %1253 = vmatpush.msra.mxu0 0.0
      %1254 = vmatpush.msra.mxu0 0.0
      %1255 = vmatpush.msra.mxu0 0.0
      %1256 = vmatpush.msra.mxu0 0.0
      %1257 = vmatpush.msra.mxu0 0.0
      %1258 = vmatpush.msra.mxu0 0.0
      %1259 = vmatpush.msra.mxu0 0.0
      %1260 = vmatpush.msra.mxu0 0.0
      %1261 = vmatpush.msra.mxu0 0.0
      %1262 = vmatpush.msra.mxu0 0.0
      %1263 = vmatpush.msra.mxu0 0.0
      %1264 = vmatpush.msra.mxu0 0.0
      %1265 = vmatpush.msra.mxu0 0.0
      %1266 = vmatpush.msra.mxu0 0.0
      %1267 = vmatpush.msra.mxu0 0.0
      %1268 = vmatpush.msra.mxu0 %v1218
      %1269 = vmatmul.f32.gmra.mxu0 %v1251
      %v1270 = vpop.f32.mrf.mxu0
      %v1271 = vadd.f32 0.0, %v1270
      %1272 = vdwg.mxu0
      %1273 = vmatpush.msra.mxu0 0.0
      %1274 = vmatpush.msra.mxu0 0.0
      %1275 = vmatpush.msra.mxu0 0.0
      %1276 = vmatpush.msra.mxu0 0.0
      %1277 = vmatpush.msra.mxu0 0.0
      %1278 = vmatpush.msra.mxu0 0.0
      %1279 = vmatpush.msra.mxu0 0.0
      %1280 = vmatpush.msra.mxu0 0.0
      %1281 = vmatpush.msra.mxu0 0.0
      %1282 = vmatpush.msra.mxu0 0.0
      %1283 = vmatpush.msra.mxu0 0.0
      %1284 = vmatpush.msra.mxu0 0.0
      %1285 = vmatpush.msra.mxu0 0.0
      %1286 = vmatpush.msra.mxu0 0.0
      %1287 = vmatpush.msra.mxu0 0.0
      %1288 = vmatpush.msra.mxu0 %v1219
      %1289 = vmatmul.f32.gmra.mxu0 %v1251
      %v1290 = vpop.f32.mrf.mxu0
      %v1291 = vadd.f32 0.0, %v1290
      %1292 = vdwg.mxu0
      %1293 = vmatpush.msra.mxu0 0.0
      %1294 = vmatpush.msra.mxu0 0.0
      %1295 = vmatpush.msra.mxu0 0.0
      %1296 = vmatpush.msra.mxu0 0.0
      %1297 = vmatpush.msra.mxu0 0.0
      %1298 = vmatpush.msra.mxu0 0.0
      %1299 = vmatpush.msra.mxu0 0.0
      %1300 = vmatpush.msra.mxu0 0.0
      %1301 = vmatpush.msra.mxu0 0.0
      %1302 = vmatpush.msra.mxu0 0.0
      %1303 = vmatpush.msra.mxu0 0.0
      %1304 = vmatpush.msra.mxu0 0.0
      %1305 = vmatpush.msra.mxu0 0.0
      %1306 = vmatpush.msra.mxu0 0.0
      %1307 = vmatpush.msra.mxu0 0.0
      %1308 = vmatpush.msra.mxu0 %v1220
      %1309 = vmatmul.f32.gmra.mxu0 %v1251
      %v1310 = vpop.f32.mrf.mxu0
      %v1311 = vadd.f32 0.0, %v1310
      %1312 = vdwg.mxu0
      %1313 = vmatpush.msra.mxu0 0.0
      %1314 = vmatpush.msra.mxu0 0.0
      %1315 = vmatpush.msra.mxu0 0.0
      %1316 = vmatpush.msra.mxu0 0.0
      %1317 = vmatpush.msra.mxu0 0.0
      %1318 = vmatpush.msra.mxu0 0.0
      %1319 = vmatpush.msra.mxu0 0.0
      %1320 = vmatpush.msra.mxu0 0.0
      %1321 = vmatpush.msra.mxu0 0.0
      %1322 = vmatpush.msra.mxu0 0.0
      %1323 = vmatpush.msra.mxu0 0.0
      %1324 = vmatpush.msra.mxu0 0.0
      %1325 = vmatpush.msra.mxu0 0.0
      %1326 = vmatpush.msra.mxu0 0.0
      %1327 = vmatpush.msra.mxu0 0.0
      %1328 = vmatpush.msra.mxu0 %v1221
      %1329 = vmatmul.f32.gmra.mxu0 %v1251
      %v1330 = vpop.f32.mrf.mxu0
      %v1331 = vadd.f32 0.0, %v1330
      %1332 = vdwg.mxu0
      %1333 = vmatpush.msra.mxu0 0.0
      %1334 = vmatpush.msra.mxu0 0.0
      %1335 = vmatpush.msra.mxu0 0.0
      %1336 = vmatpush.msra.mxu0 0.0
      %1337 = vmatpush.msra.mxu0 0.0
      %1338 = vmatpush.msra.mxu0 0.0
      %1339 = vmatpush.msra.mxu0 0.0
      %1340 = vmatpush.msra.mxu0 0.0
      %1341 = vmatpush.msra.mxu0 0.0
      %1342 = vmatpush.msra.mxu0 0.0
      %1343 = vmatpush.msra.mxu0 0.0
      %1344 = vmatpush.msra.mxu0 0.0
      %1345 = vmatpush.msra.mxu0 0.0
      %1346 = vmatpush.msra.mxu0 0.0
      %1347 = vmatpush.msra.mxu0 0.0
      %1348 = vmatpush.msra.mxu0 %v1222
      %1349 = vmatmul.f32.gmra.mxu0 %v1251
      %v1350 = vpop.f32.mrf.mxu0
      %v1351 = vadd.f32 0.0, %v1350
      %1352 = vdwg.mxu0
      %1353 = vmatpush.msra.mxu0 0.0
      %1354 = vmatpush.msra.mxu0 0.0
      %1355 = vmatpush.msra.mxu0 0.0
      %1356 = vmatpush.msra.mxu0 0.0
      %1357 = vmatpush.msra.mxu0 0.0
      %1358 = vmatpush.msra.mxu0 0.0
      %1359 = vmatpush.msra.mxu0 0.0
      %1360 = vmatpush.msra.mxu0 0.0
      %1361 = vmatpush.msra.mxu0 0.0
      %1362 = vmatpush.msra.mxu0 0.0
      %1363 = vmatpush.msra.mxu0 0.0
      %1364 = vmatpush.msra.mxu0 0.0
      %1365 = vmatpush.msra.mxu0 0.0
      %1366 = vmatpush.msra.mxu0 0.0
      %1367 = vmatpush.msra.mxu0 0.0
      %1368 = vmatpush.msra.mxu0 %v1223
      %1369 = vmatmul.f32.gmra.mxu0 %v1251
      %v1370 = vpop.f32.mrf.mxu0
      %v1371 = vadd.f32 0.0, %v1370
      %1372 = vdwg.mxu0
      %1373 = vmatpush.msra.mxu0 0.0
      %1374 = vmatpush.msra.mxu0 0.0
      %1375 = vmatpush.msra.mxu0 0.0
      %1376 = vmatpush.msra.mxu0 0.0
      %1377 = vmatpush.msra.mxu0 0.0
      %1378 = vmatpush.msra.mxu0 0.0
      %1379 = vmatpush.msra.mxu0 0.0
      %1380 = vmatpush.msra.mxu0 0.0
      %1381 = vmatpush.msra.mxu0 0.0
      %1382 = vmatpush.msra.mxu0 0.0
      %1383 = vmatpush.msra.mxu0 0.0
      %1384 = vmatpush.msra.mxu0 0.0
      %1385 = vmatpush.msra.mxu0 0.0
      %1386 = vmatpush.msra.mxu0 0.0
      %1387 = vmatpush.msra.mxu0 0.0
      %1388 = vmatpush.msra.mxu0 %v1224
      %1389 = vmatmul.f32.gmra.mxu0 %v1251
      %v1390 = vpop.f32.mrf.mxu0
      %v1391 = vadd.f32 0.0, %v1390
      %1392 = vdwg.mxu0
      %1393 = vmatpush.msra.mxu0 0.0
      %1394 = vmatpush.msra.mxu0 0.0
      %1395 = vmatpush.msra.mxu0 0.0
      %1396 = vmatpush.msra.mxu0 0.0
      %1397 = vmatpush.msra.mxu0 0.0
      %1398 = vmatpush.msra.mxu0 0.0
      %1399 = vmatpush.msra.mxu0 0.0
      %1400 = vmatpush.msra.mxu0 0.0
      %1401 = vmatpush.msra.mxu0 0.0
      %1402 = vmatpush.msra.mxu0 0.0
      %1403 = vmatpush.msra.mxu0 0.0
      %1404 = vmatpush.msra.mxu0 0.0
      %1405 = vmatpush.msra.mxu0 0.0
      %1406 = vmatpush.msra.mxu0 0.0
      %1407 = vmatpush.msra.mxu0 0.0
      %1408 = vmatpush.msra.mxu0 %v1225
      %1409 = vmatmul.f32.gmra.mxu0 %v1251
      %v1410 = vpop.f32.mrf.mxu0
      %v1411 = vadd.f32 0.0, %v1410
      %1412 = vdwg.mxu0
      %1413 = vmatpush.msra.mxu0 0.0
      %1414 = vmatpush.msra.mxu0 0.0
      %1415 = vmatpush.msra.mxu0 0.0
      %1416 = vmatpush.msra.mxu0 0.0
      %1417 = vmatpush.msra.mxu0 0.0
      %1418 = vmatpush.msra.mxu0 0.0
      %1419 = vmatpush.msra.mxu0 0.0
      %1420 = vmatpush.msra.mxu0 0.0
      %1421 = vmatpush.msra.mxu0 0.0
      %1422 = vmatpush.msra.mxu0 0.0
      %1423 = vmatpush.msra.mxu0 0.0
      %1424 = vmatpush.msra.mxu0 0.0
      %1425 = vmatpush.msra.mxu0 0.0
      %1426 = vmatpush.msra.mxu0 0.0
      %1427 = vmatpush.msra.mxu0 0.0
      %1428 = vmatpush.msra.mxu0 %v1226
      %1429 = vmatmul.f32.gmra.mxu0 %v1251
      %v1430 = vpop.f32.mrf.mxu0
      %v1431 = vadd.f32 0.0, %v1430
      %1432 = vdwg.mxu0
      %1433 = vmatpush.msra.mxu0 0.0
      %1434 = vmatpush.msra.mxu0 0.0
      %1435 = vmatpush.msra.mxu0 0.0
      %1436 = vmatpush.msra.mxu0 0.0
      %1437 = vmatpush.msra.mxu0 0.0
      %1438 = vmatpush.msra.mxu0 0.0
      %1439 = vmatpush.msra.mxu0 0.0
      %1440 = vmatpush.msra.mxu0 0.0
      %1441 = vmatpush.msra.mxu0 0.0
      %1442 = vmatpush.msra.mxu0 0.0
      %1443 = vmatpush.msra.mxu0 0.0
      %1444 = vmatpush.msra.mxu0 0.0
      %1445 = vmatpush.msra.mxu0 0.0
      %1446 = vmatpush.msra.mxu0 0.0
      %1447 = vmatpush.msra.mxu0 0.0
      %1448 = vmatpush.msra.mxu0 %v1227
      %1449 = vmatmul.f32.gmra.mxu0 %v1251
      %v1450 = vpop.f32.mrf.mxu0
      %v1451 = vadd.f32 0.0, %v1450
      %1452 = vdwg.mxu0
      %1453 = vmatpush.msra.mxu0 0.0
      %1454 = vmatpush.msra.mxu0 0.0
      %1455 = vmatpush.msra.mxu0 0.0
      %1456 = vmatpush.msra.mxu0 0.0
      %1457 = vmatpush.msra.mxu0 0.0
      %1458 = vmatpush.msra.mxu0 0.0
      %1459 = vmatpush.msra.mxu0 0.0
      %1460 = vmatpush.msra.mxu0 0.0
      %1461 = vmatpush.msra.mxu0 0.0
      %1462 = vmatpush.msra.mxu0 0.0
      %1463 = vmatpush.msra.mxu0 0.0
      %1464 = vmatpush.msra.mxu0 0.0
      %1465 = vmatpush.msra.mxu0 0.0
      %1466 = vmatpush.msra.mxu0 0.0
      %1467 = vmatpush.msra.mxu0 0.0
      %1468 = vmatpush.msra.mxu0 %v1228
      %1469 = vmatmul.f32.gmra.mxu0 %v1251
      %v1470 = vpop.f32.mrf.mxu0
      %v1471 = vadd.f32 0.0, %v1470
      %1472 = vdwg.mxu0
      %1473 = vmatpush.msra.mxu0 0.0
      %1474 = vmatpush.msra.mxu0 0.0
      %1475 = vmatpush.msra.mxu0 0.0
      %1476 = vmatpush.msra.mxu0 0.0
      %1477 = vmatpush.msra.mxu0 0.0
      %1478 = vmatpush.msra.mxu0 0.0
      %1479 = vmatpush.msra.mxu0 0.0
      %1480 = vmatpush.msra.mxu0 0.0
      %1481 = vmatpush.msra.mxu0 0.0
      %1482 = vmatpush.msra.mxu0 0.0
      %1483 = vmatpush.msra.mxu0 0.0
      %1484 = vmatpush.msra.mxu0 0.0
      %1485 = vmatpush.msra.mxu0 0.0
      %1486 = vmatpush.msra.mxu0 0.0
      %1487 = vmatpush.msra.mxu0 0.0
      %1488 = vmatpush.msra.mxu0 %v1229
      %1489 = vmatmul.f32.gmra.mxu0 %v1251
      %v1490 = vpop.f32.mrf.mxu0
      %v1491 = vadd.f32 0.0, %v1490
      %1492 = vdwg.mxu0
      %1493 = vmatpush.msra.mxu0 0.0
      %1494 = vmatpush.msra.mxu0 0.0
      %1495 = vmatpush.msra.mxu0 0.0
      %1496 = vmatpush.msra.mxu0 0.0
      %1497 = vmatpush.msra.mxu0 0.0
      %1498 = vmatpush.msra.mxu0 0.0
      %1499 = vmatpush.msra.mxu0 0.0
      %1500 = vmatpush.msra.mxu0 0.0
      %1501 = vmatpush.msra.mxu0 0.0
      %1502 = vmatpush.msra.mxu0 0.0
      %1503 = vmatpush.msra.mxu0 0.0
      %1504 = vmatpush.msra.mxu0 0.0
      %1505 = vmatpush.msra.mxu0 0.0
      %1506 = vmatpush.msra.mxu0 0.0
      %1507 = vmatpush.msra.mxu0 0.0
      %1508 = vmatpush.msra.mxu0 %v1230
      %1509 = vmatmul.f32.gmra.mxu0 %v1251
      %v1510 = vpop.f32.mrf.mxu0
      %v1511 = vadd.f32 0.0, %v1510
      %1512 = vdwg.mxu0
      %1513 = vmatpush.msra.mxu0 0.0
      %1514 = vmatpush.msra.mxu0 0.0
      %1515 = vmatpush.msra.mxu0 0.0
      %1516 = vmatpush.msra.mxu0 0.0
      %1517 = vmatpush.msra.mxu0 0.0
      %1518 = vmatpush.msra.mxu0 0.0
      %1519 = vmatpush.msra.mxu0 0.0
      %1520 = vmatpush.msra.mxu0 0.0
      %1521 = vmatpush.msra.mxu0 0.0
      %1522 = vmatpush.msra.mxu0 0.0
      %1523 = vmatpush.msra.mxu0 0.0
      %1524 = vmatpush.msra.mxu0 0.0
      %1525 = vmatpush.msra.mxu0 0.0
      %1526 = vmatpush.msra.mxu0 0.0
      %1527 = vmatpush.msra.mxu0 0.0
      %1528 = vmatpush.msra.mxu0 %v1231
      %1529 = vmatmul.f32.gmra.mxu0 %v1251
      %v1530 = vpop.f32.mrf.mxu0
      %v1531 = vadd.f32 0.0, %v1530
      %1532 = vdwg.mxu0
      %1533 = vmatpush.msra.mxu0 0.0
      %1534 = vmatpush.msra.mxu0 0.0
      %1535 = vmatpush.msra.mxu0 0.0
      %1536 = vmatpush.msra.mxu0 0.0
      %1537 = vmatpush.msra.mxu0 0.0
      %1538 = vmatpush.msra.mxu0 0.0
      %1539 = vmatpush.msra.mxu0 0.0
      %1540 = vmatpush.msra.mxu0 0.0
      %1541 = vmatpush.msra.mxu0 0.0
      %1542 = vmatpush.msra.mxu0 0.0
      %1543 = vmatpush.msra.mxu0 0.0
      %1544 = vmatpush.msra.mxu0 0.0
      %1545 = vmatpush.msra.mxu0 0.0
      %1546 = vmatpush.msra.mxu0 0.0
      %1547 = vmatpush.msra.mxu0 0.0
      %1548 = vmatpush.msra.mxu0 %v1232
      %1549 = vmatmul.f32.gmra.mxu0 %v1251
      %v1550 = vpop.f32.mrf.mxu0
      %v1551 = vadd.f32 0.0, %v1550
      %1552 = vdwg.mxu0
      %1553 = vmatpush.msra.mxu0 0.0
      %1554 = vmatpush.msra.mxu0 0.0
      %1555 = vmatpush.msra.mxu0 0.0
      %1556 = vmatpush.msra.mxu0 0.0
      %1557 = vmatpush.msra.mxu0 0.0
      %1558 = vmatpush.msra.mxu0 0.0
      %1559 = vmatpush.msra.mxu0 0.0
      %1560 = vmatpush.msra.mxu0 0.0
      %1561 = vmatpush.msra.mxu0 0.0
      %1562 = vmatpush.msra.mxu0 0.0
      %1563 = vmatpush.msra.mxu0 0.0
      %1564 = vmatpush.msra.mxu0 0.0
      %1565 = vmatpush.msra.mxu0 0.0
      %1566 = vmatpush.msra.mxu0 0.0
      %1567 = vmatpush.msra.mxu0 0.0
      %1568 = vmatpush.msra.mxu0 %v1233
      %1569 = vmatmul.f32.gmra.mxu0 %v1251
      %v1570 = vpop.f32.mrf.mxu0
      %v1571 = vadd.f32 0.0, %v1570
      %1572 = vdwg.mxu0
      %1573 = vmatpush.msra.mxu0 0.0
      %1574 = vmatpush.msra.mxu0 0.0
      %1575 = vmatpush.msra.mxu0 0.0
      %1576 = vmatpush.msra.mxu0 0.0
      %1577 = vmatpush.msra.mxu0 0.0
      %1578 = vmatpush.msra.mxu0 0.0
      %1579 = vmatpush.msra.mxu0 0.0
      %1580 = vmatpush.msra.mxu0 0.0
      %1581 = vmatpush.msra.mxu0 0.0
      %1582 = vmatpush.msra.mxu0 0.0
      %1583 = vmatpush.msra.mxu0 0.0
      %1584 = vmatpush.msra.mxu0 0.0
      %1585 = vmatpush.msra.mxu0 0.0
      %1586 = vmatpush.msra.mxu0 0.0
      %1587 = vmatpush.msra.mxu0 0.0
      %1588 = vmatpush.msra.mxu0 %v1234
      %1589 = vmatmul.f32.gmra.mxu0 %v1251
      %v1590 = vpop.f32.mrf.mxu0
      %v1591 = vadd.f32 0.0, %v1590
      %1592 = vdwg.mxu0
      %1593 = vmatpush.msra.mxu0 0.0
      %1594 = vmatpush.msra.mxu0 0.0
      %1595 = vmatpush.msra.mxu0 0.0
      %1596 = vmatpush.msra.mxu0 0.0
      %1597 = vmatpush.msra.mxu0 0.0
      %1598 = vmatpush.msra.mxu0 0.0
      %1599 = vmatpush.msra.mxu0 0.0
      %1600 = vmatpush.msra.mxu0 0.0
      %1601 = vmatpush.msra.mxu0 0.0
      %1602 = vmatpush.msra.mxu0 0.0
      %1603 = vmatpush.msra.mxu0 0.0
      %1604 = vmatpush.msra.mxu0 0.0
      %1605 = vmatpush.msra.mxu0 0.0
      %1606 = vmatpush.msra.mxu0 0.0
      %1607 = vmatpush.msra.mxu0 0.0
      %1608 = vmatpush.msra.mxu0 %v1235
      %1609 = vmatmul.f32.gmra.mxu0 %v1251
      %v1610 = vpop.f32.mrf.mxu0
      %v1611 = vadd.f32 0.0, %v1610
      %1612 = vdwg.mxu0
      %1613 = vmatpush.msra.mxu0 0.0
      %1614 = vmatpush.msra.mxu0 0.0
      %1615 = vmatpush.msra.mxu0 0.0
      %1616 = vmatpush.msra.mxu0 0.0
      %1617 = vmatpush.msra.mxu0 0.0
      %1618 = vmatpush.msra.mxu0 0.0
      %1619 = vmatpush.msra.mxu0 0.0
      %1620 = vmatpush.msra.mxu0 0.0
      %1621 = vmatpush.msra.mxu0 0.0
      %1622 = vmatpush.msra.mxu0 0.0
      %1623 = vmatpush.msra.mxu0 0.0
      %1624 = vmatpush.msra.mxu0 0.0
      %1625 = vmatpush.msra.mxu0 0.0
      %1626 = vmatpush.msra.mxu0 0.0
      %1627 = vmatpush.msra.mxu0 0.0
      %1628 = vmatpush.msra.mxu0 %v1236
      %1629 = vmatmul.f32.gmra.mxu0 %v1251
      %v1630 = vpop.f32.mrf.mxu0
      %v1631 = vadd.f32 0.0, %v1630
      %1632 = vdwg.mxu0
      %1633 = vmatpush.msra.mxu0 0.0
      %1634 = vmatpush.msra.mxu0 0.0
      %1635 = vmatpush.msra.mxu0 0.0
      %1636 = vmatpush.msra.mxu0 0.0
      %1637 = vmatpush.msra.mxu0 0.0
      %1638 = vmatpush.msra.mxu0 0.0
      %1639 = vmatpush.msra.mxu0 0.0
      %1640 = vmatpush.msra.mxu0 0.0
      %1641 = vmatpush.msra.mxu0 0.0
      %1642 = vmatpush.msra.mxu0 0.0
      %1643 = vmatpush.msra.mxu0 0.0
      %1644 = vmatpush.msra.mxu0 0.0
      %1645 = vmatpush.msra.mxu0 0.0
      %1646 = vmatpush.msra.mxu0 0.0
      %1647 = vmatpush.msra.mxu0 0.0
      %1648 = vmatpush.msra.mxu0 %v1237
      %1649 = vmatmul.f32.gmra.mxu0 %v1251
      %v1650 = vpop.f32.mrf.mxu0
      %v1651 = vadd.f32 0.0, %v1650
      %1652 = vdwg.mxu0
      %1653 = vmatpush.msra.mxu0 0.0
      %1654 = vmatpush.msra.mxu0 0.0
      %1655 = vmatpush.msra.mxu0 0.0
      %1656 = vmatpush.msra.mxu0 0.0
      %1657 = vmatpush.msra.mxu0 0.0
      %1658 = vmatpush.msra.mxu0 0.0
      %1659 = vmatpush.msra.mxu0 0.0
      %1660 = vmatpush.msra.mxu0 0.0
      %1661 = vmatpush.msra.mxu0 0.0
      %1662 = vmatpush.msra.mxu0 0.0
      %1663 = vmatpush.msra.mxu0 0.0
      %1664 = vmatpush.msra.mxu0 0.0
      %1665 = vmatpush.msra.mxu0 0.0
      %1666 = vmatpush.msra.mxu0 0.0
      %1667 = vmatpush.msra.mxu0 0.0
      %1668 = vmatpush.msra.mxu0 %v1238
      %1669 = vmatmul.f32.gmra.mxu0 %v1251
      %v1670 = vpop.f32.mrf.mxu0
      %v1671 = vadd.f32 0.0, %v1670
      %1672 = vdwg.mxu0
      %1673 = vmatpush.msra.mxu0 0.0
      %1674 = vmatpush.msra.mxu0 0.0
      %1675 = vmatpush.msra.mxu0 0.0
      %1676 = vmatpush.msra.mxu0 0.0
      %1677 = vmatpush.msra.mxu0 0.0
      %1678 = vmatpush.msra.mxu0 0.0
      %1679 = vmatpush.msra.mxu0 0.0
      %1680 = vmatpush.msra.mxu0 0.0
      %1681 = vmatpush.msra.mxu0 0.0
      %1682 = vmatpush.msra.mxu0 0.0
      %1683 = vmatpush.msra.mxu0 0.0
      %1684 = vmatpush.msra.mxu0 0.0
      %1685 = vmatpush.msra.mxu0 0.0
      %1686 = vmatpush.msra.mxu0 0.0
      %1687 = vmatpush.msra.mxu0 0.0
      %1688 = vmatpush.msra.mxu0 %v1239
      %1689 = vmatmul.f32.gmra.mxu0 %v1251
      %v1690 = vpop.f32.mrf.mxu0
      %v1691 = vadd.f32 0.0, %v1690
      %1692 = vdwg.mxu0
      %1693 = vmatpush.msra.mxu0 0.0
      %1694 = vmatpush.msra.mxu0 0.0
      %1695 = vmatpush.msra.mxu0 0.0
      %1696 = vmatpush.msra.mxu0 0.0
      %1697 = vmatpush.msra.mxu0 0.0
      %1698 = vmatpush.msra.mxu0 0.0
      %1699 = vmatpush.msra.mxu0 0.0
      %1700 = vmatpush.msra.mxu0 0.0
      %1701 = vmatpush.msra.mxu0 0.0
      %1702 = vmatpush.msra.mxu0 0.0
      %1703 = vmatpush.msra.mxu0 0.0
      %1704 = vmatpush.msra.mxu0 0.0
      %1705 = vmatpush.msra.mxu0 0.0
      %1706 = vmatpush.msra.mxu0 0.0
      %1707 = vmatpush.msra.mxu0 0.0
      %1708 = vmatpush.msra.mxu0 %v1240
      %1709 = vmatmul.f32.gmra.mxu0 %v1251
      %v1710 = vpop.f32.mrf.mxu0
      %v1711 = vadd.f32 0.0, %v1710
      %1712 = vdwg.mxu0
      %1713 = vmatpush.msra.mxu0 0.0
      %1714 = vmatpush.msra.mxu0 0.0
      %1715 = vmatpush.msra.mxu0 0.0
      %1716 = vmatpush.msra.mxu0 0.0
      %1717 = vmatpush.msra.mxu0 0.0
      %1718 = vmatpush.msra.mxu0 0.0
      %1719 = vmatpush.msra.mxu0 0.0
      %1720 = vmatpush.msra.mxu0 0.0
      %1721 = vmatpush.msra.mxu0 0.0
      %1722 = vmatpush.msra.mxu0 0.0
      %1723 = vmatpush.msra.mxu0 0.0
      %1724 = vmatpush.msra.mxu0 0.0
      %1725 = vmatpush.msra.mxu0 0.0
      %1726 = vmatpush.msra.mxu0 0.0
      %1727 = vmatpush.msra.mxu0 0.0
      %1728 = vmatpush.msra.mxu0 %v1241
      %1729 = vmatmul.f32.gmra.mxu0 %v1251
      %v1730 = vpop.f32.mrf.mxu0
      %v1731 = vadd.f32 0.0, %v1730
      %1732 = vdwg.mxu0
      %1733 = vmatpush.msra.mxu0 0.0
      %1734 = vmatpush.msra.mxu0 0.0
      %1735 = vmatpush.msra.mxu0 0.0
      %1736 = vmatpush.msra.mxu0 0.0
      %1737 = vmatpush.msra.mxu0 0.0
      %1738 = vmatpush.msra.mxu0 0.0
      %1739 = vmatpush.msra.mxu0 0.0
      %1740 = vmatpush.msra.mxu0 0.0
      %1741 = vmatpush.msra.mxu0 0.0
      %1742 = vmatpush.msra.mxu0 0.0
      %1743 = vmatpush.msra.mxu0 0.0
      %1744 = vmatpush.msra.mxu0 0.0
      %1745 = vmatpush.msra.mxu0 0.0
      %1746 = vmatpush.msra.mxu0 0.0
      %1747 = vmatpush.msra.mxu0 0.0
      %1748 = vmatpush.msra.mxu0 %v1242
      %1749 = vmatmul.f32.gmra.mxu0 %v1251
      %v1750 = vpop.f32.mrf.mxu0
      %v1751 = vadd.f32 0.0, %v1750
      %1752 = vdwg.mxu0
      %1753 = vmatpush.msra.mxu0 0.0
      %1754 = vmatpush.msra.mxu0 0.0
      %1755 = vmatpush.msra.mxu0 0.0
      %1756 = vmatpush.msra.mxu0 0.0
      %1757 = vmatpush.msra.mxu0 0.0
      %1758 = vmatpush.msra.mxu0 0.0
      %1759 = vmatpush.msra.mxu0 0.0
      %1760 = vmatpush.msra.mxu0 0.0
      %1761 = vmatpush.msra.mxu0 0.0
      %1762 = vmatpush.msra.mxu0 0.0
      %1763 = vmatpush.msra.mxu0 0.0
      %1764 = vmatpush.msra.mxu0 0.0
      %1765 = vmatpush.msra.mxu0 0.0
      %1766 = vmatpush.msra.mxu0 0.0
      %1767 = vmatpush.msra.mxu0 0.0
      %1768 = vmatpush.msra.mxu0 %v1243
      %1769 = vmatmul.f32.gmra.mxu0 %v1251
      %v1770 = vpop.f32.mrf.mxu0
      %v1771 = vadd.f32 0.0, %v1770
      %1772 = vdwg.mxu0
      %1773 = vmatpush.msra.mxu0 0.0
      %1774 = vmatpush.msra.mxu0 0.0
      %1775 = vmatpush.msra.mxu0 0.0
      %1776 = vmatpush.msra.mxu0 0.0
      %1777 = vmatpush.msra.mxu0 0.0
      %1778 = vmatpush.msra.mxu0 0.0
      %1779 = vmatpush.msra.mxu0 0.0
      %1780 = vmatpush.msra.mxu0 0.0
      %1781 = vmatpush.msra.mxu0 0.0
      %1782 = vmatpush.msra.mxu0 0.0
      %1783 = vmatpush.msra.mxu0 0.0
      %1784 = vmatpush.msra.mxu0 0.0
      %1785 = vmatpush.msra.mxu0 0.0
      %1786 = vmatpush.msra.mxu0 0.0
      %1787 = vmatpush.msra.mxu0 0.0
      %1788 = vmatpush.msra.mxu0 %v1244
      %1789 = vmatmul.f32.gmra.mxu0 %v1251
      %v1790 = vpop.f32.mrf.mxu0
      %v1791 = vadd.f32 0.0, %v1790
      %1792 = vdwg.mxu0
      %1793 = vmatpush.msra.mxu0 0.0
      %1794 = vmatpush.msra.mxu0 0.0
      %1795 = vmatpush.msra.mxu0 0.0
      %1796 = vmatpush.msra.mxu0 0.0
      %1797 = vmatpush.msra.mxu0 0.0
      %1798 = vmatpush.msra.mxu0 0.0
      %1799 = vmatpush.msra.mxu0 0.0
      %1800 = vmatpush.msra.mxu0 0.0
      %1801 = vmatpush.msra.mxu0 0.0
      %1802 = vmatpush.msra.mxu0 0.0
      %1803 = vmatpush.msra.mxu0 0.0
      %1804 = vmatpush.msra.mxu0 0.0
      %1805 = vmatpush.msra.mxu0 0.0
      %1806 = vmatpush.msra.mxu0 0.0
      %1807 = vmatpush.msra.mxu0 0.0
      %1808 = vmatpush.msra.mxu0 %v1245
      %1809 = vmatmul.f32.gmra.mxu0 %v1251
      %v1810 = vpop.f32.mrf.mxu0
      %v1811 = vadd.f32 0.0, %v1810
      %1812 = vdwg.mxu0
      %1813 = vmatpush.msra.mxu0 0.0
      %1814 = vmatpush.msra.mxu0 0.0
      %1815 = vmatpush.msra.mxu0 0.0
      %1816 = vmatpush.msra.mxu0 0.0
      %1817 = vmatpush.msra.mxu0 0.0
      %1818 = vmatpush.msra.mxu0 0.0
      %1819 = vmatpush.msra.mxu0 0.0
      %1820 = vmatpush.msra.mxu0 0.0
      %1821 = vmatpush.msra.mxu0 0.0
      %1822 = vmatpush.msra.mxu0 0.0
      %1823 = vmatpush.msra.mxu0 0.0
      %1824 = vmatpush.msra.mxu0 0.0
      %1825 = vmatpush.msra.mxu0 0.0
      %1826 = vmatpush.msra.mxu0 0.0
      %1827 = vmatpush.msra.mxu0 0.0
      %1828 = vmatpush.msra.mxu0 %v1246
      %1829 = vmatmul.f32.gmra.mxu0 %v1251
      %v1830 = vpop.f32.mrf.mxu0
      %v1831 = vadd.f32 0.0, %v1830
      %1832 = vdwg.mxu0
      %1833 = vmatpush.msra.mxu0 0.0
      %1834 = vmatpush.msra.mxu0 0.0
      %1835 = vmatpush.msra.mxu0 0.0
      %1836 = vmatpush.msra.mxu0 0.0
      %1837 = vmatpush.msra.mxu0 0.0
      %1838 = vmatpush.msra.mxu0 0.0
      %1839 = vmatpush.msra.mxu0 0.0
      %1840 = vmatpush.msra.mxu0 0.0
      %1841 = vmatpush.msra.mxu0 0.0
      %1842 = vmatpush.msra.mxu0 0.0
      %1843 = vmatpush.msra.mxu0 0.0
      %1844 = vmatpush.msra.mxu0 0.0
      %1845 = vmatpush.msra.mxu0 0.0
      %1846 = vmatpush.msra.mxu0 0.0
      %1847 = vmatpush.msra.mxu0 0.0
      %1848 = vmatpush.msra.mxu0 %v1247
      %1849 = vmatmul.f32.gmra.mxu0 %v1251
      %v1850 = vpop.f32.mrf.mxu0
      %v1851 = vadd.f32 0.0, %v1850
      %1852 = vdwg.mxu0
      %1853 = vmatpush.msra.mxu0 0.0
      %1854 = vmatpush.msra.mxu0 0.0
      %1855 = vmatpush.msra.mxu0 0.0
      %1856 = vmatpush.msra.mxu0 0.0
      %1857 = vmatpush.msra.mxu0 0.0
      %1858 = vmatpush.msra.mxu0 0.0
      %1859 = vmatpush.msra.mxu0 0.0
      %1860 = vmatpush.msra.mxu0 0.0
      %1861 = vmatpush.msra.mxu0 0.0
      %1862 = vmatpush.msra.mxu0 0.0
      %1863 = vmatpush.msra.mxu0 0.0
      %1864 = vmatpush.msra.mxu0 0.0
      %1865 = vmatpush.msra.mxu0 0.0
      %1866 = vmatpush.msra.mxu0 0.0
      %1867 = vmatpush.msra.mxu0 0.0
      %1868 = vmatpush.msra.mxu0 %v1248
      %1869 = vmatmul.f32.gmra.mxu0 %v1251
      %v1870 = vpop.f32.mrf.mxu0
      %v1871 = vadd.f32 0.0, %v1870
      %1872 = vdwg.mxu0
      %1873 = vmatpush.msra.mxu0 0.0
      %1874 = vmatpush.msra.mxu0 0.0
      %1875 = vmatpush.msra.mxu0 0.0
      %1876 = vmatpush.msra.mxu0 0.0
      %1877 = vmatpush.msra.mxu0 0.0
      %1878 = vmatpush.msra.mxu0 0.0
      %1879 = vmatpush.msra.mxu0 0.0
      %1880 = vmatpush.msra.mxu0 0.0
      %1881 = vmatpush.msra.mxu0 0.0
      %1882 = vmatpush.msra.mxu0 0.0
      %1883 = vmatpush.msra.mxu0 0.0
      %1884 = vmatpush.msra.mxu0 0.0
      %1885 = vmatpush.msra.mxu0 0.0
      %1886 = vmatpush.msra.mxu0 0.0
      %1887 = vmatpush.msra.mxu0 0.0
      %1888 = vmatpush.msra.mxu0 %v1249
      %1889 = vmatmul.f32.gmra.mxu0 %v1251
      %v1890 = vpop.f32.mrf.mxu0
      %v1891 = vadd.f32 0.0, %v1890
      %1892 = vdwg.mxu0
      %v1893 = vpack.c.bf16 %v615, %v595
      %v1894 = vpack.c.bf16 %v655, %v635
      %v1895 = vpack.c.bf16 %v695, %v675
      %v1896 = vpack.c.bf16 %v735, %v715
      %v1897 = vpack.c.bf16 %v775, %v755
      %v1898 = vpack.c.bf16 %v815, %v795
      %v1899 = vpack.c.bf16 %v855, %v835
      %v1900 = vpack.c.bf16 %v895, %v875
      %v1901 = vpack.c.bf16 %v935, %v915
      %v1902 = vpack.c.bf16 %v975, %v955
      %v1903 = vpack.c.bf16 %v1015, %v995
      %v1904 = vpack.c.bf16 %v1055, %v1035
      %v1905 = vpack.c.bf16 %v1095, %v1075
      %v1906 = vpack.c.bf16 %v1135, %v1115
      %v1907 = vpack.c.bf16 %v1175, %v1155
      %v1908 = vpack.c.bf16 %v1215, %v1195
      %v1925 = vrot.slane %v1893, 2
      %v1926 = vrot.slane %v1894, 4
      %v1927 = vrot.slane %v1894, 6
      %v1928 = vrot.slane %v1895, 2
      %v1929 = vrot.slane %v1896, 4
      %v1930 = vrot.slane %v1896, 6
      %v1931 = vrot.slane %v1897, 2
      %v1932 = vrot.slane %v1898, 4
      %v1933 = vrot.slane %v1898, 6
      %v1934 = vrot.slane %v1899, 2
      %v1935 = vrot.slane %v1900, 4
      %v1936 = vrot.slane %v1900, 6
      %v1937 = vrot.slane %v1901, 2
      %v1938 = vrot.slane %v1902, 4
      %v1939 = vrot.slane %v1902, 6
      %v1940 = vrot.slane %v1903, 2
      %v1941 = vrot.slane %v1904, 4
      %v1942 = vrot.slane %v1904, 6
      %v1943 = vrot.slane %v1905, 2
      %v1944 = vrot.slane %v1906, 4
      %v1945 = vrot.slane %v1906, 6
      %v1946 = vrot.slane %v1907, 2
      %v1947 = vrot.slane %v1908, 4
      %v1948 = vrot.slane %v1908, 6
      %vm1949 = vcmask 1041408
      %v1952 = vsel %vm1949, %v1893, %v1925
      %vm1953 = vcmask 1045508
      %v1956 = vsel %vm1953, %v1926, %v1927
      %vm1957 = vcmask 1043456
      %v1958 = vsel %vm1957, %v1952, %v1956
      %v1961 = vsel %vm1949, %v1895, %v1928
      %v1964 = vsel %vm1953, %v1929, %v1930
      %v1965 = vsel %vm1957, %v1961, %v1964
      %v1968 = vsel %vm1949, %v1897, %v1931
      %v1971 = vsel %vm1953, %v1932, %v1933
      %v1972 = vsel %vm1957, %v1968, %v1971
      %v1975 = vsel %vm1949, %v1899, %v1934
      %v1978 = vsel %vm1953, %v1935, %v1936
      %v1979 = vsel %vm1957, %v1975, %v1978
      %v1982 = vsel %vm1949, %v1901, %v1937
      %v1985 = vsel %vm1953, %v1938, %v1939
      %v1986 = vsel %vm1957, %v1982, %v1985
      %v1989 = vsel %vm1949, %v1903, %v1940
      %v1992 = vsel %vm1953, %v1941, %v1942
      %v1993 = vsel %vm1957, %v1989, %v1992
      %v1996 = vsel %vm1949, %v1905, %v1943
      %v1999 = vsel %vm1953, %v1944, %v1945
      %v2000 = vsel %vm1957, %v1996, %v1999
      %v2003 = vsel %vm1949, %v1907, %v1946
      %v2006 = vsel %vm1953, %v1947, %v1948
      %v2007 = vsel %vm1957, %v2003, %v2006
      %2016 = vst [vmem:[%s444] sm:$0xff] %v1958
      %2017 = vst [vmem:[%s444 + $0x8] sm:$0xff] %v1965
      %2018 = vst [vmem:[%s444 + $0x10] sm:$0xff] %v1972
      %2019 = vst [vmem:[%s444 + $0x18] sm:$0xff] %v1979
      %2020 = vst [vmem:[%s444 + $0x20] sm:$0xff] %v1986
      %2021 = vst [vmem:[%s444 + $0x28] sm:$0xff] %v1993
      %2022 = vst [vmem:[%s444 + $0x30] sm:$0xff] %v2000
      %2023 = vst [vmem:[%s444 + $0x38] sm:$0xff] %v2007
      %v2024 = vpack.c.bf16 %v1291, %v1271
      %v2025 = vpack.c.bf16 %v1331, %v1311
      %v2026 = vpack.c.bf16 %v1371, %v1351
      %v2027 = vpack.c.bf16 %v1411, %v1391
      %v2028 = vpack.c.bf16 %v1451, %v1431
      %v2029 = vpack.c.bf16 %v1491, %v1471
      %v2030 = vpack.c.bf16 %v1531, %v1511
      %v2031 = vpack.c.bf16 %v1571, %v1551
      %v2032 = vpack.c.bf16 %v1611, %v1591
      %v2033 = vpack.c.bf16 %v1651, %v1631
      %v2034 = vpack.c.bf16 %v1691, %v1671
      %v2035 = vpack.c.bf16 %v1731, %v1711
      %v2036 = vpack.c.bf16 %v1771, %v1751
      %v2037 = vpack.c.bf16 %v1811, %v1791
      %v2038 = vpack.c.bf16 %v1851, %v1831
      %v2039 = vpack.c.bf16 %v1891, %v1871
      %v2056 = vrot.slane %v2024, 2
      %v2057 = vrot.slane %v2025, 4
      %v2058 = vrot.slane %v2025, 6
      %v2059 = vrot.slane %v2026, 2
      %v2060 = vrot.slane %v2027, 4
      %v2061 = vrot.slane %v2027, 6
      %v2062 = vrot.slane %v2028, 2
      %v2063 = vrot.slane %v2029, 4
      %v2064 = vrot.slane %v2029, 6
      %v2065 = vrot.slane %v2030, 2
      %v2066 = vrot.slane %v2031, 4
      %v2067 = vrot.slane %v2031, 6
      %v2068 = vrot.slane %v2032, 2
      %v2069 = vrot.slane %v2033, 4
      %v2070 = vrot.slane %v2033, 6
      %v2071 = vrot.slane %v2034, 2
      %v2072 = vrot.slane %v2035, 4
      %v2073 = vrot.slane %v2035, 6
      %v2074 = vrot.slane %v2036, 2
      %v2075 = vrot.slane %v2037, 4
      %v2076 = vrot.slane %v2037, 6
      %v2077 = vrot.slane %v2038, 2
      %v2078 = vrot.slane %v2039, 4
      %v2079 = vrot.slane %v2039, 6
      %v2082 = vsel %vm1949, %v2024, %v2056
      %v2085 = vsel %vm1953, %v2057, %v2058
      %v2086 = vsel %vm1957, %v2082, %v2085
      %v2089 = vsel %vm1949, %v2026, %v2059
      %v2092 = vsel %vm1953, %v2060, %v2061
      %v2093 = vsel %vm1957, %v2089, %v2092
      %v2096 = vsel %vm1949, %v2028, %v2062
      %v2099 = vsel %vm1953, %v2063, %v2064
      %v2100 = vsel %vm1957, %v2096, %v2099
      %v2103 = vsel %vm1949, %v2030, %v2065
      %v2106 = vsel %vm1953, %v2066, %v2067
      %v2107 = vsel %vm1957, %v2103, %v2106
      %v2110 = vsel %vm1949, %v2032, %v2068
      %v2113 = vsel %vm1953, %v2069, %v2070
      %v2114 = vsel %vm1957, %v2110, %v2113
      %v2117 = vsel %vm1949, %v2034, %v2071
      %v2120 = vsel %vm1953, %v2072, %v2073
      %v2121 = vsel %vm1957, %v2117, %v2120
      %v2124 = vsel %vm1949, %v2036, %v2074
      %v2127 = vsel %vm1953, %v2075, %v2076
      %v2128 = vsel %vm1957, %v2124, %v2127
      %v2131 = vsel %vm1949, %v2038, %v2077
      %v2134 = vsel %vm1953, %v2078, %v2079
      %v2135 = vsel %vm1957, %v2131, %v2134
      %2144 = vst [vmem:[%s454] sm:$0xff] %v2086
      %2145 = vst [vmem:[%s454 + $0x8] sm:$0xff] %v2093
      %2146 = vst [vmem:[%s454 + $0x10] sm:$0xff] %v2100
      %2147 = vst [vmem:[%s454 + $0x18] sm:$0xff] %v2107
      %2148 = vst [vmem:[%s454 + $0x20] sm:$0xff] %v2114
      %2149 = vst [vmem:[%s454 + $0x28] sm:$0xff] %v2121
      %2150 = vst [vmem:[%s454 + $0x30] sm:$0xff] %v2128
      %2151 = vst [vmem:[%s454 + $0x38] sm:$0xff] %v2135
      %v2152 = vld [vmem:[#allocation2] sm:$0xff]
      %v2153 = vld [vmem:[#allocation2 + $0x8] sm:$0xff]
      %v2154 = vld [vmem:[#allocation2 + $0x10] sm:$0xff]
      %v2155 = vld [vmem:[#allocation2 + $0x18] sm:$0xff]
      %v2156 = vld [vmem:[#allocation2 + $0x20] sm:$0xff]
      %v2157 = vld [vmem:[#allocation2 + $0x28] sm:$0xff]
      %v2158 = vld [vmem:[#allocation2 + $0x30] sm:$0xff]
      %v2159 = vld [vmem:[#allocation2 + $0x38] sm:$0xff]
      %v2160 = vld [vmem:[#allocation2 + $0x40] sm:$0xff]
      %v2161 = vld [vmem:[#allocation2 + $0x48] sm:$0xff]
      %v2162 = vld [vmem:[#allocation2 + $0x50] sm:$0xff]
      %v2163 = vld [vmem:[#allocation2 + $0x58] sm:$0xff]
      %v2164 = vld [vmem:[#allocation2 + $0x60] sm:$0xff]
      %v2165 = vld [vmem:[#allocation2 + $0x68] sm:$0xff]
      %v2166 = vld [vmem:[#allocation2 + $0x70] sm:$0xff]
      %v2167 = vld [vmem:[#allocation2 + $0x78] sm:$0xff]
      %v2200 = vrot.slane %v615, 4
      %v2201 = vrot.slane %v655, 4
      %v2202 = vrot.slane %v695, 4
      %v2203 = vrot.slane %v735, 4
      %v2204 = vrot.slane %v775, 4
      %v2205 = vrot.slane %v815, 4
      %v2206 = vrot.slane %v855, 4
      %v2207 = vrot.slane %v895, 4
      %v2208 = vrot.slane %v935, 4
      %v2209 = vrot.slane %v975, 4
      %v2210 = vrot.slane %v1015, 4
      %v2211 = vrot.slane %v1055, 4
      %v2212 = vrot.slane %v1095, 4
      %v2213 = vrot.slane %v1135, 4
      %v2214 = vrot.slane %v1175, 4
      %v2215 = vrot.slane %v1215, 4
      %v2216 = vsel %vm1957, %v595, %v2200
      %v2217 = vsel %vm1957, %v635, %v2201
      %v2218 = vsel %vm1957, %v675, %v2202
      %v2219 = vsel %vm1957, %v715, %v2203
      %v2220 = vsel %vm1957, %v755, %v2204
      %v2221 = vsel %vm1957, %v795, %v2205
      %v2222 = vsel %vm1957, %v835, %v2206
      %v2223 = vsel %vm1957, %v875, %v2207
      %v2224 = vsel %vm1957, %v915, %v2208
      %v2225 = vsel %vm1957, %v955, %v2209
      %v2226 = vsel %vm1957, %v995, %v2210
      %v2227 = vsel %vm1957, %v1035, %v2211
      %v2228 = vsel %vm1957, %v1075, %v2212
      %v2229 = vsel %vm1957, %v1115, %v2213
      %v2230 = vsel %vm1957, %v1155, %v2214
      %v2231 = vsel %vm1957, %v1195, %v2215
      %v2248 = vadd.f32 %v2152, %v2216
      %v2249 = vadd.f32 %v2153, %v2217
      %v2250 = vadd.f32 %v2154, %v2218
      %v2251 = vadd.f32 %v2155, %v2219
      %v2252 = vadd.f32 %v2156, %v2220
      %v2253 = vadd.f32 %v2157, %v2221
      %v2254 = vadd.f32 %v2158, %v2222
      %v2255 = vadd.f32 %v2159, %v2223
      %v2256 = vadd.f32 %v2160, %v2224
      %v2257 = vadd.f32 %v2161, %v2225
      %v2258 = vadd.f32 %v2162, %v2226
      %v2259 = vadd.f32 %v2163, %v2227
      %v2260 = vadd.f32 %v2164, %v2228
      %v2261 = vadd.f32 %v2165, %v2229
      %v2262 = vadd.f32 %v2166, %v2230
      %v2263 = vadd.f32 %v2167, %v2231
      %2264 = vst [vmem:[#allocation2] sm:$0xff] %v2248
      %2265 = vst [vmem:[#allocation2 + $0x8] sm:$0xff] %v2249
      %2266 = vst [vmem:[#allocation2 + $0x10] sm:$0xff] %v2250
      %2267 = vst [vmem:[#allocation2 + $0x18] sm:$0xff] %v2251
      %2268 = vst [vmem:[#allocation2 + $0x20] sm:$0xff] %v2252
      %2269 = vst [vmem:[#allocation2 + $0x28] sm:$0xff] %v2253
      %2270 = vst [vmem:[#allocation2 + $0x30] sm:$0xff] %v2254
      %2271 = vst [vmem:[#allocation2 + $0x38] sm:$0xff] %v2255
      %2272 = vst [vmem:[#allocation2 + $0x40] sm:$0xff] %v2256
      %2273 = vst [vmem:[#allocation2 + $0x48] sm:$0xff] %v2257
      %2274 = vst [vmem:[#allocation2 + $0x50] sm:$0xff] %v2258
      %2275 = vst [vmem:[#allocation2 + $0x58] sm:$0xff] %v2259
      %2276 = vst [vmem:[#allocation2 + $0x60] sm:$0xff] %v2260
      %2277 = vst [vmem:[#allocation2 + $0x68] sm:$0xff] %v2261
      %2278 = vst [vmem:[#allocation2 + $0x70] sm:$0xff] %v2262
      %2279 = vst [vmem:[#allocation2 + $0x78] sm:$0xff] %v2263
      %v2280 = vld [vmem:[#allocation3] sm:$0xff]
      %v2281 = vld [vmem:[#allocation3 + $0x8] sm:$0xff]
      %v2282 = vld [vmem:[#allocation3 + $0x10] sm:$0xff]
      %v2283 = vld [vmem:[#allocation3 + $0x18] sm:$0xff]
      %v2284 = vld [vmem:[#allocation3 + $0x20] sm:$0xff]
      %v2285 = vld [vmem:[#allocation3 + $0x28] sm:$0xff]
      %v2286 = vld [vmem:[#allocation3 + $0x30] sm:$0xff]
      %v2287 = vld [vmem:[#allocation3 + $0x38] sm:$0xff]
      %v2288 = vld [vmem:[#allocation3 + $0x40] sm:$0xff]
      %v2289 = vld [vmem:[#allocation3 + $0x48] sm:$0xff]
      %v2290 = vld [vmem:[#allocation3 + $0x50] sm:$0xff]
      %v2291 = vld [vmem:[#allocation3 + $0x58] sm:$0xff]
      %v2292 = vld [vmem:[#allocation3 + $0x60] sm:$0xff]
      %v2293 = vld [vmem:[#allocation3 + $0x68] sm:$0xff]
      %v2294 = vld [vmem:[#allocation3 + $0x70] sm:$0xff]
      %v2295 = vld [vmem:[#allocation3 + $0x78] sm:$0xff]
      %v2296 = vmul.f32 %v595, %v595
      %v2297 = vmul.f32 %v615, %v615
      %v2298 = vmul.f32 %v635, %v635
      %v2299 = vmul.f32 %v655, %v655
      %v2300 = vmul.f32 %v675, %v675
      %v2301 = vmul.f32 %v695, %v695
      %v2302 = vmul.f32 %v715, %v715
      %v2303 = vmul.f32 %v735, %v735
      %v2304 = vmul.f32 %v755, %v755
      %v2305 = vmul.f32 %v775, %v775
      %v2306 = vmul.f32 %v795, %v795
      %v2307 = vmul.f32 %v815, %v815
      %v2308 = vmul.f32 %v835, %v835
      %v2309 = vmul.f32 %v855, %v855
      %v2310 = vmul.f32 %v875, %v875
      %v2311 = vmul.f32 %v895, %v895
      %v2312 = vmul.f32 %v915, %v915
      %v2313 = vmul.f32 %v935, %v935
      %v2314 = vmul.f32 %v955, %v955
      %v2315 = vmul.f32 %v975, %v975
      %v2316 = vmul.f32 %v995, %v995
      %v2317 = vmul.f32 %v1015, %v1015
      %v2318 = vmul.f32 %v1035, %v1035
      %v2319 = vmul.f32 %v1055, %v1055
      %v2320 = vmul.f32 %v1075, %v1075
      %v2321 = vmul.f32 %v1095, %v1095
      %v2322 = vmul.f32 %v1115, %v1115
      %v2323 = vmul.f32 %v1135, %v1135
      %v2324 = vmul.f32 %v1155, %v1155
      %v2325 = vmul.f32 %v1175, %v1175
      %v2326 = vmul.f32 %v1195, %v1195
      %v2327 = vmul.f32 %v1215, %v1215
      %v2360 = vrot.slane %v2297, 4
      %v2361 = vrot.slane %v2299, 4
      %v2362 = vrot.slane %v2301, 4
      %v2363 = vrot.slane %v2303, 4
      %v2364 = vrot.slane %v2305, 4
      %v2365 = vrot.slane %v2307, 4
      %v2366 = vrot.slane %v2309, 4
      %v2367 = vrot.slane %v2311, 4
      %v2368 = vrot.slane %v2313, 4
      %v2369 = vrot.slane %v2315, 4
      %v2370 = vrot.slane %v2317, 4
      %v2371 = vrot.slane %v2319, 4
      %v2372 = vrot.slane %v2321, 4
      %v2373 = vrot.slane %v2323, 4
      %v2374 = vrot.slane %v2325, 4
      %v2375 = vrot.slane %v2327, 4
      %v2376 = vsel %vm1957, %v2296, %v2360
      %v2377 = vsel %vm1957, %v2298, %v2361
      %v2378 = vsel %vm1957, %v2300, %v2362
      %v2379 = vsel %vm1957, %v2302, %v2363
      %v2380 = vsel %vm1957, %v2304, %v2364
      %v2381 = vsel %vm1957, %v2306, %v2365
      %v2382 = vsel %vm1957, %v2308, %v2366
      %v2383 = vsel %vm1957, %v2310, %v2367
      %v2384 = vsel %vm1957, %v2312, %v2368
      %v2385 = vsel %vm1957, %v2314, %v2369
      %v2386 = vsel %vm1957, %v2316, %v2370
      %v2387 = vsel %vm1957, %v2318, %v2371
      %v2388 = vsel %vm1957, %v2320, %v2372
      %v2389 = vsel %vm1957, %v2322, %v2373
      %v2390 = vsel %vm1957, %v2324, %v2374
      %v2391 = vsel %vm1957, %v2326, %v2375
      %v2408 = vadd.f32 %v2280, %v2376
      %v2409 = vadd.f32 %v2281, %v2377
      %v2410 = vadd.f32 %v2282, %v2378
      %v2411 = vadd.f32 %v2283, %v2379
      %v2412 = vadd.f32 %v2284, %v2380
      %v2413 = vadd.f32 %v2285, %v2381
      %v2414 = vadd.f32 %v2286, %v2382
      %v2415 = vadd.f32 %v2287, %v2383
      %v2416 = vadd.f32 %v2288, %v2384
      %v2417 = vadd.f32 %v2289, %v2385
      %v2418 = vadd.f32 %v2290, %v2386
      %v2419 = vadd.f32 %v2291, %v2387
      %v2420 = vadd.f32 %v2292, %v2388
      %v2421 = vadd.f32 %v2293, %v2389
      %v2422 = vadd.f32 %v2294, %v2390
      %v2423 = vadd.f32 %v2295, %v2391
      %2424 = vst [vmem:[#allocation3] sm:$0xff] %v2408
      %2425 = vst [vmem:[#allocation3 + $0x8] sm:$0xff] %v2409
      %2426 = vst [vmem:[#allocation3 + $0x10] sm:$0xff] %v2410
      %2427 = vst [vmem:[#allocation3 + $0x18] sm:$0xff] %v2411
      %2428 = vst [vmem:[#allocation3 + $0x20] sm:$0xff] %v2412
      %2429 = vst [vmem:[#allocation3 + $0x28] sm:$0xff] %v2413
      %2430 = vst [vmem:[#allocation3 + $0x30] sm:$0xff] %v2414
      %2431 = vst [vmem:[#allocation3 + $0x38] sm:$0xff] %v2415
      %2432 = vst [vmem:[#allocation3 + $0x40] sm:$0xff] %v2416
      %2433 = vst [vmem:[#allocation3 + $0x48] sm:$0xff] %v2417
      %2434 = vst [vmem:[#allocation3 + $0x50] sm:$0xff] %v2418
      %2435 = vst [vmem:[#allocation3 + $0x58] sm:$0xff] %v2419
      %2436 = vst [vmem:[#allocation3 + $0x60] sm:$0xff] %v2420
      %2437 = vst [vmem:[#allocation3 + $0x68] sm:$0xff] %v2421
      %2438 = vst [vmem:[#allocation3 + $0x70] sm:$0xff] %v2422
      %2439 = vst [vmem:[#allocation3 + $0x78] sm:$0xff] %v2423
      %v2440 = vld [vmem:[#allocation4] sm:$0xff]
      %v2441 = vld [vmem:[#allocation4 + $0x8] sm:$0xff]
      %v2442 = vld [vmem:[#allocation4 + $0x10] sm:$0xff]
      %v2443 = vld [vmem:[#allocation4 + $0x18] sm:$0xff]
      %v2444 = vld [vmem:[#allocation4 + $0x20] sm:$0xff]
      %v2445 = vld [vmem:[#allocation4 + $0x28] sm:$0xff]
      %v2446 = vld [vmem:[#allocation4 + $0x30] sm:$0xff]
      %v2447 = vld [vmem:[#allocation4 + $0x38] sm:$0xff]
      %v2448 = vld [vmem:[#allocation4 + $0x40] sm:$0xff]
      %v2449 = vld [vmem:[#allocation4 + $0x48] sm:$0xff]
      %v2450 = vld [vmem:[#allocation4 + $0x50] sm:$0xff]
      %v2451 = vld [vmem:[#allocation4 + $0x58] sm:$0xff]
      %v2452 = vld [vmem:[#allocation4 + $0x60] sm:$0xff]
      %v2453 = vld [vmem:[#allocation4 + $0x68] sm:$0xff]
      %v2454 = vld [vmem:[#allocation4 + $0x70] sm:$0xff]
      %v2455 = vld [vmem:[#allocation4 + $0x78] sm:$0xff]
      %v2488 = vrot.slane %v1291, 4
      %v2489 = vrot.slane %v1331, 4
      %v2490 = vrot.slane %v1371, 4
      %v2491 = vrot.slane %v1411, 4
      %v2492 = vrot.slane %v1451, 4
      %v2493 = vrot.slane %v1491, 4
      %v2494 = vrot.slane %v1531, 4
      %v2495 = vrot.slane %v1571, 4
      %v2496 = vrot.slane %v1611, 4
      %v2497 = vrot.slane %v1651, 4
      %v2498 = vrot.slane %v1691, 4
      %v2499 = vrot.slane %v1731, 4
      %v2500 = vrot.slane %v1771, 4
      %v2501 = vrot.slane %v1811, 4
      %v2502 = vrot.slane %v1851, 4
      %v2503 = vrot.slane %v1891, 4
      %v2504 = vsel %vm1957, %v1271, %v2488
      %v2505 = vsel %vm1957, %v1311, %v2489
      %v2506 = vsel %vm1957, %v1351, %v2490
      %v2507 = vsel %vm1957, %v1391, %v2491
      %v2508 = vsel %vm1957, %v1431, %v2492
      %v2509 = vsel %vm1957, %v1471, %v2493
      %v2510 = vsel %vm1957, %v1511, %v2494
      %v2511 = vsel %vm1957, %v1551, %v2495
      %v2512 = vsel %vm1957, %v1591, %v2496
      %v2513 = vsel %vm1957, %v1631, %v2497
      %v2514 = vsel %vm1957, %v1671, %v2498
      %v2515 = vsel %vm1957, %v1711, %v2499
      %v2516 = vsel %vm1957, %v1751, %v2500
      %v2517 = vsel %vm1957, %v1791, %v2501
      %v2518 = vsel %vm1957, %v1831, %v2502
      %v2519 = vsel %vm1957, %v1871, %v2503
      %v2536 = vadd.f32 %v2440, %v2504
      %v2537 = vadd.f32 %v2441, %v2505
      %v2538 = vadd.f32 %v2442, %v2506
      %v2539 = vadd.f32 %v2443, %v2507
      %v2540 = vadd.f32 %v2444, %v2508
      %v2541 = vadd.f32 %v2445, %v2509
      %v2542 = vadd.f32 %v2446, %v2510
      %v2543 = vadd.f32 %v2447, %v2511
      %v2544 = vadd.f32 %v2448, %v2512
      %v2545 = vadd.f32 %v2449, %v2513
      %v2546 = vadd.f32 %v2450, %v2514
      %v2547 = vadd.f32 %v2451, %v2515
      %v2548 = vadd.f32 %v2452, %v2516
      %v2549 = vadd.f32 %v2453, %v2517
      %v2550 = vadd.f32 %v2454, %v2518
      %v2551 = vadd.f32 %v2455, %v2519
      %2552 = vst [vmem:[#allocation4] sm:$0xff] %v2536
      %2553 = vst [vmem:[#allocation4 + $0x8] sm:$0xff] %v2537
      %2554 = vst [vmem:[#allocation4 + $0x10] sm:$0xff] %v2538
      %2555 = vst [vmem:[#allocation4 + $0x18] sm:$0xff] %v2539
      %2556 = vst [vmem:[#allocation4 + $0x20] sm:$0xff] %v2540
      %2557 = vst [vmem:[#allocation4 + $0x28] sm:$0xff] %v2541
      %2558 = vst [vmem:[#allocation4 + $0x30] sm:$0xff] %v2542
      %2559 = vst [vmem:[#allocation4 + $0x38] sm:$0xff] %v2543
      %2560 = vst [vmem:[#allocation4 + $0x40] sm:$0xff] %v2544
      %2561 = vst [vmem:[#allocation4 + $0x48] sm:$0xff] %v2545
      %2562 = vst [vmem:[#allocation4 + $0x50] sm:$0xff] %v2546
      %2563 = vst [vmem:[#allocation4 + $0x58] sm:$0xff] %v2547
      %2564 = vst [vmem:[#allocation4 + $0x60] sm:$0xff] %v2548
      %2565 = vst [vmem:[#allocation4 + $0x68] sm:$0xff] %v2549
      %2566 = vst [vmem:[#allocation4 + $0x70] sm:$0xff] %v2550
      %2567 = vst [vmem:[#allocation4 + $0x78] sm:$0xff] %v2551
      %v2568 = vld [vmem:[#allocation5] sm:$0xff]
      %v2569 = vld [vmem:[#allocation5 + $0x8] sm:$0xff]
      %v2570 = vld [vmem:[#allocation5 + $0x10] sm:$0xff]
      %v2571 = vld [vmem:[#allocation5 + $0x18] sm:$0xff]
      %v2572 = vld [vmem:[#allocation5 + $0x20] sm:$0xff]
      %v2573 = vld [vmem:[#allocation5 + $0x28] sm:$0xff]
      %v2574 = vld [vmem:[#allocation5 + $0x30] sm:$0xff]
      %v2575 = vld [vmem:[#allocation5 + $0x38] sm:$0xff]
      %v2576 = vld [vmem:[#allocation5 + $0x40] sm:$0xff]
      %v2577 = vld [vmem:[#allocation5 + $0x48] sm:$0xff]
      %v2578 = vld [vmem:[#allocation5 + $0x50] sm:$0xff]
      %v2579 = vld [vmem:[#allocation5 + $0x58] sm:$0xff]
      %v2580 = vld [vmem:[#allocation5 + $0x60] sm:$0xff]
      %v2581 = vld [vmem:[#allocation5 + $0x68] sm:$0xff]
      %v2582 = vld [vmem:[#allocation5 + $0x70] sm:$0xff]
      %v2583 = vld [vmem:[#allocation5 + $0x78] sm:$0xff]
      %v2584 = vmul.f32 %v1271, %v1271
      %v2585 = vmul.f32 %v1291, %v1291
      %v2586 = vmul.f32 %v1311, %v1311
      %v2587 = vmul.f32 %v1331, %v1331
      %v2588 = vmul.f32 %v1351, %v1351
      %v2589 = vmul.f32 %v1371, %v1371
      %v2590 = vmul.f32 %v1391, %v1391
      %v2591 = vmul.f32 %v1411, %v1411
      %v2592 = vmul.f32 %v1431, %v1431
      %v2593 = vmul.f32 %v1451, %v1451
      %v2594 = vmul.f32 %v1471, %v1471
      %v2595 = vmul.f32 %v1491, %v1491
      %v2596 = vmul.f32 %v1511, %v1511
      %v2597 = vmul.f32 %v1531, %v1531
      %v2598 = vmul.f32 %v1551, %v1551
      %v2599 = vmul.f32 %v1571, %v1571
      %v2600 = vmul.f32 %v1591, %v1591
      %v2601 = vmul.f32 %v1611, %v1611
      %v2602 = vmul.f32 %v1631, %v1631
      %v2603 = vmul.f32 %v1651, %v1651
      %v2604 = vmul.f32 %v1671, %v1671
      %v2605 = vmul.f32 %v1691, %v1691
      %v2606 = vmul.f32 %v1711, %v1711
      %v2607 = vmul.f32 %v1731, %v1731
      %v2608 = vmul.f32 %v1751, %v1751
      %v2609 = vmul.f32 %v1771, %v1771
      %v2610 = vmul.f32 %v1791, %v1791
      %v2611 = vmul.f32 %v1811, %v1811
      %v2612 = vmul.f32 %v1831, %v1831
      %v2613 = vmul.f32 %v1851, %v1851
      %v2614 = vmul.f32 %v1871, %v1871
      %v2615 = vmul.f32 %v1891, %v1891
      %v2648 = vrot.slane %v2585, 4
      %v2649 = vrot.slane %v2587, 4
      %v2650 = vrot.slane %v2589, 4
      %v2651 = vrot.slane %v2591, 4
      %v2652 = vrot.slane %v2593, 4
      %v2653 = vrot.slane %v2595, 4
      %v2654 = vrot.slane %v2597, 4
      %v2655 = vrot.slane %v2599, 4
      %v2656 = vrot.slane %v2601, 4
      %v2657 = vrot.slane %v2603, 4
      %v2658 = vrot.slane %v2605, 4
      %v2659 = vrot.slane %v2607, 4
      %v2660 = vrot.slane %v2609, 4
      %v2661 = vrot.slane %v2611, 4
      %v2662 = vrot.slane %v2613, 4
      %v2663 = vrot.slane %v2615, 4
      %v2664 = vsel %vm1957, %v2584, %v2648
      %v2665 = vsel %vm1957, %v2586, %v2649
      %v2666 = vsel %vm1957, %v2588, %v2650
      %v2667 = vsel %vm1957, %v2590, %v2651
      %v2668 = vsel %vm1957, %v2592, %v2652
      %v2669 = vsel %vm1957, %v2594, %v2653
      %v2670 = vsel %vm1957, %v2596, %v2654
      %v2671 = vsel %vm1957, %v2598, %v2655
      %v2672 = vsel %vm1957, %v2600, %v2656
      %v2673 = vsel %vm1957, %v2602, %v2657
      %v2674 = vsel %vm1957, %v2604, %v2658
      %v2675 = vsel %vm1957, %v2606, %v2659
      %v2676 = vsel %vm1957, %v2608, %v2660
      %v2677 = vsel %vm1957, %v2610, %v2661
      %v2678 = vsel %vm1957, %v2612, %v2662
      %v2679 = vsel %vm1957, %v2614, %v2663
      %v2696 = vadd.f32 %v2568, %v2664
      %v2697 = vadd.f32 %v2569, %v2665
      %v2698 = vadd.f32 %v2570, %v2666
      %v2699 = vadd.f32 %v2571, %v2667
      %v2700 = vadd.f32 %v2572, %v2668
      %v2701 = vadd.f32 %v2573, %v2669
      %v2702 = vadd.f32 %v2574, %v2670
      %v2703 = vadd.f32 %v2575, %v2671
      %v2704 = vadd.f32 %v2576, %v2672
      %v2705 = vadd.f32 %v2577, %v2673
      %v2706 = vadd.f32 %v2578, %v2674
      %v2707 = vadd.f32 %v2579, %v2675
      %v2708 = vadd.f32 %v2580, %v2676
      %v2709 = vadd.f32 %v2581, %v2677
      %v2710 = vadd.f32 %v2582, %v2678
      %v2711 = vadd.f32 %v2583, %v2679
      %2712 = vst [vmem:[#allocation5] sm:$0xff] %v2696
      %2713 = vst [vmem:[#allocation5 + $0x8] sm:$0xff] %v2697
      %2714 = vst [vmem:[#allocation5 + $0x10] sm:$0xff] %v2698
      %2715 = vst [vmem:[#allocation5 + $0x18] sm:$0xff] %v2699
      %2716 = vst [vmem:[#allocation5 + $0x20] sm:$0xff] %v2700
      %2717 = vst [vmem:[#allocation5 + $0x28] sm:$0xff] %v2701
      %2718 = vst [vmem:[#allocation5 + $0x30] sm:$0xff] %v2702
      %2719 = vst [vmem:[#allocation5 + $0x38] sm:$0xff] %v2703
      %2720 = vst [vmem:[#allocation5 + $0x40] sm:$0xff] %v2704
      %2721 = vst [vmem:[#allocation5 + $0x48] sm:$0xff] %v2705
      %2722 = vst [vmem:[#allocation5 + $0x50] sm:$0xff] %v2706
      %2723 = vst [vmem:[#allocation5 + $0x58] sm:$0xff] %v2707
      %2724 = vst [vmem:[#allocation5 + $0x60] sm:$0xff] %v2708
      %2725 = vst [vmem:[#allocation5 + $0x68] sm:$0xff] %v2709
      %2726 = vst [vmem:[#allocation5 + $0x70] sm:$0xff] %v2710
      %2727 = vst [vmem:[#allocation5 + $0x78] sm:$0xff] %v2711
      // Predicated region
      $region41: #{attention_block.3} parent=35 // pred_check
        %p2728 = pneg %p472
      $region42: #{attention_block.3} parent=35 // pred_check_branch
        %2730 = sbr.rel (%p2728) target = $region44
      $region43: #{attention_block.3} parent=35 // pred_region
        %v2731 = vld [vmem:[#allocation2] sm:$0xff]
        %v2732 = vld [vmem:[#allocation2 + $0x8] sm:$0xff]
        %v2733 = vld [vmem:[#allocation2 + $0x10] sm:$0xff]
        %v2734 = vld [vmem:[#allocation2 + $0x18] sm:$0xff]
        %v2735 = vld [vmem:[#allocation2 + $0x20] sm:$0xff]
        %v2736 = vld [vmem:[#allocation2 + $0x28] sm:$0xff]
        %v2737 = vld [vmem:[#allocation2 + $0x30] sm:$0xff]
        %v2738 = vld [vmem:[#allocation2 + $0x38] sm:$0xff]
        %v2739 = vld [vmem:[#allocation2 + $0x40] sm:$0xff]
        %v2740 = vld [vmem:[#allocation2 + $0x48] sm:$0xff]
        %v2741 = vld [vmem:[#allocation2 + $0x50] sm:$0xff]
        %v2742 = vld [vmem:[#allocation2 + $0x58] sm:$0xff]
        %v2743 = vld [vmem:[#allocation2 + $0x60] sm:$0xff]
        %v2744 = vld [vmem:[#allocation2 + $0x68] sm:$0xff]
        %v2745 = vld [vmem:[#allocation2 + $0x70] sm:$0xff]
        %v2746 = vld [vmem:[#allocation2 + $0x78] sm:$0xff]
        %2763 = vst [vmem:[#allocation1] ss:$2 sm:$0xff] %v2731
        %s2764 = scalar_lea.vmem [#allocation1], 16
        %2765 = vst [vmem:[%s2764] ss:$2 sm:$0xff] %v2732
        %s2766 = scalar_lea.vmem [#allocation1], 32
        %2767 = vst [vmem:[%s2766] ss:$2 sm:$0xff] %v2733
        %s2768 = scalar_lea.vmem [#allocation1], 48
        %2769 = vst [vmem:[%s2768] ss:$2 sm:$0xff] %v2734
        %v2770 = vld.sshfl [vmem:[#allocation1] sm:$0xff pattern:$0x75316420]
        %v2771 = vld.sshfl [vmem:[#allocation1 + $0x8] sm:$0xff pattern:$0x75316420]
        %v2772 = vld.sshfl [vmem:[#allocation1 + $0x10] sm:$0xff pattern:$0x75316420]
        %v2773 = vld.sshfl [vmem:[#allocation1 + $0x18] sm:$0xff pattern:$0x75316420]
        %v2774 = vld.sshfl [vmem:[#allocation1 + $0x20] sm:$0xff pattern:$0x75316420]
        %v2775 = vld.sshfl [vmem:[#allocation1 + $0x28] sm:$0xff pattern:$0x75316420]
        %v2776 = vld.sshfl [vmem:[#allocation1 + $0x30] sm:$0xff pattern:$0x75316420]
        %v2777 = vld.sshfl [vmem:[#allocation1 + $0x38] sm:$0xff pattern:$0x75316420]
        %2778 = vst [vmem:[#allocation1] ss:$2 sm:$0xff] %v2735
        %2779 = vst [vmem:[%s2764] ss:$2 sm:$0xff] %v2736
        %2780 = vst [vmem:[%s2766] ss:$2 sm:$0xff] %v2737
        %2781 = vst [vmem:[%s2768] ss:$2 sm:$0xff] %v2738
        %v2782 = vld.sshfl [vmem:[#allocation1] sm:$0xff pattern:$0x75316420]
        %v2783 = vld.sshfl [vmem:[#allocation1 + $0x8] sm:$0xff pattern:$0x75316420]
        %v2784 = vld.sshfl [vmem:[#allocation1 + $0x10] sm:$0xff pattern:$0x75316420]
        %v2785 = vld.sshfl [vmem:[#allocation1 + $0x18] sm:$0xff pattern:$0x75316420]
        %v2786 = vld.sshfl [vmem:[#allocation1 + $0x20] sm:$0xff pattern:$0x75316420]
        %v2787 = vld.sshfl [vmem:[#allocation1 + $0x28] sm:$0xff pattern:$0x75316420]
        %v2788 = vld.sshfl [vmem:[#allocation1 + $0x30] sm:$0xff pattern:$0x75316420]
        %v2789 = vld.sshfl [vmem:[#allocation1 + $0x38] sm:$0xff pattern:$0x75316420]
        %2790 = vst [vmem:[#allocation1] ss:$2 sm:$0xff] %v2739
        %2791 = vst [vmem:[%s2764] ss:$2 sm:$0xff] %v2740
        %2792 = vst [vmem:[%s2766] ss:$2 sm:$0xff] %v2741
        %2793 = vst [vmem:[%s2768] ss:$2 sm:$0xff] %v2742
        %v2794 = vld.sshfl [vmem:[#allocation1] sm:$0xff pattern:$0x75316420]
        %v2795 = vld.sshfl [vmem:[#allocation1 + $0x8] sm:$0xff pattern:$0x75316420]
        %v2796 = vld.sshfl [vmem:[#allocation1 + $0x10] sm:$0xff pattern:$0x75316420]
        %v2797 = vld.sshfl [vmem:[#allocation1 + $0x18] sm:$0xff pattern:$0x75316420]
        %v2798 = vld.sshfl [vmem:[#allocation1 + $0x20] sm:$0xff pattern:$0x75316420]
        %v2799 = vld.sshfl [vmem:[#allocation1 + $0x28] sm:$0xff pattern:$0x75316420]
        %v2800 = vld.sshfl [vmem:[#allocation1 + $0x30] sm:$0xff pattern:$0x75316420]
        %v2801 = vld.sshfl [vmem:[#allocation1 + $0x38] sm:$0xff pattern:$0x75316420]
        %2802 = vst [vmem:[#allocation1] ss:$2 sm:$0xff] %v2743
        %2803 = vst [vmem:[%s2764] ss:$2 sm:$0xff] %v2744
        %2804 = vst [vmem:[%s2766] ss:$2 sm:$0xff] %v2745
        %2805 = vst [vmem:[%s2768] ss:$2 sm:$0xff] %v2746
        %v2806 = vld.sshfl [vmem:[#allocation1] sm:$0xff pattern:$0x75316420]
        %v2807 = vld.sshfl [vmem:[#allocation1 + $0x8] sm:$0xff pattern:$0x75316420]
        %v2808 = vld.sshfl [vmem:[#allocation1 + $0x10] sm:$0xff pattern:$0x75316420]
        %v2809 = vld.sshfl [vmem:[#allocation1 + $0x18] sm:$0xff pattern:$0x75316420]
        %v2810 = vld.sshfl [vmem:[#allocation1 + $0x20] sm:$0xff pattern:$0x75316420]
        %v2811 = vld.sshfl [vmem:[#allocation1 + $0x28] sm:$0xff pattern:$0x75316420]
        %v2812 = vld.sshfl [vmem:[#allocation1 + $0x30] sm:$0xff pattern:$0x75316420]
        %v2813 = vld.sshfl [vmem:[#allocation1 + $0x38] sm:$0xff pattern:$0x75316420]
        %v2846 = vsel %vm1957, %v2770, 0.0
        %v2847 = vsel %vm1957, %v2771, 0.0
        %v2848 = vadd.f32 %v2846, %v2847
        %v2849 = vsel %vm1957, %v2772, 0.0
        %v2850 = vadd.f32 %v2848, %v2849
        %v2851 = vsel %vm1957, %v2773, 0.0
        %v2852 = vadd.f32 %v2850, %v2851
        %v2853 = vsel %vm1957, %v2774, 0.0
        %v2854 = vadd.f32 %v2852, %v2853
        %v2855 = vsel %vm1957, %v2775, 0.0
        %v2856 = vadd.f32 %v2854, %v2855
        %v2857 = vsel %vm1957, %v2776, 0.0
        %v2858 = vadd.f32 %v2856, %v2857
        %v2859 = vsel %vm1957, %v2777, 0.0
        %v2860 = vadd.f32 %v2858, %v2859
        %v2861 = vsel %vm1957, %v2782, 0.0
        %v2862 = vadd.f32 %v2860, %v2861
        %v2863 = vsel %vm1957, %v2783, 0.0
        %v2864 = vadd.f32 %v2862, %v2863
        %v2865 = vsel %vm1957, %v2784, 0.0
        %v2866 = vadd.f32 %v2864, %v2865
        %v2867 = vsel %vm1957, %v2785, 0.0
        %v2868 = vadd.f32 %v2866, %v2867
        %v2869 = vsel %vm1957, %v2786, 0.0
        %v2870 = vadd.f32 %v2868, %v2869
        %v2871 = vsel %vm1957, %v2787, 0.0
        %v2872 = vadd.f32 %v2870, %v2871
        %v2873 = vsel %vm1957, %v2788, 0.0
        %v2874 = vadd.f32 %v2872, %v2873
        %v2875 = vsel %vm1957, %v2789, 0.0
        %v2876 = vadd.f32 %v2874, %v2875
        %v2877 = vsel %vm1957, %v2794, 0.0
        %v2878 = vadd.f32 %v2876, %v2877
        %v2879 = vsel %vm1957, %v2795, 0.0
        %v2880 = vadd.f32 %v2878, %v2879
        %v2881 = vsel %vm1957, %v2796, 0.0
        %v2882 = vadd.f32 %v2880, %v2881
        %v2883 = vsel %vm1957, %v2797, 0.0
        %v2884 = vadd.f32 %v2882, %v2883
        %v2885 = vsel %vm1957, %v2798, 0.0
        %v2886 = vadd.f32 %v2884, %v2885
        %v2887 = vsel %vm1957, %v2799, 0.0
        %v2888 = vadd.f32 %v2886, %v2887
        %v2889 = vsel %vm1957, %v2800, 0.0
        %v2890 = vadd.f32 %v2888, %v2889
        %v2891 = vsel %vm1957, %v2801, 0.0
        %v2892 = vadd.f32 %v2890, %v2891
        %v2893 = vsel %vm1957, %v2806, 0.0
        %v2894 = vadd.f32 %v2892, %v2893
        %v2895 = vsel %vm1957, %v2807, 0.0
        %v2896 = vadd.f32 %v2894, %v2895
        %v2897 = vsel %vm1957, %v2808, 0.0
        %v2898 = vadd.f32 %v2896, %v2897
        %v2899 = vsel %vm1957, %v2809, 0.0
        %v2900 = vadd.f32 %v2898, %v2899
        %v2901 = vsel %vm1957, %v2810, 0.0
        %v2902 = vadd.f32 %v2900, %v2901
        %v2903 = vsel %vm1957, %v2811, 0.0
        %v2904 = vadd.f32 %v2902, %v2903
        %v2905 = vsel %vm1957, %v2812, 0.0
        %v2906 = vadd.f32 %v2904, %v2905
        %v2907 = vsel %vm1957, %v2813, 0.0
        %v2908 = vadd.f32 %v2906, %v2907
        %2909 = vadd.xlane.f32.xlu0 %v2908
        %v2910 = vpop.xlane.xlu0 %2909
        %vm2911 = vcmask 3072
        %2912 = vst.msk [vmem:[%s459] sm:$0xf] %vm2911, %v2910
        %v2913 = vld [vmem:[#allocation3] sm:$0xff]
        %v2914 = vld [vmem:[#allocation3 + $0x8] sm:$0xff]
        %v2915 = vld [vmem:[#allocation3 + $0x10] sm:$0xff]
        %v2916 = vld [vmem:[#allocation3 + $0x18] sm:$0xff]
        %v2917 = vld [vmem:[#allocation3 + $0x20] sm:$0xff]
        %v2918 = vld [vmem:[#allocation3 + $0x28] sm:$0xff]
        %v2919 = vld [vmem:[#allocation3 + $0x30] sm:$0xff]
        %v2920 = vld [vmem:[#allocation3 + $0x38] sm:$0xff]
        %v2921 = vld [vmem:[#allocation3 + $0x40] sm:$0xff]
        %v2922 = vld [vmem:[#allocation3 + $0x48] sm:$0xff]
        %v2923 = vld [vmem:[#allocation3 + $0x50] sm:$0xff]
        %v2924 = vld [vmem:[#allocation3 + $0x58] sm:$0xff]
        %v2925 = vld [vmem:[#allocation3 + $0x60] sm:$0xff]
        %v2926 = vld [vmem:[#allocation3 + $0x68] sm:$0xff]
        %v2927 = vld [vmem:[#allocation3 + $0x70] sm:$0xff]
        %v2928 = vld [vmem:[#allocation3 + $0x78] sm:$0xff]
        %2945 = vst [vmem:[#allocation1] ss:$2 sm:$0xff] %v2913
        %s2946 = scalar_lea.vmem [#allocation1], 16
        %2947 = vst [vmem:[%s2946] ss:$2 sm:$0xff] %v2914
        %s2948 = scalar_lea.vmem [#allocation1], 32
        %2949 = vst [vmem:[%s2948] ss:$2 sm:$0xff] %v2915
        %s2950 = scalar_lea.vmem [#allocation1], 48
        %2951 = vst [vmem:[%s2950] ss:$2 sm:$0xff] %v2916
        %v2952 = vld.sshfl [vmem:[#allocation1] sm:$0xff pattern:$0x75316420]
        %v2953 = vld.sshfl [vmem:[#allocation1 + $0x8] sm:$0xff pattern:$0x75316420]
        %v2954 = vld.sshfl [vmem:[#allocation1 + $0x10] sm:$0xff pattern:$0x75316420]
        %v2955 = vld.sshfl [vmem:[#allocation1 + $0x18] sm:$0xff pattern:$0x75316420]
        %v2956 = vld.sshfl [vmem:[#allocation1 + $0x20] sm:$0xff pattern:$0x75316420]
        %v2957 = vld.sshfl [vmem:[#allocation1 + $0x28] sm:$0xff pattern:$0x75316420]
        %v2958 = vld.sshfl [vmem:[#allocation1 + $0x30] sm:$0xff pattern:$0x75316420]
        %v2959 = vld.sshfl [vmem:[#allocation1 + $0x38] sm:$0xff pattern:$0x75316420]
        %2960 = vst [vmem:[#allocation1] ss:$2 sm:$0xff] %v2917
        %2961 = vst [vmem:[%s2946] ss:$2 sm:$0xff] %v2918
        %2962 = vst [vmem:[%s2948] ss:$2 sm:$0xff] %v2919
        %2963 = vst [vmem:[%s2950] ss:$2 sm:$0xff] %v2920
        %v2964 = vld.sshfl [vmem:[#allocation1] sm:$0xff pattern:$0x75316420]
        %v2965 = vld.sshfl [vmem:[#allocation1 + $0x8] sm:$0xff pattern:$0x75316420]
        %v2966 = vld.sshfl [vmem:[#allocation1 + $0x10] sm:$0xff pattern:$0x75316420]
        %v2967 = vld.sshfl [vmem:[#allocation1 + $0x18] sm:$0xff pattern:$0x75316420]
        %v2968 = vld.sshfl [vmem:[#allocation1 + $0x20] sm:$0xff pattern:$0x75316420]
        %v2969 = vld.sshfl [vmem:[#allocation1 + $0x28] sm:$0xff pattern:$0x75316420]
        %v2970 = vld.sshfl [vmem:[#allocation1 + $0x30] sm:$0xff pattern:$0x75316420]
        %v2971 = vld.sshfl [vmem:[#allocation1 + $0x38] sm:$0xff pattern:$0x75316420]
        %2972 = vst [vmem:[#allocation1] ss:$2 sm:$0xff] %v2921
        %2973 = vst [vmem:[%s2946] ss:$2 sm:$0xff] %v2922
        %2974 = vst [vmem:[%s2948] ss:$2 sm:$0xff] %v2923
        %2975 = vst [vmem:[%s2950] ss:$2 sm:$0xff] %v2924
        %v2976 = vld.sshfl [vmem:[#allocation1] sm:$0xff pattern:$0x75316420]
        %v2977 = vld.sshfl [vmem:[#allocation1 + $0x8] sm:$0xff pattern:$0x75316420]
        %v2978 = vld.sshfl [vmem:[#allocation1 + $0x10] sm:$0xff pattern:$0x75316420]
        %v2979 = vld.sshfl [vmem:[#allocation1 + $0x18] sm:$0xff pattern:$0x75316420]
        %v2980 = vld.sshfl [vmem:[#allocation1 + $0x20] sm:$0xff pattern:$0x75316420]
        %v2981 = vld.sshfl [vmem:[#allocation1 + $0x28] sm:$0xff pattern:$0x75316420]
        %v2982 = vld.sshfl [vmem:[#allocation1 + $0x30] sm:$0xff pattern:$0x75316420]
        %v2983 = vld.sshfl [vmem:[#allocation1 + $0x38] sm:$0xff pattern:$0x75316420]
        %2984 = vst [vmem:[#allocation1] ss:$2 sm:$0xff] %v2925
        %2985 = vst [vmem:[%s2946] ss:$2 sm:$0xff] %v2926
        %2986 = vst [vmem:[%s2948] ss:$2 sm:$0xff] %v2927
        %2987 = vst [vmem:[%s2950] ss:$2 sm:$0xff] %v2928
        %v2988 = vld.sshfl [vmem:[#allocation1] sm:$0xff pattern:$0x75316420]
        %v2989 = vld.sshfl [vmem:[#allocation1 + $0x8] sm:$0xff pattern:$0x75316420]
        %v2990 = vld.sshfl [vmem:[#allocation1 + $0x10] sm:$0xff pattern:$0x75316420]
        %v2991 = vld.sshfl [vmem:[#allocation1 + $0x18] sm:$0xff pattern:$0x75316420]
        %v2992 = vld.sshfl [vmem:[#allocation1 + $0x20] sm:$0xff pattern:$0x75316420]
        %v2993 = vld.sshfl [vmem:[#allocation1 + $0x28] sm:$0xff pattern:$0x75316420]
        %v2994 = vld.sshfl [vmem:[#allocation1 + $0x30] sm:$0xff pattern:$0x75316420]
        %v2995 = vld.sshfl [vmem:[#allocation1 + $0x38] sm:$0xff pattern:$0x75316420]
        %v3028 = vsel %vm1957, %v2952, 0.0
        %v3029 = vsel %vm1957, %v2953, 0.0
        %v3030 = vadd.f32 %v3028, %v3029
        %v3031 = vsel %vm1957, %v2954, 0.0
        %v3032 = vadd.f32 %v3030, %v3031
        %v3033 = vsel %vm1957, %v2955, 0.0
        %v3034 = vadd.f32 %v3032, %v3033
        %v3035 = vsel %vm1957, %v2956, 0.0
        %v3036 = vadd.f32 %v3034, %v3035
        %v3037 = vsel %vm1957, %v2957, 0.0
        %v3038 = vadd.f32 %v3036, %v3037
        %v3039 = vsel %vm1957, %v2958, 0.0
        %v3040 = vadd.f32 %v3038, %v3039
        %v3041 = vsel %vm1957, %v2959, 0.0
        %v3042 = vadd.f32 %v3040, %v3041
        %v3043 = vsel %vm1957, %v2964, 0.0
        %v3044 = vadd.f32 %v3042, %v3043
        %v3045 = vsel %vm1957, %v2965, 0.0
        %v3046 = vadd.f32 %v3044, %v3045
        %v3047 = vsel %vm1957, %v2966, 0.0
        %v3048 = vadd.f32 %v3046, %v3047
        %v3049 = vsel %vm1957, %v2967, 0.0
        %v3050 = vadd.f32 %v3048, %v3049
        %v3051 = vsel %vm1957, %v2968, 0.0
        %v3052 = vadd.f32 %v3050, %v3051
        %v3053 = vsel %vm1957, %v2969, 0.0
        %v3054 = vadd.f32 %v3052, %v3053
        %v3055 = vsel %vm1957, %v2970, 0.0
        %v3056 = vadd.f32 %v3054, %v3055
        %v3057 = vsel %vm1957, %v2971, 0.0
        %v3058 = vadd.f32 %v3056, %v3057
        %v3059 = vsel %vm1957, %v2976, 0.0
        %v3060 = vadd.f32 %v3058, %v3059
        %v3061 = vsel %vm1957, %v2977, 0.0
        %v3062 = vadd.f32 %v3060, %v3061
        %v3063 = vsel %vm1957, %v2978, 0.0
        %v3064 = vadd.f32 %v3062, %v3063
        %v3065 = vsel %vm1957, %v2979, 0.0
        %v3066 = vadd.f32 %v3064, %v3065
        %v3067 = vsel %vm1957, %v2980, 0.0
        %v3068 = vadd.f32 %v3066, %v3067
        %v3069 = vsel %vm1957, %v2981, 0.0
        %v3070 = vadd.f32 %v3068, %v3069
        %v3071 = vsel %vm1957, %v2982, 0.0
        %v3072 = vadd.f32 %v3070, %v3071
        %v3073 = vsel %vm1957, %v2983, 0.0
        %v3074 = vadd.f32 %v3072, %v3073
        %v3075 = vsel %vm1957, %v2988, 0.0
        %v3076 = vadd.f32 %v3074, %v3075
        %v3077 = vsel %vm1957, %v2989, 0.0
        %v3078 = vadd.f32 %v3076, %v3077
        %v3079 = vsel %vm1957, %v2990, 0.0
        %v3080 = vadd.f32 %v3078, %v3079
        %v3081 = vsel %vm1957, %v2991, 0.0
        %v3082 = vadd.f32 %v3080, %v3081
        %v3083 = vsel %vm1957, %v2992, 0.0
        %v3084 = vadd.f32 %v3082, %v3083
        %v3085 = vsel %vm1957, %v2993, 0.0
        %v3086 = vadd.f32 %v3084, %v3085
        %v3087 = vsel %vm1957, %v2994, 0.0
        %v3088 = vadd.f32 %v3086, %v3087
        %v3089 = vsel %vm1957, %v2995, 0.0
        %v3090 = vadd.f32 %v3088, %v3089
        %3091 = vadd.xlane.f32.xlu0 %v3090
        %v3092 = vpop.xlane.xlu0 %3091
        %3093 = vst.msk [vmem:[%s463] sm:$0xf] %vm2911, %v3092
        %v3094 = vld [vmem:[#allocation4] sm:$0xff]
        %v3095 = vld [vmem:[#allocation4 + $0x8] sm:$0xff]
        %v3096 = vld [vmem:[#allocation4 + $0x10] sm:$0xff]
        %v3097 = vld [vmem:[#allocation4 + $0x18] sm:$0xff]
        %v3098 = vld [vmem:[#allocation4 + $0x20] sm:$0xff]
        %v3099 = vld [vmem:[#allocation4 + $0x28] sm:$0xff]
        %v3100 = vld [vmem:[#allocation4 + $0x30] sm:$0xff]
        %v3101 = vld [vmem:[#allocation4 + $0x38] sm:$0xff]
        %v3102 = vld [vmem:[#allocation4 + $0x40] sm:$0xff]
        %v3103 = vld [vmem:[#allocation4 + $0x48] sm:$0xff]
        %v3104 = vld [vmem:[#allocation4 + $0x50] sm:$0xff]
        %v3105 = vld [vmem:[#allocation4 + $0x58] sm:$0xff]
        %v3106 = vld [vmem:[#allocation4 + $0x60] sm:$0xff]
        %v3107 = vld [vmem:[#allocation4 + $0x68] sm:$0xff]
        %v3108 = vld [vmem:[#allocation4 + $0x70] sm:$0xff]
        %v3109 = vld [vmem:[#allocation4 + $0x78] sm:$0xff]
        %3126 = vst [vmem:[#allocation1] ss:$2 sm:$0xff] %v3094
        %s3127 = scalar_lea.vmem [#allocation1], 16
        %3128 = vst [vmem:[%s3127] ss:$2 sm:$0xff] %v3095
        %s3129 = scalar_lea.vmem [#allocation1], 32
        %3130 = vst [vmem:[%s3129] ss:$2 sm:$0xff] %v3096
        %s3131 = scalar_lea.vmem [#allocation1], 48
        %3132 = vst [vmem:[%s3131] ss:$2 sm:$0xff] %v3097
        %v3133 = vld.sshfl [vmem:[#allocation1] sm:$0xff pattern:$0x75316420]
        %v3134 = vld.sshfl [vmem:[#allocation1 + $0x8] sm:$0xff pattern:$0x75316420]
        %v3135 = vld.sshfl [vmem:[#allocation1 + $0x10] sm:$0xff pattern:$0x75316420]
        %v3136 = vld.sshfl [vmem:[#allocation1 + $0x18] sm:$0xff pattern:$0x75316420]
        %v3137 = vld.sshfl [vmem:[#allocation1 + $0x20] sm:$0xff pattern:$0x75316420]
        %v3138 = vld.sshfl [vmem:[#allocation1 + $0x28] sm:$0xff pattern:$0x75316420]
        %v3139 = vld.sshfl [vmem:[#allocation1 + $0x30] sm:$0xff pattern:$0x75316420]
        %v3140 = vld.sshfl [vmem:[#allocation1 + $0x38] sm:$0xff pattern:$0x75316420]
        %3141 = vst [vmem:[#allocation1] ss:$2 sm:$0xff] %v3098
        %3142 = vst [vmem:[%s3127] ss:$2 sm:$0xff] %v3099
        %3143 = vst [vmem:[%s3129] ss:$2 sm:$0xff] %v3100
        %3144 = vst [vmem:[%s3131] ss:$2 sm:$0xff] %v3101
        %v3145 = vld.sshfl [vmem:[#allocation1] sm:$0xff pattern:$0x75316420]
        %v3146 = vld.sshfl [vmem:[#allocation1 + $0x8] sm:$0xff pattern:$0x75316420]
        %v3147 = vld.sshfl [vmem:[#allocation1 + $0x10] sm:$0xff pattern:$0x75316420]
        %v3148 = vld.sshfl [vmem:[#allocation1 + $0x18] sm:$0xff pattern:$0x75316420]
        %v3149 = vld.sshfl [vmem:[#allocation1 + $0x20] sm:$0xff pattern:$0x75316420]
        %v3150 = vld.sshfl [vmem:[#allocation1 + $0x28] sm:$0xff pattern:$0x75316420]
        %v3151 = vld.sshfl [vmem:[#allocation1 + $0x30] sm:$0xff pattern:$0x75316420]
        %v3152 = vld.sshfl [vmem:[#allocation1 + $0x38] sm:$0xff pattern:$0x75316420]
        %3153 = vst [vmem:[#allocation1] ss:$2 sm:$0xff] %v3102
        %3154 = vst [vmem:[%s3127] ss:$2 sm:$0xff] %v3103
        %3155 = vst [vmem:[%s3129] ss:$2 sm:$0xff] %v3104
        %3156 = vst [vmem:[%s3131] ss:$2 sm:$0xff] %v3105
        %v3157 = vld.sshfl [vmem:[#allocation1] sm:$0xff pattern:$0x75316420]
        %v3158 = vld.sshfl [vmem:[#allocation1 + $0x8] sm:$0xff pattern:$0x75316420]
        %v3159 = vld.sshfl [vmem:[#allocation1 + $0x10] sm:$0xff pattern:$0x75316420]
        %v3160 = vld.sshfl [vmem:[#allocation1 + $0x18] sm:$0xff pattern:$0x75316420]
        %v3161 = vld.sshfl [vmem:[#allocation1 + $0x20] sm:$0xff pattern:$0x75316420]
        %v3162 = vld.sshfl [vmem:[#allocation1 + $0x28] sm:$0xff pattern:$0x75316420]
        %v3163 = vld.sshfl [vmem:[#allocation1 + $0x30] sm:$0xff pattern:$0x75316420]
        %v3164 = vld.sshfl [vmem:[#allocation1 + $0x38] sm:$0xff pattern:$0x75316420]
        %3165 = vst [vmem:[#allocation1] ss:$2 sm:$0xff] %v3106
        %3166 = vst [vmem:[%s3127] ss:$2 sm:$0xff] %v3107
        %3167 = vst [vmem:[%s3129] ss:$2 sm:$0xff] %v3108
        %3168 = vst [vmem:[%s3131] ss:$2 sm:$0xff] %v3109
        %v3169 = vld.sshfl [vmem:[#allocation1] sm:$0xff pattern:$0x75316420]
        %v3170 = vld.sshfl [vmem:[#allocation1 + $0x8] sm:$0xff pattern:$0x75316420]
        %v3171 = vld.sshfl [vmem:[#allocation1 + $0x10] sm:$0xff pattern:$0x75316420]
        %v3172 = vld.sshfl [vmem:[#allocation1 + $0x18] sm:$0xff pattern:$0x75316420]
        %v3173 = vld.sshfl [vmem:[#allocation1 + $0x20] sm:$0xff pattern:$0x75316420]
        %v3174 = vld.sshfl [vmem:[#allocation1 + $0x28] sm:$0xff pattern:$0x75316420]
        %v3175 = vld.sshfl [vmem:[#allocation1 + $0x30] sm:$0xff pattern:$0x75316420]
        %v3176 = vld.sshfl [vmem:[#allocation1 + $0x38] sm:$0xff pattern:$0x75316420]
        %v3209 = vsel %vm1957, %v3133, 0.0
        %v3210 = vsel %vm1957, %v3134, 0.0
        %v3211 = vadd.f32 %v3209, %v3210
        %v3212 = vsel %vm1957, %v3135, 0.0
        %v3213 = vadd.f32 %v3211, %v3212
        %v3214 = vsel %vm1957, %v3136, 0.0
        %v3215 = vadd.f32 %v3213, %v3214
        %v3216 = vsel %vm1957, %v3137, 0.0
        %v3217 = vadd.f32 %v3215, %v3216
        %v3218 = vsel %vm1957, %v3138, 0.0
        %v3219 = vadd.f32 %v3217, %v3218
        %v3220 = vsel %vm1957, %v3139, 0.0
        %v3221 = vadd.f32 %v3219, %v3220
        %v3222 = vsel %vm1957, %v3140, 0.0
        %v3223 = vadd.f32 %v3221, %v3222
        %v3224 = vsel %vm1957, %v3145, 0.0
        %v3225 = vadd.f32 %v3223, %v3224
        %v3226 = vsel %vm1957, %v3146, 0.0
        %v3227 = vadd.f32 %v3225, %v3226
        %v3228 = vsel %vm1957, %v3147, 0.0
        %v3229 = vadd.f32 %v3227, %v3228
        %v3230 = vsel %vm1957, %v3148, 0.0
        %v3231 = vadd.f32 %v3229, %v3230
        %v3232 = vsel %vm1957, %v3149, 0.0
        %v3233 = vadd.f32 %v3231, %v3232
        %v3234 = vsel %vm1957, %v3150, 0.0
        %v3235 = vadd.f32 %v3233, %v3234
        %v3236 = vsel %vm1957, %v3151, 0.0
        %v3237 = vadd.f32 %v3235, %v3236
        %v3238 = vsel %vm1957, %v3152, 0.0
        %v3239 = vadd.f32 %v3237, %v3238
        %v3240 = vsel %vm1957, %v3157, 0.0
        %v3241 = vadd.f32 %v3239, %v3240
        %v3242 = vsel %vm1957, %v3158, 0.0
        %v3243 = vadd.f32 %v3241, %v3242
        %v3244 = vsel %vm1957, %v3159, 0.0
        %v3245 = vadd.f32 %v3243, %v3244
        %v3246 = vsel %vm1957, %v3160, 0.0
        %v3247 = vadd.f32 %v3245, %v3246
        %v3248 = vsel %vm1957, %v3161, 0.0
        %v3249 = vadd.f32 %v3247, %v3248
        %v3250 = vsel %vm1957, %v3162, 0.0
        %v3251 = vadd.f32 %v3249, %v3250
        %v3252 = vsel %vm1957, %v3163, 0.0
        %v3253 = vadd.f32 %v3251, %v3252
        %v3254 = vsel %vm1957, %v3164, 0.0
        %v3255 = vadd.f32 %v3253, %v3254
        %v3256 = vsel %vm1957, %v3169, 0.0
        %v3257 = vadd.f32 %v3255, %v3256
        %v3258 = vsel %vm1957, %v3170, 0.0
        %v3259 = vadd.f32 %v3257, %v3258
        %v3260 = vsel %vm1957, %v3171, 0.0
        %v3261 = vadd.f32 %v3259, %v3260
        %v3262 = vsel %vm1957, %v3172, 0.0
        %v3263 = vadd.f32 %v3261, %v3262
        %v3264 = vsel %vm1957, %v3173, 0.0
        %v3265 = vadd.f32 %v3263, %v3264
        %v3266 = vsel %vm1957, %v3174, 0.0
        %v3267 = vadd.f32 %v3265, %v3266
        %v3268 = vsel %vm1957, %v3175, 0.0
        %v3269 = vadd.f32 %v3267, %v3268
        %v3270 = vsel %vm1957, %v3176, 0.0
        %v3271 = vadd.f32 %v3269, %v3270
        %3272 = vadd.xlane.f32.xlu0 %v3271
        %v3273 = vpop.xlane.xlu0 %3272
        %3274 = vst.msk [vmem:[%s467] sm:$0xf] %vm2911, %v3273
        %v3275 = vld [vmem:[#allocation5] sm:$0xff]
        %v3276 = vld [vmem:[#allocation5 + $0x8] sm:$0xff]
        %v3277 = vld [vmem:[#allocation5 + $0x10] sm:$0xff]
        %v3278 = vld [vmem:[#allocation5 + $0x18] sm:$0xff]
        %v3279 = vld [vmem:[#allocation5 + $0x20] sm:$0xff]
        %v3280 = vld [vmem:[#allocation5 + $0x28] sm:$0xff]
        %v3281 = vld [vmem:[#allocation5 + $0x30] sm:$0xff]
        %v3282 = vld [vmem:[#allocation5 + $0x38] sm:$0xff]
        %v3283 = vld [vmem:[#allocation5 + $0x40] sm:$0xff]
        %v3284 = vld [vmem:[#allocation5 + $0x48] sm:$0xff]
        %v3285 = vld [vmem:[#allocation5 + $0x50] sm:$0xff]
        %v3286 = vld [vmem:[#allocation5 + $0x58] sm:$0xff]
        %v3287 = vld [vmem:[#allocation5 + $0x60] sm:$0xff]
        %v3288 = vld [vmem:[#allocation5 + $0x68] sm:$0xff]
        %v3289 = vld [vmem:[#allocation5 + $0x70] sm:$0xff]
        %v3290 = vld [vmem:[#allocation5 + $0x78] sm:$0xff]
        %3307 = vst [vmem:[#allocation1] ss:$2 sm:$0xff] %v3275
        %s3308 = scalar_lea.vmem [#allocation1], 16
        %3309 = vst [vmem:[%s3308] ss:$2 sm:$0xff] %v3276
        %s3310 = scalar_lea.vmem [#allocation1], 32
        %3311 = vst [vmem:[%s3310] ss:$2 sm:$0xff] %v3277
        %s3312 = scalar_lea.vmem [#allocation1], 48
        %3313 = vst [vmem:[%s3312] ss:$2 sm:$0xff] %v3278
        %v3314 = vld.sshfl [vmem:[#allocation1] sm:$0xff pattern:$0x75316420]
        %v3315 = vld.sshfl [vmem:[#allocation1 + $0x8] sm:$0xff pattern:$0x75316420]
        %v3316 = vld.sshfl [vmem:[#allocation1 + $0x10] sm:$0xff pattern:$0x75316420]
        %v3317 = vld.sshfl [vmem:[#allocation1 + $0x18] sm:$0xff pattern:$0x75316420]
        %v3318 = vld.sshfl [vmem:[#allocation1 + $0x20] sm:$0xff pattern:$0x75316420]
        %v3319 = vld.sshfl [vmem:[#allocation1 + $0x28] sm:$0xff pattern:$0x75316420]
        %v3320 = vld.sshfl [vmem:[#allocation1 + $0x30] sm:$0xff pattern:$0x75316420]
        %v3321 = vld.sshfl [vmem:[#allocation1 + $0x38] sm:$0xff pattern:$0x75316420]
        %3322 = vst [vmem:[#allocation1] ss:$2 sm:$0xff] %v3279
        %3323 = vst [vmem:[%s3308] ss:$2 sm:$0xff] %v3280
        %3324 = vst [vmem:[%s3310] ss:$2 sm:$0xff] %v3281
        %3325 = vst [vmem:[%s3312] ss:$2 sm:$0xff] %v3282
        %v3326 = vld.sshfl [vmem:[#allocation1] sm:$0xff pattern:$0x75316420]
        %v3327 = vld.sshfl [vmem:[#allocation1 + $0x8] sm:$0xff pattern:$0x75316420]
        %v3328 = vld.sshfl [vmem:[#allocation1 + $0x10] sm:$0xff pattern:$0x75316420]
        %v3329 = vld.sshfl [vmem:[#allocation1 + $0x18] sm:$0xff pattern:$0x75316420]
        %v3330 = vld.sshfl [vmem:[#allocation1 + $0x20] sm:$0xff pattern:$0x75316420]
        %v3331 = vld.sshfl [vmem:[#allocation1 + $0x28] sm:$0xff pattern:$0x75316420]
        %v3332 = vld.sshfl [vmem:[#allocation1 + $0x30] sm:$0xff pattern:$0x75316420]
        %v3333 = vld.sshfl [vmem:[#allocation1 + $0x38] sm:$0xff pattern:$0x75316420]
        %3334 = vst [vmem:[#allocation1] ss:$2 sm:$0xff] %v3283
        %3335 = vst [vmem:[%s3308] ss:$2 sm:$0xff] %v3284
        %3336 = vst [vmem:[%s3310] ss:$2 sm:$0xff] %v3285
        %3337 = vst [vmem:[%s3312] ss:$2 sm:$0xff] %v3286
        %v3338 = vld.sshfl [vmem:[#allocation1] sm:$0xff pattern:$0x75316420]
        %v3339 = vld.sshfl [vmem:[#allocation1 + $0x8] sm:$0xff pattern:$0x75316420]
        %v3340 = vld.sshfl [vmem:[#allocation1 + $0x10] sm:$0xff pattern:$0x75316420]
        %v3341 = vld.sshfl [vmem:[#allocation1 + $0x18] sm:$0xff pattern:$0x75316420]
        %v3342 = vld.sshfl [vmem:[#allocation1 + $0x20] sm:$0xff pattern:$0x75316420]
        %v3343 = vld.sshfl [vmem:[#allocation1 + $0x28] sm:$0xff pattern:$0x75316420]
        %v3344 = vld.sshfl [vmem:[#allocation1 + $0x30] sm:$0xff pattern:$0x75316420]
        %v3345 = vld.sshfl [vmem:[#allocation1 + $0x38] sm:$0xff pattern:$0x75316420]
        %3346 = vst [vmem:[#allocation1] ss:$2 sm:$0xff] %v3287
        %3347 = vst [vmem:[%s3308] ss:$2 sm:$0xff] %v3288
        %3348 = vst [vmem:[%s3310] ss:$2 sm:$0xff] %v3289
        %3349 = vst [vmem:[%s3312] ss:$2 sm:$0xff] %v3290
        %v3350 = vld.sshfl [vmem:[#allocation1] sm:$0xff pattern:$0x75316420]
        %v3351 = vld.sshfl [vmem:[#allocation1 + $0x8] sm:$0xff pattern:$0x75316420]
        %v3352 = vld.sshfl [vmem:[#allocation1 + $0x10] sm:$0xff pattern:$0x75316420]
        %v3353 = vld.sshfl [vmem:[#allocation1 + $0x18] sm:$0xff pattern:$0x75316420]
        %v3354 = vld.sshfl [vmem:[#allocation1 + $0x20] sm:$0xff pattern:$0x75316420]
        %v3355 = vld.sshfl [vmem:[#allocation1 + $0x28] sm:$0xff pattern:$0x75316420]
        %v3356 = vld.sshfl [vmem:[#allocation1 + $0x30] sm:$0xff pattern:$0x75316420]
        %v3357 = vld.sshfl [vmem:[#allocation1 + $0x38] sm:$0xff pattern:$0x75316420]
        %v3390 = vsel %vm1957, %v3314, 0.0
        %v3391 = vsel %vm1957, %v3315, 0.0
        %v3392 = vadd.f32 %v3390, %v3391
        %v3393 = vsel %vm1957, %v3316, 0.0
        %v3394 = vadd.f32 %v3392, %v3393
        %v3395 = vsel %vm1957, %v3317, 0.0
        %v3396 = vadd.f32 %v3394, %v3395
        %v3397 = vsel %vm1957, %v3318, 0.0
        %v3398 = vadd.f32 %v3396, %v3397
        %v3399 = vsel %vm1957, %v3319, 0.0
        %v3400 = vadd.f32 %v3398, %v3399
        %v3401 = vsel %vm1957, %v3320, 0.0
        %v3402 = vadd.f32 %v3400, %v3401
        %v3403 = vsel %vm1957, %v3321, 0.0
        %v3404 = vadd.f32 %v3402, %v3403
        %v3405 = vsel %vm1957, %v3326, 0.0
        %v3406 = vadd.f32 %v3404, %v3405
        %v3407 = vsel %vm1957, %v3327, 0.0
        %v3408 = vadd.f32 %v3406, %v3407
        %v3409 = vsel %vm1957, %v3328, 0.0
        %v3410 = vadd.f32 %v3408, %v3409
        %v3411 = vsel %vm1957, %v3329, 0.0
        %v3412 = vadd.f32 %v3410, %v3411
        %v3413 = vsel %vm1957, %v3330, 0.0
        %v3414 = vadd.f32 %v3412, %v3413
        %v3415 = vsel %vm1957, %v3331, 0.0
        %v3416 = vadd.f32 %v3414, %v3415
        %v3417 = vsel %vm1957, %v3332, 0.0
        %v3418 = vadd.f32 %v3416, %v3417
        %v3419 = vsel %vm1957, %v3333, 0.0
        %v3420 = vadd.f32 %v3418, %v3419
        %v3421 = vsel %vm1957, %v3338, 0.0
        %v3422 = vadd.f32 %v3420, %v3421
        %v3423 = vsel %vm1957, %v3339, 0.0
        %v3424 = vadd.f32 %v3422, %v3423
        %v3425 = vsel %vm1957, %v3340, 0.0
        %v3426 = vadd.f32 %v3424, %v3425
        %v3427 = vsel %vm1957, %v3341, 0.0
        %v3428 = vadd.f32 %v3426, %v3427
        %v3429 = vsel %vm1957, %v3342, 0.0
        %v3430 = vadd.f32 %v3428, %v3429
        %v3431 = vsel %vm1957, %v3343, 0.0
        %v3432 = vadd.f32 %v3430, %v3431
        %v3433 = vsel %vm1957, %v3344, 0.0
        %v3434 = vadd.f32 %v3432, %v3433
        %v3435 = vsel %vm1957, %v3345, 0.0
        %v3436 = vadd.f32 %v3434, %v3435
        %v3437 = vsel %vm1957, %v3350, 0.0
        %v3438 = vadd.f32 %v3436, %v3437
        %v3439 = vsel %vm1957, %v3351, 0.0
        %v3440 = vadd.f32 %v3438, %v3439
        %v3441 = vsel %vm1957, %v3352, 0.0
        %v3442 = vadd.f32 %v3440, %v3441
        %v3443 = vsel %vm1957, %v3353, 0.0
        %v3444 = vadd.f32 %v3442, %v3443
        %v3445 = vsel %vm1957, %v3354, 0.0
        %v3446 = vadd.f32 %v3444, %v3445
        %v3447 = vsel %vm1957, %v3355, 0.0
        %v3448 = vadd.f32 %v3446, %v3447
        %v3449 = vsel %vm1957, %v3356, 0.0
        %v3450 = vadd.f32 %v3448, %v3449
        %v3451 = vsel %vm1957, %v3357, 0.0
        %v3452 = vadd.f32 %v3450, %v3451
        %3453 = vadd.xlane.f32.xlu0 %v3452
        %v3454 = vpop.xlane.xlu0 %3453
        %3455 = vst.msk [vmem:[%s471] sm:$0xf] %vm2911, %v3454
      $region44: #{attention_block.3} parent=35 // pred_fallthru
        _
      %s3456 = smul.u32 32, %s26
      %p3457 = scmp.lt.s32.totalorder %s25, 1
      %s3458 = scalar_select %p3457, %s25, 1
      %p3459 = scmp.lt.s32.totalorder %s3456, 31
      %s3460 = scalar_select %p3459, %s3456, 31
      %s3461 = smul.addr %s3458, 32
      %s3462 = sadd.s32 %s3460, %s3461
      %s3463 = smul.addr %s3462, 2
      %s3464 = scalar_lea.vmem %s4, %s3463
      %s3465 = smul.u32 32, %s26
      %p3466 = scmp.lt.s32.totalorder %s25, 1
      %s3467 = scalar_select %p3466, %s25, 1
      %p3468 = scmp.lt.s32.totalorder %s3465, 31
      %s3469 = scalar_select %p3468, %s3465, 31
      %s3470 = smul.addr %s3467, 32
      %s3471 = sadd.s32 %s3469, %s3470
      %s3472 = smul.addr %s3471, 2
      %s3473 = scalar_lea.vmem %s5, %s3472
      %p3474 = scmp.lt.s32.totalorder %s25, 1
      %s3475 = scalar_select %p3474, %s25, 1
      %s3476 = smul.addr %s3475, 4
      %s3477 = scalar_lea.vmem %s6, %s3476
      %p3478 = scmp.lt.s32.totalorder %s25, 1
      %s3479 = scalar_select %p3478, %s25, 1
      %s3480 = smul.addr %s3479, 4
      %s3481 = scalar_lea.vmem %s7, %s3480
      %p3482 = scmp.lt.s32.totalorder %s25, 1
      %s3483 = scalar_select %p3482, %s25, 1
      %s3484 = smul.addr %s3483, 4
      %s3485 = scalar_lea.vmem %s8, %s3484
      %p3486 = scmp.lt.s32.totalorder %s25, 1
      %s3487 = scalar_select %p3486, %s25, 1
      %s3488 = smul.addr %s3487, 4
      %s3489 = scalar_lea.vmem %s9, %s3488
      // Predicated region
      $region45: #{attention_block.3} parent=35 // pred_check
        %p3490 = pneg %p151
      $region46: #{attention_block.3} parent=35 // pred_check_branch
        %3492 = sbr.rel (%p3490) target = $region48
      $region47: #{attention_block.3} parent=35 // pred_region
        %s3493 = smul.u32 32, %s26
      $region48: #{attention_block.3} parent=35 // pred_fallthru
        _
      // Predicated region
      $region49: #{attention_block.3} parent=35 // pred_check
        %p3494 = pneg %p179
      $region50: #{attention_block.3} parent=35 // pred_check_branch
        %3496 = sbr.rel (%p3494) target = $region52
      $region51: #{attention_block.3} parent=35 // pred_region
        %s3497 = smul.u32 32, %s26
      $region52: #{attention_block.3} parent=35 // pred_fallthru
        _
      // Predicated region
      $region53: #{attention_block.3} parent=35 // pred_check
        %p3498 = pneg %p205
      $region54: #{attention_block.3} parent=35 // pred_check_branch
        %3500 = sbr.rel (%p3498) target = $region56
      $region55: #{attention_block.3} parent=35 // pred_region
        _
      $region56: #{attention_block.3} parent=35 // pred_fallthru
        _
      // Predicated region
      $region57: #{attention_block.3} parent=35 // pred_check
        %p3501 = pneg %p231
      $region58: #{attention_block.3} parent=35 // pred_check_branch
        %3503 = sbr.rel (%p3501) target = $region60
      $region59: #{attention_block.3} parent=35 // pred_region
        _
      $region60: #{attention_block.3} parent=35 // pred_fallthru
        _
      // Predicated region
      $region61: #{attention_block.3} parent=35 // pred_check
        %p3504 = pneg %p257
      $region62: #{attention_block.3} parent=35 // pred_check_branch
        %3506 = sbr.rel (%p3504) target = $region64
      $region63: #{attention_block.3} parent=35 // pred_region
        _
      $region64: #{attention_block.3} parent=35 // pred_fallthru
        _
      // Predicated region
      $region65: #{attention_block.3} parent=35 // pred_check
        %p3507 = pneg %p283
      $region66: #{attention_block.3} parent=35 // pred_check_branch
        %3509 = sbr.rel (%p3507) target = $region68
      $region67: #{attention_block.3} parent=35 // pred_region
        _
      $region68: #{attention_block.3} parent=35 // pred_fallthru
        _
    $region36: #{attention_block.3} parent=5 // pred_fallthru
      _
    %p3510 = scmp.le.s32.totalorder 2, %s16
    // Predicated region
    $region69: #{attention_block.3} parent=5 // pred_check
      %p3511 = pneg %p3510
    $region70: #{attention_block.3} parent=5 // pred_check_branch
      %3513 = sbr.rel (%p3511) target = $region72
    $region71: #{attention_block.3} parent=5 // pred_region
      %s3514 = ssub.s32 %s16, 2
      // Predicated region
      $region73: #{attention_block.3} parent=71 // pred_check
        %p3515 = pneg %p157
      $region74: #{attention_block.3} parent=71 // pred_check_branch
        %3517 = sbr.rel (%p3515) target = $region76
      $region75: #{attention_block.3} parent=71 // pred_region
        %s3518 = smul.u32 32, %s28
        %p3519 = scmp.lt.s32.totalorder %s27, 1
        %s3520 = scalar_select %p3519, %s27, 1
        %p3521 = scmp.lt.s32.totalorder %s3518, 31
        %s3522 = scalar_select %p3521, %s3518, 31
        %s3523 = smul.addr %s3520, 32
        %s3524 = sadd.s32 %s3522, %s3523
        %s3525 = smul.addr %s3524, 2
        %s3526 = scalar_lea.vmem %s4, %s3525
      $region76: #{attention_block.3} parent=71 // pred_fallthru
        _
      // Predicated region
      $region77: #{attention_block.3} parent=71 // pred_check
        %p3527 = pneg %p185
      $region78: #{attention_block.3} parent=71 // pred_check_branch
        %3529 = sbr.rel (%p3527) target = $region80
      $region79: #{attention_block.3} parent=71 // pred_region
        %s3530 = smul.u32 32, %s28
        %p3531 = scmp.lt.s32.totalorder %s27, 1
        %s3532 = scalar_select %p3531, %s27, 1
        %p3533 = scmp.lt.s32.totalorder %s3530, 31
        %s3534 = scalar_select %p3533, %s3530, 31
        %s3535 = smul.addr %s3532, 32
        %s3536 = sadd.s32 %s3534, %s3535
        %s3537 = smul.addr %s3536, 2
        %s3538 = scalar_lea.vmem %s5, %s3537
      $region80: #{attention_block.3} parent=71 // pred_fallthru
        _
      // Predicated region
      $region81: #{attention_block.3} parent=71 // pred_check
        %p3539 = pneg %p211
      $region82: #{attention_block.3} parent=71 // pred_check_branch
        %3541 = sbr.rel (%p3539) target = $region84
      $region83: #{attention_block.3} parent=71 // pred_region
        %p3542 = scmp.lt.s32.totalorder %s27, 1
        %s3543 = scalar_select %p3542, %s27, 1
        %s3544 = smul.addr %s3543, 4
        %s3545 = scalar_lea.vmem %s6, %s3544
      $region84: #{attention_block.3} parent=71 // pred_fallthru
        _
      // Predicated region
      $region85: #{attention_block.3} parent=71 // pred_check
        %p3546 = pneg %p237
      $region86: #{attention_block.3} parent=71 // pred_check_branch
        %3548 = sbr.rel (%p3546) target = $region88
      $region87: #{attention_block.3} parent=71 // pred_region
        %p3549 = scmp.lt.s32.totalorder %s27, 1
        %s3550 = scalar_select %p3549, %s27, 1
        %s3551 = smul.addr %s3550, 4
        %s3552 = scalar_lea.vmem %s7, %s3551
      $region88: #{attention_block.3} parent=71 // pred_fallthru
        _
      // Predicated region
      $region89: #{attention_block.3} parent=71 // pred_check
        %p3553 = pneg %p263
      $region90: #{attention_block.3} parent=71 // pred_check_branch
        %3555 = sbr.rel (%p3553) target = $region92
      $region91: #{attention_block.3} parent=71 // pred_region
        %p3556 = scmp.lt.s32.totalorder %s27, 1
        %s3557 = scalar_select %p3556, %s27, 1
        %s3558 = smul.addr %s3557, 4
        %s3559 = scalar_lea.vmem %s8, %s3558
      $region92: #{attention_block.3} parent=71 // pred_fallthru
        _
      // Predicated region
      $region93: #{attention_block.3} parent=71 // pred_check
        %p3560 = pneg %p289
      $region94: #{attention_block.3} parent=71 // pred_check_branch
        %3562 = sbr.rel (%p3560) target = $region96
      $region95: #{attention_block.3} parent=71 // pred_region
        %p3563 = scmp.lt.s32.totalorder %s27, 1
        %s3564 = scalar_select %p3563, %s27, 1
        %s3565 = smul.addr %s3564, 4
        %s3566 = scalar_lea.vmem %s9, %s3565
      $region96: #{attention_block.3} parent=71 // pred_fallthru
        _
    $region72: #{attention_block.3} parent=5 // pred_fallthru
      _
  $region6: #{attention_block.3} parent=0 // loop_footer
    %s20 = sadd.s32 1, %s16
  $region7: #{attention_block.3} parent=0 // loop_footer_branch
    %15 = sbr.rel target = $region3
  $region8: #{attention_block.3} parent=0 // loop_exit
    _

// kernel: attention_block.5
$region0: #{attention_block.5}
  #allocation0 [shape = 'u32[]', space=smem, size = 0x4, offset = 0x4, fixed_abs, tag = 'smem constant byte address 0x4 - core index']
  #allocation1 [shape = 'u32[72,128]{1,0:T(1,128)}', space=vmem, size = 0x9000, scoped, tag = 'internal scratch']
  %s0 = inlined_call_operand.vmem [shape: f32[2], index: 0, kind: input, shape index: {}]
  %s1 = inlined_call_operand.vmem [shape: f32[2,8,4096], index: 1, kind: input, shape index: {}]
  %s2 = inlined_call_operand.vmem [shape: bf16[2,1,4096], index: 2, kind: input, shape index: {}]
  %s3 = inlined_call_operand.vmem [shape: f32[2,8,4096], index: 3, kind: output, shape index: {}]
  %s4 = sld [smem:[#allocation0]]
  $region49: #{attention_block.5} parent=0
    _
  %s6 = ssub.s32 1, %s4
  %s7 = scalar_select 0, %s6, %s4
  $region1: #{attention_block.5} parent=0
    #allocation2 [shape = 'u8[512]{0}', space=smem, size = 0x200, scoped, tag = 'input window, operand 0, single buffered']
    #allocation3 [shape = 's32[2]{0}', space=sflag, size = 0x8, scoped, tag = 'scoped memory for attention_block.5']
    %8 = vsyncpa [#allocation3], 0
    loop: start=0, step=1, limit=4
    $region2: #{attention_block.5} parent=1 // loop_pre_header
      _
    $region3: #{attention_block.5} parent=1 // loop_header
      %s10 = sphi 0, %s14
      %p11 = scmp.ge.s32.totalorder %s10, 4
      %s17 = sphi 0, %s29
      %s18 = sphi 0, %s25
      %s19 = sphi 0, %s17
      %s20 = sphi 0, %s18
      %s21 = sphi 0, %s19
      %s22 = sphi 0, %s20
      %s30 = sphi 0, %s30
      %s32 = sphi 0, %s30
      %s33 = sphi 0, %s32
      %s47 = sphi 0, %s33
      %s55 = sphi 0, %s57
      %s58 = sphi 0, %s55
      %s59 = sphi 0, %s58
      %s75 = sphi 0, %s59
      %s83 = sphi 0, %s85
      %s86 = sphi 0, %s83
      %s87 = sphi 0, %s86
      %s103 = sphi 0, %s87
      %s111 = sphi 0, %s113
      %s114 = sphi 0, %s111
      %s115 = sphi 0, %s114
      %s131 = sphi 0, %s115
    $region4: #{attention_block.5} parent=1 // loop_header_branch
      %13 = sbr.rel (%p11) target = $region8
    $region5: #{attention_block.5} parent=1 // loop_body
      %s15 = ssub.s32 %s10, 1
      %s16 = ssub.s32 %s10, 2
      %s23 = sadd.s32 1, %s18
      %p24 = scmp.ge.s32.totalorder %s23, 1
      %s25 = scalar_select %p24, 0, %s23
      %s26 = sadd.s32 1, %s17
      %s27 = scalar_select %p24, %s26, %s17
      %p28 = scmp.ge.s32.totalorder %s27, 2
      %s29 = scalar_select %p28, 0, %s27
      %s31 = sadd.s32 %s30, 1
      %p34 = scmp.eq.s32.totalorder %s10, 1
      %p35 = scmp.ne.s32.totalorder %s30, %s32
      %p36 = scmp.eq.s32.totalorder %s10, 0
      %p37 = por %p35, %p36
      %p38 = scmp.ne.s32.totalorder %s30, %s32
      %p39 = scmp.eq.s32.totalorder %s15, 1
      %p40 = por %p38, %p39
      %p41 = scmp.ne.s32.totalorder %s32, %s33
      %p42 = scmp.eq.s32.totalorder %s15, 0
      %p43 = por %p41, %p42
      %p44 = scmp.ne.s32.totalorder %s32, %s33
      %p45 = scmp.eq.s32.totalorder %s16, 1
      %p46 = por %p44, %p45
      %p48 = scmp.ne.s32.totalorder %s33, %s47
      %p49 = scmp.eq.s32.totalorder %s16, 0
      %p50 = por %p48, %p49
      %s51 = ssub.s32 %s17, %s29
      %s52 = ssub.s32 %s18, %s25
      %s53 = sor.u32 %s51, %s52
      %p54 = scmp.eq.s32.totalorder %s53, 0
      %s56 = sadd.s32 %s55, 1
      %s57 = scalar_select %p54, %s55, %s56
      %p60 = pneg %p54
      %p61 = scmp.eq.s32.totalorder %s10, 1
      %p62 = por %p60, %p61
      %p63 = scmp.ne.s32.totalorder %s55, %s58
      %p64 = scmp.eq.s32.totalorder %s10, 0
      %p65 = por %p63, %p64
      %p66 = scmp.ne.s32.totalorder %s55, %s58
      %p67 = scmp.eq.s32.totalorder %s15, 1
      %p68 = por %p66, %p67
      %p69 = scmp.ne.s32.totalorder %s58, %s59
      %p70 = scmp.eq.s32.totalorder %s15, 0
      %p71 = por %p69, %p70
      %p72 = scmp.ne.s32.totalorder %s58, %s59
      %p73 = scmp.eq.s32.totalorder %s16, 1
      %p74 = por %p72, %p73
      %p76 = scmp.ne.s32.totalorder %s59, %s75
      %p77 = scmp.eq.s32.totalorder %s16, 0
      %p78 = por %p76, %p77
      %s79 = ssub.s32 %s17, %s29
      %s80 = ssub.s32 %s18, %s25
      %s81 = sor.u32 %s79, %s80
      %p82 = scmp.eq.s32.totalorder %s81, 0
      %s84 = sadd.s32 %s83, 1
      %s85 = scalar_select %p82, %s83, %s84
      %p88 = pneg %p82
      %p89 = scmp.eq.s32.totalorder %s10, 1
      %p90 = por %p88, %p89
      %p91 = scmp.ne.s32.totalorder %s83, %s86
      %p92 = scmp.eq.s32.totalorder %s10, 0
      %p93 = por %p91, %p92
      %p94 = scmp.ne.s32.totalorder %s83, %s86
      %p95 = scmp.eq.s32.totalorder %s15, 1
      %p96 = por %p94, %p95
      %p97 = scmp.ne.s32.totalorder %s86, %s87
      %p98 = scmp.eq.s32.totalorder %s15, 0
      %p99 = por %p97, %p98
      %p100 = scmp.ne.s32.totalorder %s86, %s87
      %p101 = scmp.eq.s32.totalorder %s16, 1
      %p102 = por %p100, %p101
      %p104 = scmp.ne.s32.totalorder %s87, %s103
      %p105 = scmp.eq.s32.totalorder %s16, 0
      %p106 = por %p104, %p105
      %s107 = ssub.s32 %s17, %s29
      %s108 = ssub.s32 %s18, %s25
      %s109 = sor.u32 %s107, %s108
      %p110 = scmp.eq.s32.totalorder %s109, 0
      %s112 = sadd.s32 %s111, 1
      %s113 = scalar_select %p110, %s111, %s112
      %p116 = pneg %p110
      %p117 = scmp.eq.s32.totalorder %s10, 1
      %p118 = por %p116, %p117
      %p119 = scmp.ne.s32.totalorder %s111, %s114
      %p120 = scmp.eq.s32.totalorder %s10, 0
      %p121 = por %p119, %p120
      %p122 = scmp.ne.s32.totalorder %s111, %s114
      %p123 = scmp.eq.s32.totalorder %s15, 1
      %p124 = por %p122, %p123
      %p125 = scmp.ne.s32.totalorder %s114, %s115
      %p126 = scmp.eq.s32.totalorder %s15, 0
      %p127 = por %p125, %p126
      %p128 = scmp.ne.s32.totalorder %s114, %s115
      %p129 = scmp.eq.s32.totalorder %s16, 1
      %p130 = por %p128, %p129
      %p132 = scmp.ne.s32.totalorder %s115, %s131
      %p133 = scmp.eq.s32.totalorder %s16, 0
      %p134 = por %p132, %p133
      %p135 = scmp.le.s32.totalorder 1, %s10
      %p136 = scmp.lt.s32.totalorder %s10, 3
      %p137 = pnand %p135, %p136
      %p138 = pneg %p137
      // Predicated region
      $region9: #{attention_block.5} parent=5 // pred_check
        _
      $region10: #{attention_block.5} parent=5 // pred_check_branch
        %140 = sbr.rel (%p137) target = $region12
      $region11: #{attention_block.5} parent=5 // pred_region
        %s141 = ssub.s32 %s10, 1
        // Predicated region
        $region13: #{attention_block.5} parent=11 // pred_check
          %p142 = pneg %p43
        $region14: #{attention_block.5} parent=11 // pred_check_branch
          %144 = sbr.rel (%p142) target = $region16
        $region15: #{attention_block.5} parent=11 // pred_region
          %146 = vsyncadd [#allocation3], 0
          %s148 = sshll.u32 %s0, 4
          %s149 = int_to_ptr.vmem [resolvable:$true] %s148
          %151 = dma.vmem_to_smem %s149, 16, [#allocation2], [#allocation3]
        $region16: #{attention_block.5} parent=11 // pred_fallthru
          _
      $region12: #{attention_block.5} parent=5 // pred_fallthru
        _
      %p152 = scmp.lt.s32.totalorder %s10, 2
      // Predicated region
      $region17: #{attention_block.5} parent=5 // pred_check
        %p153 = pneg %p152
      $region18: #{attention_block.5} parent=5 // pred_check_branch
        %155 = sbr.rel (%p153) target = $region20
      $region19: #{attention_block.5} parent=5 // pred_region
        // Predicated region
        $region21: #{attention_block.5} parent=19 // pred_check
          %p156 = pneg %p65
        $region22: #{attention_block.5} parent=19 // pred_check_branch
          %158 = sbr.rel (%p156) target = $region24
        $region23: #{attention_block.5} parent=19 // pred_region
          %s159 = smul.u32 32, %s18
          %p160 = scmp.lt.s32.totalorder %s17, 1
          %s161 = scalar_select %p160, %s17, 1
          %p162 = scmp.lt.s32.totalorder %s159, 31
          %s163 = scalar_select %p162, %s159, 31
          %s164 = smul.addr %s161, 32
          %s165 = sadd.s32 %s163, %s164
          %s166 = smul.addr %s165, 8
          %s167 = scalar_lea.vmem %s1, %s166
          %s168 = smul.u32 32, %s18
        $region24: #{attention_block.5} parent=19 // pred_fallthru
          _
        // Predicated region
        $region25: #{attention_block.5} parent=19 // pred_check
          %p169 = pneg %p93
        $region26: #{attention_block.5} parent=19 // pred_check_branch
          %171 = sbr.rel (%p169) target = $region28
        $region27: #{attention_block.5} parent=19 // pred_region
          %s172 = smul.u32 32, %s18
          %p173 = scmp.lt.s32.totalorder %s17, 1
          %s174 = scalar_select %p173, %s17, 1
          %p175 = scmp.lt.s32.totalorder %s172, 31
          %s176 = scalar_select %p175, %s172, 31
          %s177 = smul.addr %s174, 32
          %s178 = sadd.s32 %s176, %s177
          %s179 = scalar_lea.vmem %s2, %s178
          %s180 = smul.u32 32, %s18
        $region28: #{attention_block.5} parent=19 // pred_fallthru
          _
      $region20: #{attention_block.5} parent=5 // pred_fallthru
        _
      %p181 = scmp.le.s32.totalorder 1, %s10
      %p182 = scmp.lt.s32.totalorder %s10, 3
      %p183 = pnand %p181, %p182
      %p184 = pneg %p183
      // Predicated region
      $region29: #{attention_block.5} parent=5 // pred_check
        _
      $region30: #{attention_block.5} parent=5 // pred_check_branch
        %186 = sbr.rel (%p183) target = $region32
      $region31: #{attention_block.5} parent=5 // pred_region
        %s187 = ssub.s32 %s10, 1
        // Predicated region
        $region33: #{attention_block.5} parent=31 // pred_check
          %p188 = pneg %p43
        $region34: #{attention_block.5} parent=31 // pred_check_branch
          %190 = sbr.rel (%p188) target = $region36
        $region35: #{attention_block.5} parent=31 // pred_region
          %192 = dma.done [#allocation3], 16
        $region36: #{attention_block.5} parent=31 // pred_fallthru
          _
        %193 = sfence
        %p194 = pneg %p43
        %p195 = pneg %p40
        %s196 = smul.u32 32, %s20
        %p197 = scmp.lt.s32.totalorder %s19, 1
        %s198 = scalar_select %p197, %s19, 1
        %p199 = scmp.lt.s32.totalorder %s196, 31
        %s200 = scalar_select %p199, %s196, 31
        %s201 = smul.addr %s198, 32
        %s202 = sadd.s32 %s200, %s201
        %s203 = smul.addr %s202, 8
        %s204 = scalar_lea.vmem %s1, %s203
        %p205 = pneg %p71
        %p206 = pneg %p68
        %s207 = smul.u32 32, %s20
        %p208 = scmp.lt.s32.totalorder %s19, 1
        %s209 = scalar_select %p208, %s19, 1
        %p210 = scmp.lt.s32.totalorder %s207, 31
        %s211 = scalar_select %p210, %s207, 31
        %s212 = smul.addr %s209, 32
        %s213 = sadd.s32 %s211, %s212
        %s214 = scalar_lea.vmem %s2, %s213
        %p215 = pneg %p99
        %p216 = pneg %p96
        %p217 = pneg %p127
        %p218 = pneg %p124
        %s219 = smul.u32 32, %s20
        %p220 = scmp.lt.s32.totalorder %s19, 1
        %s221 = scalar_select %p220, %s19, 1
        %p222 = scmp.lt.s32.totalorder %s219, 31
        %s223 = scalar_select %p222, %s219, 31
        %s224 = smul.addr %s221, 32
        %s225 = sadd.s32 %s223, %s224
        %s226 = smul.addr %s225, 8
        %s227 = scalar_lea.vmem %s3, %s226
        %s228 = smul.u32 32, %s20
        %p229 = scmp.lt.s32.totalorder %s19, 1
        %s230 = scalar_select %p229, %s19, 1
        %p231 = scmp.lt.s32.totalorder %s228, 31
        %s232 = scalar_select %p231, %s228, 31
        %s233 = smul.addr %s230, 32
        %s234 = sadd.s32 %s232, %s233
        %s235 = smul.addr %s234, 8
        %s236 = scalar_lea.vmem %s1, %s235
        %s237 = smul.u32 32, %s20
        %s238 = smul.u32 32, %s20
        %p239 = scmp.lt.s32.totalorder %s19, 1
        %s240 = scalar_select %p239, %s19, 1
        %p241 = scmp.lt.s32.totalorder %s238, 31
        %s242 = scalar_select %p241, %s238, 31
        %s243 = smul.addr %s240, 32
        %s244 = sadd.s32 %s242, %s243
        %s245 = scalar_lea.vmem %s2, %s244
        %s246 = smul.u32 32, %s20
        %s247 = smul.u32 32, %s20
        %p248 = scmp.lt.s32.totalorder %s19, 1
        %s249 = scalar_select %p248, %s19, 1
        %p250 = scmp.lt.s32.totalorder %s247, 31
        %s251 = scalar_select %p250, %s247, 31
        %s252 = smul.addr %s249, 32
        %s253 = sadd.s32 %s251, %s252
        %s254 = smul.addr %s253, 8
        %s255 = scalar_lea.vmem %s3, %s254
        %s256 = smul.u32 32, %s20
        %s257 = sld [smem:[#allocation2]]
        %s258 = sld [smem:[#allocation2 + $0x1]]
        %v259 = vld [vmem:[%s245] sm:$0xff]
        %v260 = vld [vmem:[%s245 + $0x8] sm:$0xff]
        %v261 = vld [vmem:[%s245 + $0x10] sm:$0xff]
        %v262 = vld [vmem:[%s245 + $0x18] sm:$0xff]
        %v263 = vunpack.c.l.bf16 %v259
        %v264 = vunpack.c.h.bf16 %v259
        %v265 = vunpack.c.l.bf16 %v260
        %v266 = vunpack.c.h.bf16 %v260
        %v267 = vunpack.c.l.bf16 %v261
        %v268 = vunpack.c.h.bf16 %v261
        %v269 = vunpack.c.l.bf16 %v262
        %v270 = vunpack.c.h.bf16 %v262
        %v271 = vstv %s257
        %v272 = vmul.f32 %v263, %v271
        %v273 = vmul.f32 %v264, %v271
        %v274 = vmul.f32 %v265, %v271
        %v275 = vmul.f32 %v266, %v271
        %v276 = vmul.f32 %v267, %v271
        %v277 = vmul.f32 %v268, %v271
        %v278 = vmul.f32 %v269, %v271
        %v279 = vmul.f32 %v270, %v271
        %v280 = vstv %s258
        %v281 = vadd.f32 %v272, %v280
        %v282 = vadd.f32 %v273, %v280
        %v283 = vadd.f32 %v274, %v280
        %v284 = vadd.f32 %v275, %v280
        %v285 = vadd.f32 %v276, %v280
        %v286 = vadd.f32 %v277, %v280
        %v287 = vadd.f32 %v278, %v280
        %v288 = vadd.f32 %v279, %v280
        %v289 = vsub.f32 0.0, %v281
        %v290 = vsub.f32 0.0, %v282
        %v291 = vsub.f32 0.0, %v283
        %v292 = vsub.f32 0.0, %v284
        %v293 = vsub.f32 0.0, %v285
        %v294 = vsub.f32 0.0, %v286
        %v295 = vsub.f32 0.0, %v287
        %v296 = vsub.f32 0.0, %v288
        %v297 = vmul.f32 %v289, 1.442695
        %v298 = vpow.pop %v297
        %v299 = vmul.f32 %v290, 1.442695
        %v300 = vpow.pop %v299
        %v301 = vmul.f32 %v291, 1.442695
        %v302 = vpow.pop %v301
        %v303 = vmul.f32 %v292, 1.442695
        %v304 = vpow.pop %v303
        %v305 = vmul.f32 %v293, 1.442695
        %v306 = vpow.pop %v305
        %v307 = vmul.f32 %v294, 1.442695
        %v308 = vpow.pop %v307
        %v309 = vmul.f32 %v295, 1.442695
        %v310 = vpow.pop %v309
        %v311 = vmul.f32 %v296, 1.442695
        %v312 = vpow.pop %v311
        %v313 = vadd.f32 %v298, 1.0
        %v314 = vadd.f32 %v300, 1.0
        %v315 = vadd.f32 %v302, 1.0
        %v316 = vadd.f32 %v304, 1.0
        %v317 = vadd.f32 %v306, 1.0
        %v318 = vadd.f32 %v308, 1.0
        %v319 = vadd.f32 %v310, 1.0
        %v320 = vadd.f32 %v312, 1.0
        %v321 = vrcp.pop %v313
        %v322 = vmul.f32 %v313, %v321
        %v323 = vsub.f32 1.0, %v322
        %v324 = vmul.f32 %v321, %v323
        %v325 = vadd.f32 %v321, %v324
        %vm326 = vweird.f32 %v313
        %vm327 = vweird.f32 %v321
        %vm328 = vmor %vm326, %vm327
        %v329 = vsel %vm328, %v321, %v325
        %v330 = vand.u32 2147483647, %v313
        %vm331 = vcmp.eq.f32.partialorder %v330, 8.507059e+37
        %v332 = vand.u32 %v313, 2147483648
        %v333 = vor.u32 1.1754944e-38, %v332
        %v334 = vsel %vm331, %v333, %v329
        %v335 = vmul.f32 1.0, %v334
        %v336 = vrcp.pop %v314
        %v337 = vmul.f32 %v314, %v336
        %v338 = vsub.f32 1.0, %v337
        %v339 = vmul.f32 %v336, %v338
        %v340 = vadd.f32 %v336, %v339
        %vm341 = vweird.f32 %v314
        %vm342 = vweird.f32 %v336
        %vm343 = vmor %vm341, %vm342
        %v344 = vsel %vm343, %v336, %v340
        %v345 = vand.u32 2147483647, %v314
        %vm346 = vcmp.eq.f32.partialorder %v345, 8.507059e+37
        %v347 = vand.u32 %v314, 2147483648
        %v348 = vor.u32 1.1754944e-38, %v347
        %v349 = vsel %vm346, %v348, %v344
        %v350 = vmul.f32 1.0, %v349
        %v351 = vrcp.pop %v315
        %v352 = vmul.f32 %v315, %v351
        %v353 = vsub.f32 1.0, %v352
        %v354 = vmul.f32 %v351, %v353
        %v355 = vadd.f32 %v351, %v354
        %vm356 = vweird.f32 %v315
        %vm357 = vweird.f32 %v351
        %vm358 = vmor %vm356, %vm357
        %v359 = vsel %vm358, %v351, %v355
        %v360 = vand.u32 2147483647, %v315
        %vm361 = vcmp.eq.f32.partialorder %v360, 8.507059e+37
        %v362 = vand.u32 %v315, 2147483648
        %v363 = vor.u32 1.1754944e-38, %v362
        %v364 = vsel %vm361, %v363, %v359
        %v365 = vmul.f32 1.0, %v364
        %v366 = vrcp.pop %v316
        %v367 = vmul.f32 %v316, %v366
        %v368 = vsub.f32 1.0, %v367
        %v369 = vmul.f32 %v366, %v368
        %v370 = vadd.f32 %v366, %v369
        %vm371 = vweird.f32 %v316
        %vm372 = vweird.f32 %v366
        %vm373 = vmor %vm371, %vm372
        %v374 = vsel %vm373, %v366, %v370
        %v375 = vand.u32 2147483647, %v316
        %vm376 = vcmp.eq.f32.partialorder %v375, 8.507059e+37
        %v377 = vand.u32 %v316, 2147483648
        %v378 = vor.u32 1.1754944e-38, %v377
        %v379 = vsel %vm376, %v378, %v374
        %v380 = vmul.f32 1.0, %v379
        %v381 = vrcp.pop %v317
        %v382 = vmul.f32 %v317, %v381
        %v383 = vsub.f32 1.0, %v382
        %v384 = vmul.f32 %v381, %v383
        %v385 = vadd.f32 %v381, %v384
        %vm386 = vweird.f32 %v317
        %vm387 = vweird.f32 %v381
        %vm388 = vmor %vm386, %vm387
        %v389 = vsel %vm388, %v381, %v385
        %v390 = vand.u32 2147483647, %v317
        %vm391 = vcmp.eq.f32.partialorder %v390, 8.507059e+37
        %v392 = vand.u32 %v317, 2147483648
        %v393 = vor.u32 1.1754944e-38, %v392
        %v394 = vsel %vm391, %v393, %v389
        %v395 = vmul.f32 1.0, %v394
        %v396 = vrcp.pop %v318
        %v397 = vmul.f32 %v318, %v396
        %v398 = vsub.f32 1.0, %v397
        %v399 = vmul.f32 %v396, %v398
        %v400 = vadd.f32 %v396, %v399
        %vm401 = vweird.f32 %v318
        %vm402 = vweird.f32 %v396
        %vm403 = vmor %vm401, %vm402
        %v404 = vsel %vm403, %v396, %v400
        %v405 = vand.u32 2147483647, %v318
        %vm406 = vcmp.eq.f32.partialorder %v405, 8.507059e+37
        %v407 = vand.u32 %v318, 2147483648
        %v408 = vor.u32 1.1754944e-38, %v407
        %v409 = vsel %vm406, %v408, %v404
        %v410 = vmul.f32 1.0, %v409
        %v411 = vrcp.pop %v319
        %v412 = vmul.f32 %v319, %v411
        %v413 = vsub.f32 1.0, %v412
        %v414 = vmul.f32 %v411, %v413
        %v415 = vadd.f32 %v411, %v414
        %vm416 = vweird.f32 %v319
        %vm417 = vweird.f32 %v411
        %vm418 = vmor %vm416, %vm417
        %v419 = vsel %vm418, %v411, %v415
        %v420 = vand.u32 2147483647, %v319
        %vm421 = vcmp.eq.f32.partialorder %v420, 8.507059e+37
        %v422 = vand.u32 %v319, 2147483648
        %v423 = vor.u32 1.1754944e-38, %v422
        %v424 = vsel %vm421, %v423, %v419
        %v425 = vmul.f32 1.0, %v424
        %v426 = vrcp.pop %v320
        %v427 = vmul.f32 %v320, %v426
        %v428 = vsub.f32 1.0, %v427
        %v429 = vmul.f32 %v426, %v428
        %v430 = vadd.f32 %v426, %v429
        %vm431 = vweird.f32 %v320
        %vm432 = vweird.f32 %v426
        %vm433 = vmor %vm431, %vm432
        %v434 = vsel %vm433, %v426, %v430
        %v435 = vand.u32 2147483647, %v320
        %vm436 = vcmp.eq.f32.partialorder %v435, 8.507059e+37
        %v437 = vand.u32 %v320, 2147483648
        %v438 = vor.u32 1.1754944e-38, %v437
        %v439 = vsel %vm436, %v438, %v434
        %v440 = vmul.f32 1.0, %v439
        %v441 = vld [vmem:[%s236] sm:$0xff]
        %v442 = vld [vmem:[%s236 + $0x8] sm:$0xff]
        %v443 = vld [vmem:[%s236 + $0x10] sm:$0xff]
        %v444 = vld [vmem:[%s236 + $0x18] sm:$0xff]
        %v445 = vld [vmem:[%s236 + $0x20] sm:$0xff]
        %v446 = vld [vmem:[%s236 + $0x28] sm:$0xff]
        %v447 = vld [vmem:[%s236 + $0x30] sm:$0xff]
        %v448 = vld [vmem:[%s236 + $0x38] sm:$0xff]
        %v449 = vld [vmem:[%s236 + $0x40] sm:$0xff]
        %v450 = vld [vmem:[%s236 + $0x48] sm:$0xff]
        %v451 = vld [vmem:[%s236 + $0x50] sm:$0xff]
        %v452 = vld [vmem:[%s236 + $0x58] sm:$0xff]
        %v453 = vld [vmem:[%s236 + $0x60] sm:$0xff]
        %v454 = vld [vmem:[%s236 + $0x68] sm:$0xff]
        %v455 = vld [vmem:[%s236 + $0x70] sm:$0xff]
        %v456 = vld [vmem:[%s236 + $0x78] sm:$0xff]
        %v457 = vld [vmem:[%s236 + $0x80] sm:$0xff]
        %v458 = vld [vmem:[%s236 + $0x88] sm:$0xff]
        %v459 = vld [vmem:[%s236 + $0x90] sm:$0xff]
        %v460 = vld [vmem:[%s236 + $0x98] sm:$0xff]
        %v461 = vld [vmem:[%s236 + $0xa0] sm:$0xff]
        %v462 = vld [vmem:[%s236 + $0xa8] sm:$0xff]
        %v463 = vld [vmem:[%s236 + $0xb0] sm:$0xff]
        %v464 = vld [vmem:[%s236 + $0xb8] sm:$0xff]
        %v465 = vld [vmem:[%s236 + $0xc0] sm:$0xff]
        %v466 = vld [vmem:[%s236 + $0xc8] sm:$0xff]
        %v467 = vld [vmem:[%s236 + $0xd0] sm:$0xff]
        %v468 = vld [vmem:[%s236 + $0xd8] sm:$0xff]
        %v469 = vld [vmem:[%s236 + $0xe0] sm:$0xff]
        %v470 = vld [vmem:[%s236 + $0xe8] sm:$0xff]
        %v471 = vld [vmem:[%s236 + $0xf0] sm:$0xff]
        %v472 = vld [vmem:[%s236 + $0xf8] sm:$0xff]
        %v481 = vperm.slane %v335, 0
        %v482 = vperm.slane %v335, 2
        %v483 = vperm.slane %v335, 4
        %v484 = vperm.slane %v335, 6
        %v485 = vperm.slane %v350, 0
        %v486 = vperm.slane %v350, 2
        %v487 = vperm.slane %v350, 4
        %v488 = vperm.slane %v350, 6
        %v489 = vperm.slane %v365, 0
        %v490 = vperm.slane %v365, 2
        %v491 = vperm.slane %v365, 4
        %v492 = vperm.slane %v365, 6
        %v493 = vperm.slane %v380, 0
        %v494 = vperm.slane %v380, 2
        %v495 = vperm.slane %v380, 4
        %v496 = vperm.slane %v380, 6
        %v497 = vperm.slane %v395, 0
        %v498 = vperm.slane %v395, 2
        %v499 = vperm.slane %v395, 4
        %v500 = vperm.slane %v395, 6
        %v501 = vperm.slane %v410, 0
        %v502 = vperm.slane %v410, 2
        %v503 = vperm.slane %v410, 4
        %v504 = vperm.slane %v410, 6
        %v505 = vperm.slane %v425, 0
        %v506 = vperm.slane %v425, 2
        %v507 = vperm.slane %v425, 4
        %v508 = vperm.slane %v425, 6
        %v509 = vperm.slane %v440, 0
        %v510 = vperm.slane %v440, 2
        %v511 = vperm.slane %v440, 4
        %v512 = vperm.slane %v440, 6
        %v545 = vperm.slane %v481, 0
        %v546 = vperm.slane %v482, 0
        %v547 = vperm.slane %v483, 0
        %v548 = vperm.slane %v484, 0
        %v549 = vperm.slane %v485, 0
        %v550 = vperm.slane %v486, 0
        %v551 = vperm.slane %v487, 0
        %v552 = vperm.slane %v488, 0
        %v553 = vperm.slane %v489, 0
        %v554 = vperm.slane %v490, 0
        %v555 = vperm.slane %v491, 0
        %v556 = vperm.slane %v492, 0
        %v557 = vperm.slane %v493, 0
        %v558 = vperm.slane %v494, 0
        %v559 = vperm.slane %v495, 0
        %v560 = vperm.slane %v496, 0
        %v561 = vperm.slane %v497, 0
        %v562 = vperm.slane %v498, 0
        %v563 = vperm.slane %v499, 0
        %v564 = vperm.slane %v500, 0
        %v565 = vperm.slane %v501, 0
        %v566 = vperm.slane %v502, 0
        %v567 = vperm.slane %v503, 0
        %v568 = vperm.slane %v504, 0
        %v569 = vperm.slane %v505, 0
        %v570 = vperm.slane %v506, 0
        %v571 = vperm.slane %v507, 0
        %v572 = vperm.slane %v508, 0
        %v573 = vperm.slane %v509, 0
        %v574 = vperm.slane %v510, 0
        %v575 = vperm.slane %v511, 0
        %v576 = vperm.slane %v512, 0
        %v577 = vmul.f32 %v441, %v545
        %v578 = vmul.f32 %v442, %v546
        %v579 = vmul.f32 %v443, %v547
        %v580 = vmul.f32 %v444, %v548
        %v581 = vmul.f32 %v445, %v549
        %v582 = vmul.f32 %v446, %v550
        %v583 = vmul.f32 %v447, %v551
        %v584 = vmul.f32 %v448, %v552
        %v585 = vmul.f32 %v449, %v553
        %v586 = vmul.f32 %v450, %v554
        %v587 = vmul.f32 %v451, %v555
        %v588 = vmul.f32 %v452, %v556
        %v589 = vmul.f32 %v453, %v557
        %v590 = vmul.f32 %v454, %v558
        %v591 = vmul.f32 %v455, %v559
        %v592 = vmul.f32 %v456, %v560
        %v593 = vmul.f32 %v457, %v561
        %v594 = vmul.f32 %v458, %v562
        %v595 = vmul.f32 %v459, %v563
        %v596 = vmul.f32 %v460, %v564
        %v597 = vmul.f32 %v461, %v565
        %v598 = vmul.f32 %v462, %v566
        %v599 = vmul.f32 %v463, %v567
        %v600 = vmul.f32 %v464, %v568
        %v601 = vmul.f32 %v465, %v569
        %v602 = vmul.f32 %v466, %v570
        %v603 = vmul.f32 %v467, %v571
        %v604 = vmul.f32 %v468, %v572
        %v605 = vmul.f32 %v469, %v573
        %v606 = vmul.f32 %v470, %v574
        %v607 = vmul.f32 %v471, %v575
        %v608 = vmul.f32 %v472, %v576
        %609 = vst [vmem:[%s255] sm:$0xff] %v577
        %610 = vst [vmem:[%s255 + $0x8] sm:$0xff] %v578
        %611 = vst [vmem:[%s255 + $0x10] sm:$0xff] %v579
        %612 = vst [vmem:[%s255 + $0x18] sm:$0xff] %v580
        %613 = vst [vmem:[%s255 + $0x20] sm:$0xff] %v581
        %614 = vst [vmem:[%s255 + $0x28] sm:$0xff] %v582
        %615 = vst [vmem:[%s255 + $0x30] sm:$0xff] %v583
        %616 = vst [vmem:[%s255 + $0x38] sm:$0xff] %v584
        %617 = vst [vmem:[%s255 + $0x40] sm:$0xff] %v585
        %618 = vst [vmem:[%s255 + $0x48] sm:$0xff] %v586
        %619 = vst [vmem:[%s255 + $0x50] sm:$0xff] %v587
        %620 = vst [vmem:[%s255 + $0x58] sm:$0xff] %v588
        %621 = vst [vmem:[%s255 + $0x60] sm:$0xff] %v589
        %622 = vst [vmem:[%s255 + $0x68] sm:$0xff] %v590
        %623 = vst [vmem:[%s255 + $0x70] sm:$0xff] %v591
        %624 = vst [vmem:[%s255 + $0x78] sm:$0xff] %v592
        %625 = vst [vmem:[%s255 + $0x80] sm:$0xff] %v593
        %626 = vst [vmem:[%s255 + $0x88] sm:$0xff] %v594
        %627 = vst [vmem:[%s255 + $0x90] sm:$0xff] %v595
        %628 = vst [vmem:[%s255 + $0x98] sm:$0xff] %v596
        %629 = vst [vmem:[%s255 + $0xa0] sm:$0xff] %v597
        %630 = vst [vmem:[%s255 + $0xa8] sm:$0xff] %v598
        %631 = vst [vmem:[%s255 + $0xb0] sm:$0xff] %v599
        %632 = vst [vmem:[%s255 + $0xb8] sm:$0xff] %v600
        %633 = vst [vmem:[%s255 + $0xc0] sm:$0xff] %v601
        %634 = vst [vmem:[%s255 + $0xc8] sm:$0xff] %v602
        %635 = vst [vmem:[%s255 + $0xd0] sm:$0xff] %v603
        %636 = vst [vmem:[%s255 + $0xd8] sm:$0xff] %v604
        %637 = vst [vmem:[%s255 + $0xe0] sm:$0xff] %v605
        %638 = vst [vmem:[%s255 + $0xe8] sm:$0xff] %v606
        %639 = vst [vmem:[%s255 + $0xf0] sm:$0xff] %v607
        %640 = vst [vmem:[%s255 + $0xf8] sm:$0xff] %v608
        %s641 = smul.u32 32, %s20
        %p642 = scmp.lt.s32.totalorder %s19, 1
        %s643 = scalar_select %p642, %s19, 1
        %p644 = scmp.lt.s32.totalorder %s641, 31
        %s645 = scalar_select %p644, %s641, 31
        %s646 = smul.addr %s643, 32
        %s647 = sadd.s32 %s645, %s646
        %s648 = smul.addr %s647, 8
        %s649 = scalar_lea.vmem %s3, %s648
        // Predicated region
        $region37: #{attention_block.5} parent=31 // pred_check
          %p650 = pneg %p124
        $region38: #{attention_block.5} parent=31 // pred_check_branch
          %652 = sbr.rel (%p650) target = $region40
        $region39: #{attention_block.5} parent=31 // pred_region
          %s653 = smul.u32 32, %s20
        $region40: #{attention_block.5} parent=31 // pred_fallthru
          _
      $region32: #{attention_block.5} parent=5 // pred_fallthru
        _
      %p654 = scmp.le.s32.totalorder 2, %s10
      // Predicated region
      $region41: #{attention_block.5} parent=5 // pred_check
        %p655 = pneg %p654
      $region42: #{attention_block.5} parent=5 // pred_check_branch
        %657 = sbr.rel (%p655) target = $region44
      $region43: #{attention_block.5} parent=5 // pred_region
        %s658 = ssub.s32 %s10, 2
        // Predicated region
        $region45: #{attention_block.5} parent=43 // pred_check
          %p659 = pneg %p130
        $region46: #{attention_block.5} parent=43 // pred_check_branch
          %661 = sbr.rel (%p659) target = $region48
        $region47: #{attention_block.5} parent=43 // pred_region
          %s662 = smul.u32 32, %s22
          %p663 = scmp.lt.s32.totalorder %s21, 1
          %s664 = scalar_select %p663, %s21, 1
          %p665 = scmp.lt.s32.totalorder %s662, 31
          %s666 = scalar_select %p665, %s662, 31
          %s667 = smul.addr %s664, 32
          %s668 = sadd.s32 %s666, %s667
          %s669 = smul.addr %s668, 8
          %s670 = scalar_lea.vmem %s3, %s669
        $region48: #{attention_block.5} parent=43 // pred_fallthru
          _
      $region44: #{attention_block.5} parent=5 // pred_fallthru
        _
    $region6: #{attention_block.5} parent=1 // loop_footer
      %s14 = sadd.s32 1, %s10
    $region7: #{attention_block.5} parent=1 // loop_footer_branch
      %9 = sbr.rel target = $region3
    $region8: #{attention_block.5} parent=1 // loop_exit
      _
    %671 = vsyncpa [#allocation3], 1
    %s672 = scalar_lea.sflag [#allocation3], 1
    %673 = vsyncpa %s672, 1

</llo_original>
